<compile_context>
chip_gen: v5e
topology: v5e:2x2
jax: 0.10.0
libtpu: 0.0.40
codegen_flags: <defaults>
</compile_context>

<pallas_src>
import functools

import jax
import jax.numpy as jnp
from jax import lax
from jax.experimental import pallas as pl
from jax.experimental.pallas import tpu as pltpu


def _resnet_block_kernel(xp_ref, w1_ref, w2_ref, o_ref, hp_ref, *, H, W, C, eps):
    """Per-image ResnetBlock.

    xp_ref : (H+2, W+2, C) reflect-padded input, compute dtype.
    w*_ref : (9*C, C) pre-packed conv weights (tap-major), compute dtype.
    o_ref  : (H*W, C) output.
    hp_ref : (H+2, W+2, C) compute-dtype VMEM scratch for the padded
             intermediate activation.
    Requires H >= 2 and W >= 2 (true for all generator shapes).
    """
    HW = H * W
    compute_dtype = w1_ref.dtype

    def conv3x3(read_tap, w_ref):
        # 9 accumulating per-tap matmuls; contraction dim is C per tap
        # (native MXU contraction at C=256). f32 accumulation throughout.
        acc = None
        for t in range(9):
            dy, dx = divmod(t, 3)
            win = read_tap(dy, dx)                      # (HW, C) compute dtype
            wt = w_ref[t * C:(t + 1) * C, :]            # (C, C)
            y = jnp.dot(win, wt, preferred_element_type=jnp.float32)
            acc = y if acc is None else acc + y
        return acc                                      # (HW, C) f32

    def instance_norm(y):
        # Per-channel stats over the spatial axis; centered variance
        # (numerically safer than E[x^2]-E[x]^2 and the centered value is
        # needed for normalization anyway).  Matches PyTorch InstanceNorm2d
        # with affine=False (biased variance).
        mean = jnp.mean(y, axis=0, keepdims=True)
        centered = y - mean
        var = jnp.mean(centered * centered, axis=0, keepdims=True)
        return centered * jax.lax.rsqrt(var + eps)

    # ---- conv1 -> InstanceNorm -> ReLU --------------------------------
    def xp_tap(dy, dx):
        # Slice the shifted window directly out of the padded-input ref.
        return xp_ref[dy:dy + H, dx:dx + W, :].reshape(HW, C).astype(compute_dtype)

    h = jnp.maximum(instance_norm(conv3x3(xp_tap, w1_ref)), 0.0)

    # Fused cast + centre store, then reflection-pad edge strips in VMEM
    # (no full-tensor concatenates).
    h_c = h.astype(hp_ref.dtype).reshape(H, W, C)
    hp_ref[1:H + 1, 1:W + 1, :] = h_c
    hp_ref[0:1, 1:W + 1, :] = h_c[1:2, :, :]                 # top    <- row 1
    hp_ref[H + 1:H + 2, 1:W + 1, :] = h_c[H - 2:H - 1, :, :]  # bottom <- row H-2
    hp_ref[:, 0:1, :] = hp_ref[:, 2:3, :]                    # left   <- col 1
    hp_ref[:, W + 1:W + 2, :] = hp_ref[:, W - 1:W, :]        # right  <- col W-2

    # ---- conv2 -> InstanceNorm ----------------------------------------
    def hp_tap(dy, dx):
        return hp_ref[dy:dy + H, dx:dx + W, :].reshape(HW, C)

    h2 = instance_norm(conv3x3(hp_tap, w2_ref))

    # ---- residual add ---------------------------------------------------
    # The residual is the interior of the padded input (already in VMEM).
    res = xp_ref[1:H + 1, 1:W + 1, :].reshape(HW, C).astype(jnp.float32)
    o_ref[...] = (res + h2).astype(o_ref.dtype)


def resnet_block_apply_nhwc(x_nhwc, w1, b1, w2, b2, *,
                            compute_dtype=jnp.bfloat16, eps=1e-5):
    """NHWC ResnetBlock. x_nhwc: (N,H,W,C); w*: (3,3,C,C); b*: (C,).

    b1/b2 are accepted for PyTorch-interface parity but are mathematically
    dead: a per-channel constant bias is cancelled exactly by the following
    InstanceNorm(affine=False) mean subtraction, so they are not used.
    """
    del b1, b2
    N, H, W, C = x_nhwc.shape
    out_dtype = x_nhwc.dtype

    # Wrapper-side reflection pad (edge excluded) and weight pre-packing to
    # the tap-major (9C, C) layout.  The padded input doubles as the conv1
    # operand and the residual source.
    xp = jnp.pad(x_nhwc.astype(compute_dtype),
                 ((0, 0), (1, 1), (1, 1), (0, 0)), mode="reflect")
    w1p = w1.reshape(9 * C, C).astype(compute_dtype)
    w2p = w2.reshape(9 * C, C).astype(compute_dtype)

    kernel = functools.partial(_resnet_block_kernel, H=H, W=W, C=C, eps=eps)

    # VMEM budget: padded input + output (double-buffered), weights, the
    # compute-dtype padded-intermediate scratch, and f32 conv/IN temporaries.
    c_item = jnp.dtype(compute_dtype).itemsize
    o_item = jnp.dtype(out_dtype).itemsize
    pad_elems = (H + 2) * (W + 2) * C
    hw_elems = H * W * C
    est = (2 * pad_elems * c_item            # xp, double buffered
           + 2 * hw_elems * o_item           # out, double buffered
           + pad_elems * c_item              # hp scratch
           + 2 * 2 * 9 * C * C * c_item      # both weight blocks
           + 6 * hw_elems * 4)               # f32 accumulators / temporaries
    vmem_limit = int(min(128 * 1024 * 1024,
                         max(32 * 1024 * 1024, est * 3 // 2)))

    out_flat = pl.pallas_call(
        kernel,
        out_shape=jax.ShapeDtypeStruct((N, H * W, C), out_dtype),
        grid_spec=pltpu.PrefetchScalarGridSpec(
            num_scalar_prefetch=0,
            grid=(N,),
            in_specs=[
                pl.BlockSpec((pl.Squeezed(), H + 2, W + 2, C),
                             lambda n: (n, 0, 0, 0)),
                pl.BlockSpec((9 * C, C), lambda n: (0, 0)),
                pl.BlockSpec((9 * C, C), lambda n: (0, 0)),
            ],
            out_specs=pl.BlockSpec((pl.Squeezed(), H * W, C),
                                   lambda n: (n, 0, 0)),
            scratch_shapes=[pltpu.VMEM((H + 2, W + 2, C), compute_dtype)],
        ),
        compiler_params=pltpu.CompilerParams(
            dimension_semantics=("parallel",),
            vmem_limit_bytes=vmem_limit),
    )(xp, w1p, w2p)

    return out_flat.reshape(N, H, W, C)


def resnet_block_forward(x_nchw, w1, b1, w2, b2, *,
                         compute_dtype=jnp.bfloat16):
    """PyTorch-interface adapter: x_nchw (N,C,H,W) -> (N,C,H,W).

    In a full ResnetGenerator, keep activations in NHWC and chain
    resnet_block_apply_nhwc directly to avoid per-block transposes.
    """
    x_nhwc = jnp.transpose(x_nchw, (0, 2, 3, 1))
    out_nhwc = resnet_block_apply_nhwc(x_nhwc, w1, b1, w2, b2,
                                       compute_dtype=compute_dtype)
    return jnp.transpose(out_nhwc, (0, 3, 1, 2))


def _reference_forward(x_nchw, w1, b1, w2, b2, *,
                       compute_dtype=jnp.float32, eps=1e-5):
    """Pure-JAX NCHW reference modelling a generator chain that keeps
    activations in `compute_dtype` (matching the kernel): conv operands and
    the residual source are in compute_dtype; accumulation, bias and
    InstanceNorm statistics are f32."""
    x_c = x_nchw.astype(compute_dtype)

    def conv_in(x, w, b):
        w_oihw = jnp.transpose(w, (3, 2, 0, 1)).astype(compute_dtype)
        xp = jnp.pad(x, ((0, 0), (0, 0), (1, 1), (1, 1)), mode="reflect")
        y = lax.conv_general_dilated(
            xp, w_oihw, window_strides=(1, 1), padding="VALID",
            dimension_numbers=("NCHW", "OIHW", "NCHW"),
            preferred_element_type=jnp.float32)
        y = y + b.reshape(1, -1, 1, 1).astype(jnp.float32)
        mean = jnp.mean(y, axis=(2, 3), keepdims=True)
        var = jnp.mean((y - mean) ** 2, axis=(2, 3), keepdims=True)
        return (y - mean) * jax.lax.rsqrt(var + eps)

    h = jnp.maximum(conv_in(x_c, w1, b1), 0.0)
    h = conv_in(h.astype(compute_dtype), w2, b2)
    return x_c.astype(jnp.float32) + h


if __name__ == "__main__":
    N, C, H, W = 2, 8, 16, 16  # small test shape (dim = 8 channels)

    key = jax.random.PRNGKey(0)
    kx, kw1, kb1, kw2, kb2 = jax.random.split(key, 5)
    x = jax.random.normal(kx, (N, C, H, W), dtype=jnp.float32)
    # Conv2d(dim, dim, kernel_size=3, bias=True) weights stored as (3,3,Cin,Cout).
    w1 = jax.random.normal(kw1, (3, 3, C, C), dtype=jnp.float32) * 0.1
    b1 = jax.random.normal(kb1, (C,), dtype=jnp.float32) * 0.1
    w2 = jax.random.normal(kw2, (3, 3, C, C), dtype=jnp.float32) * 0.1
    b2 = jax.random.normal(kb2, (C,), dtype=jnp.float32) * 0.1

    # 1) Exact path: f32 matmul operands vs. the pure-JAX reference.
    #    (Kernel drops the bias since InstanceNorm cancels it; the reference
    #    keeps it -> differences are f32 rounding only.)
    out_f32 = jax.block_until_ready(
        resnet_block_forward(x, w1, b1, w2, b2, compute_dtype=jnp.float32))
    ref_f32 = jax.block_until_ready(
        _reference_forward(x, w1, b1, w2, b2, compute_dtype=jnp.float32))
    assert out_f32.shape == (N, C, H, W)
    assert jnp.allclose(out_f32, ref_f32, atol=1e-4, rtol=1e-4), \
        float(jnp.max(jnp.abs(out_f32 - ref_f32)))

    # 2) Default fast path: bf16 matmul operands / residual (f32 accumulation
    #    and statistics), checked against a reference with the same bf16
    #    activation chain.
    out_bf16 = jax.block_until_ready(
        resnet_block_forward(x, w1, b1, w2, b2, compute_dtype=jnp.bfloat16))
    ref_bf16 = jax.block_until_ready(
        _reference_forward(x, w1, b1, w2, b2, compute_dtype=jnp.bfloat16))
    assert out_bf16.shape == (N, C, H, W)
    assert jnp.allclose(out_bf16, ref_bf16, atol=1e-2, rtol=1e-2), \
        float(jnp.max(jnp.abs(out_bf16 - ref_bf16)))

    print("KERNEL_OK")
</pallas_src>

<mosaic_0001>
module attributes {stable_mosaic.version = 11 : i64} {
  func.func @_resnet_block_kernel(%arg0: i32, %arg1: memref<1x18x18x8xf32, #tpu.memory_space<vmem>>, %arg2: memref<72x8xf32, #tpu.memory_space<vmem>>, %arg3: memref<72x8xf32, #tpu.memory_space<vmem>>, %arg4: memref<1x256x8xf32, #tpu.memory_space<vmem>>, %arg5: memref<18x18x8xf32, #tpu.memory_space<vmem>>) attributes {dimension_semantics = [#tpu.dimension_semantics<parallel>], iteration_bounds = array<i64: 2>, scalar_prefetch = 0 : i64, scratch_operands = 1 : i64, tpu.core_type = #tpu.core_type<tc>, window_params = [{transform_indices = @transform_0, window_bounds = array<i64: 1, 18, 18, 8>}, {pipeline_mode = #tpu.pipeline_mode<synchronous>, transform_indices = @transform_1, window_bounds = array<i64: 72, 8>}, {pipeline_mode = #tpu.pipeline_mode<synchronous>, transform_indices = @transform_2, window_bounds = array<i64: 72, 8>}, {transform_indices = @transform_3, window_bounds = array<i64: 1, 256, 8>}]} {
    %c0 = arith.constant 0 : index
    %c0_0 = arith.constant 0 : index
    %c0_1 = arith.constant 0 : index
    %c0_2 = arith.constant 0 : index
    %0 = vector.load %arg1[%c0, %c0_0, %c0_1, %c0_2] : memref<1x18x18x8xf32, #tpu.memory_space<vmem>>, vector<1x16x16x8xf32>
    %1 = vector.shape_cast %0 : vector<1x16x16x8xf32> to vector<16x16x8xf32>
    %2 = vector.shape_cast %1 : vector<16x16x8xf32> to vector<256x8xf32>
    %c0_3 = arith.constant 0 : index
    %c0_4 = arith.constant 0 : index
    %3 = vector.load %arg2[%c0_3, %c0_4] : memref<72x8xf32, #tpu.memory_space<vmem>>, vector<8x8xf32>
    %cst = arith.constant dense<0.000000e+00> : vector<256x8xf32>
    %4 = tpu.matmul %2, %3, %cst {dimension_numbers = #tpu.dot_dimension_numbers<[1], [0], [0], [1], [0, 0, 1, 1], [], []>} : vector<256x8xf32>, vector<8x8xf32>, vector<256x8xf32> -> vector<256x8xf32>
    %c0_5 = arith.constant 0 : index
    %c0_6 = arith.constant 0 : index
    %c1 = arith.constant 1 : index
    %c0_7 = arith.constant 0 : index
    %5 = vector.load %arg1[%c0_5, %c0_6, %c1, %c0_7] : memref<1x18x18x8xf32, #tpu.memory_space<vmem>>, vector<1x16x16x8xf32>
    %6 = vector.shape_cast %5 : vector<1x16x16x8xf32> to vector<16x16x8xf32>
    %7 = vector.shape_cast %6 : vector<16x16x8xf32> to vector<256x8xf32>
    %c8 = arith.constant 8 : index
    %c0_8 = arith.constant 0 : index
    %8 = vector.load %arg2[%c8, %c0_8] : memref<72x8xf32, #tpu.memory_space<vmem>>, vector<8x8xf32>
    %cst_9 = arith.constant dense<0.000000e+00> : vector<256x8xf32>
    %9 = tpu.matmul %7, %8, %cst_9 {dimension_numbers = #tpu.dot_dimension_numbers<[1], [0], [0], [1], [0, 0, 1, 1], [], []>} : vector<256x8xf32>, vector<8x8xf32>, vector<256x8xf32> -> vector<256x8xf32>
    %10 = arith.addf %4, %9 : vector<256x8xf32>
    %c0_10 = arith.constant 0 : index
    %c0_11 = arith.constant 0 : index
    %c2 = arith.constant 2 : index
    %c0_12 = arith.constant 0 : index
    %11 = vector.load %arg1[%c0_10, %c0_11, %c2, %c0_12] : memref<1x18x18x8xf32, #tpu.memory_space<vmem>>, vector<1x16x16x8xf32>
    %12 = vector.shape_cast %11 : vector<1x16x16x8xf32> to vector<16x16x8xf32>
    %13 = vector.shape_cast %12 : vector<16x16x8xf32> to vector<256x8xf32>
    %c16 = arith.constant 16 : index
    %c0_13 = arith.constant 0 : index
    %14 = vector.load %arg2[%c16, %c0_13] : memref<72x8xf32, #tpu.memory_space<vmem>>, vector<8x8xf32>
    %cst_14 = arith.constant dense<0.000000e+00> : vector<256x8xf32>
    %15 = tpu.matmul %13, %14, %cst_14 {dimension_numbers = #tpu.dot_dimension_numbers<[1], [0], [0], [1], [0, 0, 1, 1], [], []>} : vector<256x8xf32>, vector<8x8xf32>, vector<256x8xf32> -> vector<256x8xf32>
    %16 = arith.addf %10, %15 : vector<256x8xf32>
    %c0_15 = arith.constant 0 : index
    %c1_16 = arith.constant 1 : index
    %c0_17 = arith.constant 0 : index
    %c0_18 = arith.constant 0 : index
    %17 = vector.load %arg1[%c0_15, %c1_16, %c0_17, %c0_18] : memref<1x18x18x8xf32, #tpu.memory_space<vmem>>, vector<1x16x16x8xf32>
    %18 = vector.shape_cast %17 : vector<1x16x16x8xf32> to vector<16x16x8xf32>
    %19 = vector.shape_cast %18 : vector<16x16x8xf32> to vector<256x8xf32>
    %c24 = arith.constant 24 : index
    %c0_19 = arith.constant 0 : index
    %20 = vector.load %arg2[%c24, %c0_19] : memref<72x8xf32, #tpu.memory_space<vmem>>, vector<8x8xf32>
    %cst_20 = arith.constant dense<0.000000e+00> : vector<256x8xf32>
    %21 = tpu.matmul %19, %20, %cst_20 {dimension_numbers = #tpu.dot_dimension_numbers<[1], [0], [0], [1], [0, 0, 1, 1], [], []>} : vector<256x8xf32>, vector<8x8xf32>, vector<256x8xf32> -> vector<256x8xf32>
    %22 = arith.addf %16, %21 : vector<256x8xf32>
    %c0_21 = arith.constant 0 : index
    %c1_22 = arith.constant 1 : index
    %c1_23 = arith.constant 1 : index
    %c0_24 = arith.constant 0 : index
    %23 = vector.load %arg1[%c0_21, %c1_22, %c1_23, %c0_24] : memref<1x18x18x8xf32, #tpu.memory_space<vmem>>, vector<1x16x16x8xf32>
    %24 = vector.shape_cast %23 : vector<1x16x16x8xf32> to vector<16x16x8xf32>
    %25 = vector.shape_cast %24 : vector<16x16x8xf32> to vector<256x8xf32>
    %c32 = arith.constant 32 : index
    %c0_25 = arith.constant 0 : index
    %26 = vector.load %arg2[%c32, %c0_25] : memref<72x8xf32, #tpu.memory_space<vmem>>, vector<8x8xf32>
    %cst_26 = arith.constant dense<0.000000e+00> : vector<256x8xf32>
    %27 = tpu.matmul %25, %26, %cst_26 {dimension_numbers = #tpu.dot_dimension_numbers<[1], [0], [0], [1], [0, 0, 1, 1], [], []>} : vector<256x8xf32>, vector<8x8xf32>, vector<256x8xf32> -> vector<256x8xf32>
    %28 = arith.addf %22, %27 : vector<256x8xf32>
    %c0_27 = arith.constant 0 : index
    %c1_28 = arith.constant 1 : index
    %c2_29 = arith.constant 2 : index
    %c0_30 = arith.constant 0 : index
    %29 = vector.load %arg1[%c0_27, %c1_28, %c2_29, %c0_30] : memref<1x18x18x8xf32, #tpu.memory_space<vmem>>, vector<1x16x16x8xf32>
    %30 = vector.shape_cast %29 : vector<1x16x16x8xf32> to vector<16x16x8xf32>
    %31 = vector.shape_cast %30 : vector<16x16x8xf32> to vector<256x8xf32>
    %c40 = arith.constant 40 : index
    %c0_31 = arith.constant 0 : index
    %32 = vector.load %arg2[%c40, %c0_31] : memref<72x8xf32, #tpu.memory_space<vmem>>, vector<8x8xf32>
    %cst_32 = arith.constant dense<0.000000e+00> : vector<256x8xf32>
    %33 = tpu.matmul %31, %32, %cst_32 {dimension_numbers = #tpu.dot_dimension_numbers<[1], [0], [0], [1], [0, 0, 1, 1], [], []>} : vector<256x8xf32>, vector<8x8xf32>, vector<256x8xf32> -> vector<256x8xf32>
    %34 = arith.addf %28, %33 : vector<256x8xf32>
    %c0_33 = arith.constant 0 : index
    %c2_34 = arith.constant 2 : index
    %c0_35 = arith.constant 0 : index
    %c0_36 = arith.constant 0 : index
    %35 = vector.load %arg1[%c0_33, %c2_34, %c0_35, %c0_36] : memref<1x18x18x8xf32, #tpu.memory_space<vmem>>, vector<1x16x16x8xf32>
    %36 = vector.shape_cast %35 : vector<1x16x16x8xf32> to vector<16x16x8xf32>
    %37 = vector.shape_cast %36 : vector<16x16x8xf32> to vector<256x8xf32>
    %c48 = arith.constant 48 : index
    %c0_37 = arith.constant 0 : index
    %38 = vector.load %arg2[%c48, %c0_37] : memref<72x8xf32, #tpu.memory_space<vmem>>, vector<8x8xf32>
    %cst_38 = arith.constant dense<0.000000e+00> : vector<256x8xf32>
    %39 = tpu.matmul %37, %38, %cst_38 {dimension_numbers = #tpu.dot_dimension_numbers<[1], [0], [0], [1], [0, 0, 1, 1], [], []>} : vector<256x8xf32>, vector<8x8xf32>, vector<256x8xf32> -> vector<256x8xf32>
    %40 = arith.addf %34, %39 : vector<256x8xf32>
    %c0_39 = arith.constant 0 : index
    %c2_40 = arith.constant 2 : index
    %c1_41 = arith.constant 1 : index
    %c0_42 = arith.constant 0 : index
    %41 = vector.load %arg1[%c0_39, %c2_40, %c1_41, %c0_42] : memref<1x18x18x8xf32, #tpu.memory_space<vmem>>, vector<1x16x16x8xf32>
    %42 = vector.shape_cast %41 : vector<1x16x16x8xf32> to vector<16x16x8xf32>
    %43 = vector.shape_cast %42 : vector<16x16x8xf32> to vector<256x8xf32>
    %c56 = arith.constant 56 : index
    %c0_43 = arith.constant 0 : index
    %44 = vector.load %arg2[%c56, %c0_43] : memref<72x8xf32, #tpu.memory_space<vmem>>, vector<8x8xf32>
    %cst_44 = arith.constant dense<0.000000e+00> : vector<256x8xf32>
    %45 = tpu.matmul %43, %44, %cst_44 {dimension_numbers = #tpu.dot_dimension_numbers<[1], [0], [0], [1], [0, 0, 1, 1], [], []>} : vector<256x8xf32>, vector<8x8xf32>, vector<256x8xf32> -> vector<256x8xf32>
    %46 = arith.addf %40, %45 : vector<256x8xf32>
    %c0_45 = arith.constant 0 : index
    %c2_46 = arith.constant 2 : index
    %c2_47 = arith.constant 2 : index
    %c0_48 = arith.constant 0 : index
    %47 = vector.load %arg1[%c0_45, %c2_46, %c2_47, %c0_48] : memref<1x18x18x8xf32, #tpu.memory_space<vmem>>, vector<1x16x16x8xf32>
    %48 = vector.shape_cast %47 : vector<1x16x16x8xf32> to vector<16x16x8xf32>
    %49 = vector.shape_cast %48 : vector<16x16x8xf32> to vector<256x8xf32>
    %c64 = arith.constant 64 : index
    %c0_49 = arith.constant 0 : index
    %50 = vector.load %arg2[%c64, %c0_49] : memref<72x8xf32, #tpu.memory_space<vmem>>, vector<8x8xf32>
    %cst_50 = arith.constant dense<0.000000e+00> : vector<256x8xf32>
    %51 = tpu.matmul %49, %50, %cst_50 {dimension_numbers = #tpu.dot_dimension_numbers<[1], [0], [0], [1], [0, 0, 1, 1], [], []>} : vector<256x8xf32>, vector<8x8xf32>, vector<256x8xf32> -> vector<256x8xf32>
    %52 = arith.addf %46, %51 : vector<256x8xf32>
    %cst_51 = arith.constant dense<0.000000e+00> : vector<8xf32>
    %53 = vector.multi_reduction <add>, %52, %cst_51 [0] : vector<256x8xf32> to vector<8xf32>
    %54 = vector.shape_cast %53 : vector<8xf32> to vector<1x8xf32>
    %cst_52 = arith.constant 2.560000e+02 : f32
    %55 = vector.broadcast %cst_52 : f32 to vector<1x8xf32>
    %56 = arith.divf %54, %55 : vector<1x8xf32>
    %57 = vector.broadcast %56 : vector<1x8xf32> to vector<256x8xf32>
    %58 = arith.subf %52, %57 : vector<256x8xf32>
    %59 = arith.mulf %58, %58 : vector<256x8xf32>
    %cst_53 = arith.constant dense<0.000000e+00> : vector<8xf32>
    %60 = vector.multi_reduction <add>, %59, %cst_53 [0] : vector<256x8xf32> to vector<8xf32>
    %61 = vector.shape_cast %60 : vector<8xf32> to vector<1x8xf32>
    %cst_54 = arith.constant 2.560000e+02 : f32
    %62 = vector.broadcast %cst_54 : f32 to vector<1x8xf32>
    %63 = arith.divf %61, %62 : vector<1x8xf32>
    %cst_55 = arith.constant 9.99999974E-6 : f32
    %64 = vector.broadcast %cst_55 : f32 to vector<1x8xf32>
    %65 = arith.addf %63, %64 : vector<1x8xf32>
    %66 = math.rsqrt %65 : vector<1x8xf32>
    %67 = vector.broadcast %66 : vector<1x8xf32> to vector<256x8xf32>
    %68 = arith.mulf %58, %67 : vector<256x8xf32>
    %cst_56 = arith.constant 0.000000e+00 : f32
    %69 = vector.broadcast %cst_56 : f32 to vector<256x8xf32>
    %70 = arith.maximumf %68, %69 : vector<256x8xf32>
    %71 = vector.shape_cast %70 : vector<256x8xf32> to vector<16x16x8xf32>
    %c1_57 = arith.constant 1 : index
    %c1_58 = arith.constant 1 : index
    %c0_59 = arith.constant 0 : index
    %72 = vector.load %arg5[%c1_57, %c1_58, %c0_59] : memref<18x18x8xf32, #tpu.memory_space<vmem>>, vector<16x16x8xf32>
    tpu.vector_store %arg5[%c1_57, %c1_58, %c0_59], %71 {strides = array<i32>} : memref<18x18x8xf32, #tpu.memory_space<vmem>>, vector<16x16x8xf32>,
    %73 = vector.extract_strided_slice %71 {offsets = [1, 0, 0], sizes = [1, 16, 8], strides = [1, 1, 1]} : vector<16x16x8xf32> to vector<1x16x8xf32>
    %c0_60 = arith.constant 0 : index
    %c1_61 = arith.constant 1 : index
    %c0_62 = arith.constant 0 : index
    %74 = vector.load %arg5[%c0_60, %c1_61, %c0_62] : memref<18x18x8xf32, #tpu.memory_space<vmem>>, vector<1x16x8xf32>
    tpu.vector_store %arg5[%c0_60, %c1_61, %c0_62], %73 {strides = array<i32>} : memref<18x18x8xf32, #tpu.memory_space<vmem>>, vector<1x16x8xf32>,
    %75 = vector.extract_strided_slice %71 {offsets = [14, 0, 0], sizes = [1, 16, 8], strides = [1, 1, 1]} : vector<16x16x8xf32> to vector<1x16x8xf32>
    %c17 = arith.constant 17 : index
    %c1_63 = arith.constant 1 : index
    %c0_64 = arith.constant 0 : index
    %76 = vector.load %arg5[%c17, %c1_63, %c0_64] : memref<18x18x8xf32, #tpu.memory_space<vmem>>, vector<1x16x8xf32>
    tpu.vector_store %arg5[%c17, %c1_63, %c0_64], %75 {strides = array<i32>} : memref<18x18x8xf32, #tpu.memory_space<vmem>>, vector<1x16x8xf32>,
    %c0_65 = arith.constant 0 : index
    %c2_66 = arith.constant 2 : index
    %c0_67 = arith.constant 0 : index
    %77 = vector.load %arg5[%c0_65, %c2_66, %c0_67] : memref<18x18x8xf32, #tpu.memory_space<vmem>>, vector<18x1x8xf32>
    %c0_68 = arith.constant 0 : index
    %c0_69 = arith.constant 0 : index
    %c0_70 = arith.constant 0 : index
    %78 = vector.load %arg5[%c0_68, %c0_69, %c0_70] : memref<18x18x8xf32, #tpu.memory_space<vmem>>, vector<18x1x8xf32>
    tpu.vector_store %arg5[%c0_68, %c0_69, %c0_70], %77 {strides = array<i32>} : memref<18x18x8xf32, #tpu.memory_space<vmem>>, vector<18x1x8xf32>,
    %c0_71 = arith.constant 0 : index
    %c15 = arith.constant 15 : index
    %c0_72 = arith.constant 0 : index
    %79 = vector.load %arg5[%c0_71, %c15, %c0_72] : memref<18x18x8xf32, #tpu.memory_space<vmem>>, vector<18x1x8xf32>
    %c0_73 = arith.constant 0 : index
    %c17_74 = arith.constant 17 : index
    %c0_75 = arith.constant 0 : index
    %80 = vector.load %arg5[%c0_73, %c17_74, %c0_75] : memref<18x18x8xf32, #tpu.memory_space<vmem>>, vector<18x1x8xf32>
    tpu.vector_store %arg5[%c0_73, %c17_74, %c0_75], %79 {strides = array<i32>} : memref<18x18x8xf32, #tpu.memory_space<vmem>>, vector<18x1x8xf32>,
    %c0_76 = arith.constant 0 : index
    %c0_77 = arith.constant 0 : index
    %c0_78 = arith.constant 0 : index
    %81 = vector.load %arg5[%c0_76, %c0_77, %c0_78] : memref<18x18x8xf32, #tpu.memory_space<vmem>>, vector<16x16x8xf32>
    %82 = vector.shape_cast %81 : vector<16x16x8xf32> to vector<256x8xf32>
    %c0_79 = arith.constant 0 : index
    %c0_80 = arith.constant 0 : index
    %83 = vector.load %arg3[%c0_79, %c0_80] : memref<72x8xf32, #tpu.memory_space<vmem>>, vector<8x8xf32>
    %cst_81 = arith.constant dense<0.000000e+00> : vector<256x8xf32>
    %84 = tpu.matmul %82, %83, %cst_81 {dimension_numbers = #tpu.dot_dimension_numbers<[1], [0], [0], [1], [0, 0, 1, 1], [], []>} : vector<256x8xf32>, vector<8x8xf32>, vector<256x8xf32> -> vector<256x8xf32>
    %c0_82 = arith.constant 0 : index
    %c1_83 = arith.constant 1 : index
    %c0_84 = arith.constant 0 : index
    %85 = vector.load %arg5[%c0_82, %c1_83, %c0_84] : memref<18x18x8xf32, #tpu.memory_space<vmem>>, vector<16x16x8xf32>
    %86 = vector.shape_cast %85 : vector<16x16x8xf32> to vector<256x8xf32>
    %c8_85 = arith.constant 8 : index
    %c0_86 = arith.constant 0 : index
    %87 = vector.load %arg3[%c8_85, %c0_86] : memref<72x8xf32, #tpu.memory_space<vmem>>, vector<8x8xf32>
    %cst_87 = arith.constant dense<0.000000e+00> : vector<256x8xf32>
    %88 = tpu.matmul %86, %87, %cst_87 {dimension_numbers = #tpu.dot_dimension_numbers<[1], [0], [0], [1], [0, 0, 1, 1], [], []>} : vector<256x8xf32>, vector<8x8xf32>, vector<256x8xf32> -> vector<256x8xf32>
    %89 = arith.addf %84, %88 : vector<256x8xf32>
    %c0_88 = arith.constant 0 : index
    %c2_89 = arith.constant 2 : index
    %c0_90 = arith.constant 0 : index
    %90 = vector.load %arg5[%c0_88, %c2_89, %c0_90] : memref<18x18x8xf32, #tpu.memory_space<vmem>>, vector<16x16x8xf32>
    %91 = vector.shape_cast %90 : vector<16x16x8xf32> to vector<256x8xf32>
    %c16_91 = arith.constant 16 : index
    %c0_92 = arith.constant 0 : index
    %92 = vector.load %arg3[%c16_91, %c0_92] : memref<72x8xf32, #tpu.memory_space<vmem>>, vector<8x8xf32>
    %cst_93 = arith.constant dense<0.000000e+00> : vector<256x8xf32>
    %93 = tpu.matmul %91, %92, %cst_93 {dimension_numbers = #tpu.dot_dimension_numbers<[1], [0], [0], [1], [0, 0, 1, 1], [], []>} : vector<256x8xf32>, vector<8x8xf32>, vector<256x8xf32> -> vector<256x8xf32>
    %94 = arith.addf %89, %93 : vector<256x8xf32>
    %c1_94 = arith.constant 1 : index
    %c0_95 = arith.constant 0 : index
    %c0_96 = arith.constant 0 : index
    %95 = vector.load %arg5[%c1_94, %c0_95, %c0_96] : memref<18x18x8xf32, #tpu.memory_space<vmem>>, vector<16x16x8xf32>
    %96 = vector.shape_cast %95 : vector<16x16x8xf32> to vector<256x8xf32>
    %c24_97 = arith.constant 24 : index
    %c0_98 = arith.constant 0 : index
    %97 = vector.load %arg3[%c24_97, %c0_98] : memref<72x8xf32, #tpu.memory_space<vmem>>, vector<8x8xf32>
    %cst_99 = arith.constant dense<0.000000e+00> : vector<256x8xf32>
    %98 = tpu.matmul %96, %97, %cst_99 {dimension_numbers = #tpu.dot_dimension_numbers<[1], [0], [0], [1], [0, 0, 1, 1], [], []>} : vector<256x8xf32>, vector<8x8xf32>, vector<256x8xf32> -> vector<256x8xf32>
    %99 = arith.addf %94, %98 : vector<256x8xf32>
    %c1_100 = arith.constant 1 : index
    %c1_101 = arith.constant 1 : index
    %c0_102 = arith.constant 0 : index
    %100 = vector.load %arg5[%c1_100, %c1_101, %c0_102] : memref<18x18x8xf32, #tpu.memory_space<vmem>>, vector<16x16x8xf32>
    %101 = vector.shape_cast %100 : vector<16x16x8xf32> to vector<256x8xf32>
    %c32_103 = arith.constant 32 : index
    %c0_104 = arith.constant 0 : index
    %102 = vector.load %arg3[%c32_103, %c0_104] : memref<72x8xf32, #tpu.memory_space<vmem>>, vector<8x8xf32>
    %cst_105 = arith.constant dense<0.000000e+00> : vector<256x8xf32>
    %103 = tpu.matmul %101, %102, %cst_105 {dimension_numbers = #tpu.dot_dimension_numbers<[1], [0], [0], [1], [0, 0, 1, 1], [], []>} : vector<256x8xf32>, vector<8x8xf32>, vector<256x8xf32> -> vector<256x8xf32>
    %104 = arith.addf %99, %103 : vector<256x8xf32>
    %c1_106 = arith.constant 1 : index
    %c2_107 = arith.constant 2 : index
    %c0_108 = arith.constant 0 : index
    %105 = vector.load %arg5[%c1_106, %c2_107, %c0_108] : memref<18x18x8xf32, #tpu.memory_space<vmem>>, vector<16x16x8xf32>
    %106 = vector.shape_cast %105 : vector<16x16x8xf32> to vector<256x8xf32>
    %c40_109 = arith.constant 40 : index
    %c0_110 = arith.constant 0 : index
    %107 = vector.load %arg3[%c40_109, %c0_110] : memref<72x8xf32, #tpu.memory_space<vmem>>, vector<8x8xf32>
    %cst_111 = arith.constant dense<0.000000e+00> : vector<256x8xf32>
    %108 = tpu.matmul %106, %107, %cst_111 {dimension_numbers = #tpu.dot_dimension_numbers<[1], [0], [0], [1], [0, 0, 1, 1], [], []>} : vector<256x8xf32>, vector<8x8xf32>, vector<256x8xf32> -> vector<256x8xf32>
    %109 = arith.addf %104, %108 : vector<256x8xf32>
    %c2_112 = arith.constant 2 : index
    %c0_113 = arith.constant 0 : index
    %c0_114 = arith.constant 0 : index
    %110 = vector.load %arg5[%c2_112, %c0_113, %c0_114] : memref<18x18x8xf32, #tpu.memory_space<vmem>>, vector<16x16x8xf32>
    %111 = vector.shape_cast %110 : vector<16x16x8xf32> to vector<256x8xf32>
    %c48_115 = arith.constant 48 : index
    %c0_116 = arith.constant 0 : index
    %112 = vector.load %arg3[%c48_115, %c0_116] : memref<72x8xf32, #tpu.memory_space<vmem>>, vector<8x8xf32>
    %cst_117 = arith.constant dense<0.000000e+00> : vector<256x8xf32>
    %113 = tpu.matmul %111, %112, %cst_117 {dimension_numbers = #tpu.dot_dimension_numbers<[1], [0], [0], [1], [0, 0, 1, 1], [], []>} : vector<256x8xf32>, vector<8x8xf32>, vector<256x8xf32> -> vector<256x8xf32>
    %114 = arith.addf %109, %113 : vector<256x8xf32>
    %c2_118 = arith.constant 2 : index
    %c1_119 = arith.constant 1 : index
    %c0_120 = arith.constant 0 : index
    %115 = vector.load %arg5[%c2_118, %c1_119, %c0_120] : memref<18x18x8xf32, #tpu.memory_space<vmem>>, vector<16x16x8xf32>
    %116 = vector.shape_cast %115 : vector<16x16x8xf32> to vector<256x8xf32>
    %c56_121 = arith.constant 56 : index
    %c0_122 = arith.constant 0 : index
    %117 = vector.load %arg3[%c56_121, %c0_122] : memref<72x8xf32, #tpu.memory_space<vmem>>, vector<8x8xf32>
    %cst_123 = arith.constant dense<0.000000e+00> : vector<256x8xf32>
    %118 = tpu.matmul %116, %117, %cst_123 {dimension_numbers = #tpu.dot_dimension_numbers<[1], [0], [0], [1], [0, 0, 1, 1], [], []>} : vector<256x8xf32>, vector<8x8xf32>, vector<256x8xf32> -> vector<256x8xf32>
    %119 = arith.addf %114, %118 : vector<256x8xf32>
    %c2_124 = arith.constant 2 : index
    %c2_125 = arith.constant 2 : index
    %c0_126 = arith.constant 0 : index
    %120 = vector.load %arg5[%c2_124, %c2_125, %c0_126] : memref<18x18x8xf32, #tpu.memory_space<vmem>>, vector<16x16x8xf32>
    %121 = vector.shape_cast %120 : vector<16x16x8xf32> to vector<256x8xf32>
    %c64_127 = arith.constant 64 : index
    %c0_128 = arith.constant 0 : index
    %122 = vector.load %arg3[%c64_127, %c0_128] : memref<72x8xf32, #tpu.memory_space<vmem>>, vector<8x8xf32>
    %cst_129 = arith.constant dense<0.000000e+00> : vector<256x8xf32>
    %123 = tpu.matmul %121, %122, %cst_129 {dimension_numbers = #tpu.dot_dimension_numbers<[1], [0], [0], [1], [0, 0, 1, 1], [], []>} : vector<256x8xf32>, vector<8x8xf32>, vector<256x8xf32> -> vector<256x8xf32>
    %124 = arith.addf %119, %123 : vector<256x8xf32>
    %cst_130 = arith.constant dense<0.000000e+00> : vector<8xf32>
    %125 = vector.multi_reduction <add>, %124, %cst_130 [0] : vector<256x8xf32> to vector<8xf32>
    %126 = vector.shape_cast %125 : vector<8xf32> to vector<1x8xf32>
    %cst_131 = arith.constant 2.560000e+02 : f32
    %127 = vector.broadcast %cst_131 : f32 to vector<1x8xf32>
    %128 = arith.divf %126, %127 : vector<1x8xf32>
    %129 = vector.broadcast %128 : vector<1x8xf32> to vector<256x8xf32>
    %130 = arith.subf %124, %129 : vector<256x8xf32>
    %131 = arith.mulf %130, %130 : vector<256x8xf32>
    %cst_132 = arith.constant dense<0.000000e+00> : vector<8xf32>
    %132 = vector.multi_reduction <add>, %131, %cst_132 [0] : vector<256x8xf32> to vector<8xf32>
    %133 = vector.shape_cast %132 : vector<8xf32> to vector<1x8xf32>
    %cst_133 = arith.constant 2.560000e+02 : f32
    %134 = vector.broadcast %cst_133 : f32 to vector<1x8xf32>
    %135 = arith.divf %133, %134 : vector<1x8xf32>
    %cst_134 = arith.constant 9.99999974E-6 : f32
    %136 = vector.broadcast %cst_134 : f32 to vector<1x8xf32>
    %137 = arith.addf %135, %136 : vector<1x8xf32>
    %138 = math.rsqrt %137 : vector<1x8xf32>
    %139 = vector.broadcast %138 : vector<1x8xf32> to vector<256x8xf32>
    %140 = arith.mulf %130, %139 : vector<256x8xf32>
    %c0_135 = arith.constant 0 : index
    %c1_136 = arith.constant 1 : index
    %c1_137 = arith.constant 1 : index
    %c0_138 = arith.constant 0 : index
    %141 = vector.load %arg1[%c0_135, %c1_136, %c1_137, %c0_138] : memref<1x18x18x8xf32, #tpu.memory_space<vmem>>, vector<1x16x16x8xf32>
    %142 = vector.shape_cast %141 : vector<1x16x16x8xf32> to vector<16x16x8xf32>
    %143 = vector.shape_cast %142 : vector<16x16x8xf32> to vector<256x8xf32>
    %144 = arith.addf %143, %140 : vector<256x8xf32>
    %c0_139 = arith.constant 0 : index
    %c0_140 = arith.constant 0 : index
    %c0_141 = arith.constant 0 : index
    %145 = vector.load %arg4[%c0_139, %c0_140, %c0_141] : memref<1x256x8xf32, #tpu.memory_space<vmem>>, vector<1x256x8xf32>
    %146 = vector.shape_cast %145 : vector<1x256x8xf32> to vector<256x8xf32>
    %147 = vector.shape_cast %144 : vector<256x8xf32> to vector<1x256x8xf32>
    tpu.vector_store %arg4[%c0_139, %c0_140, %c0_141], %147 {strides = array<i32>} : memref<1x256x8xf32, #tpu.memory_space<vmem>>, vector<1x256x8xf32>,
    return
  }
  func.func @transform_0(%arg0: i32) -> (i32, i32, i32, i32) {
    %c0_i32 = arith.constant 0 : i32
    %c0_i32_0 = arith.constant 0 : i32
    %c0_i32_1 = arith.constant 0 : i32
    %c0_i32_2 = arith.constant 0 : i32
    return %arg0, %c0_i32, %c0_i32_0, %c0_i32_1 : i32, i32, i32, i32
  }
  func.func @transform_1(%arg0: i32) -> (i32, i32) {
    %c0_i32 = arith.constant 0 : i32
    %c0_i32_0 = arith.constant 0 : i32
    %c0_i32_1 = arith.constant 0 : i32
    return %c0_i32, %c0_i32_0 : i32, i32
  }
  func.func @transform_2(%arg0: i32) -> (i32, i32) {
    %c0_i32 = arith.constant 0 : i32
    %c0_i32_0 = arith.constant 0 : i32
    %c0_i32_1 = arith.constant 0 : i32
    return %c0_i32, %c0_i32_0 : i32, i32
  }
  func.func @transform_3(%arg0: i32) -> (i32, i32, i32) {
    %c0_i32 = arith.constant 0 : i32
    %c0_i32_0 = arith.constant 0 : i32
    %c0_i32_1 = arith.constant 0 : i32
    return %arg0, %c0_i32, %c0_i32_0 : i32, i32, i32
  }
}

</mosaic_0001>

<llo_original>
// kernel: tpu_custom_call.1
$region0: #{tpu_custom_call.1}
  #allocation0 [shape = 'u32[]', space=smem, size = 0x4, offset = 0x4, fixed_abs, tag = 'smem constant byte address 0x4 - core index']
  #allocation1 [shape = 'u32[72,128]{1,0:T(1,128)}', space=vmem, size = 0x9000, scoped, tag = 'internal scratch']
  #allocation2 [shape = 'f32[18,18,8]{2,1,0:T(8,128)}', space=vmem, size = 0x36000, scoped, tag = 'scratch operand']
  %s0 = inlined_call_operand.vmem [shape: f32[2,18,18,8], index: 0, kind: input, shape index: {}]
  %s1 = inlined_call_operand.vmem [shape: f32[72,8], index: 1, kind: input, shape index: {}]
  %s2 = inlined_call_operand.vmem [shape: f32[72,8], index: 2, kind: input, shape index: {}]
  %s3 = inlined_call_operand.vmem [shape: f32[2,256,8], index: 3, kind: output, shape index: {}]
  %s4 = sld [smem:[#allocation0]]
  $region45: #{tpu_custom_call.1} parent=0
    _
  %s6 = ssub.s32 1, %s4
  %s7 = scalar_select 0, %s6, %s4
  loop: start=0, step=1, limit=4
  $region2: #{tpu_custom_call.1} parent=0 // loop_pre_header
    _
  $region3: #{tpu_custom_call.1} parent=0 // loop_header
    %s9 = sphi 0, %s13
    %p10 = scmp.ge.s32.totalorder %s9, 4
    %s19 = sphi 0, %s21
    %s22 = sphi 0, %s19
    %s23 = sphi 0, %s22
    %s39 = sphi 0, %s23
    %s43 = sphi 0, %s43
    %s45 = sphi 0, %s43
    %s46 = sphi 0, %s45
    %s60 = sphi 0, %s46
    %s64 = sphi 0, %s64
    %s66 = sphi 0, %s64
    %s67 = sphi 0, %s66
    %s81 = sphi 0, %s67
    %s87 = sphi 0, %s89
    %s90 = sphi 0, %s87
    %s91 = sphi 0, %s90
    %s107 = sphi 0, %s91
  $region4: #{tpu_custom_call.1} parent=0 // loop_header_branch
    %12 = sbr.rel (%p10) target = $region8
  $region5: #{tpu_custom_call.1} parent=0 // loop_body
    %s14 = ssub.s32 %s9, 1
    %s15 = ssub.s32 %s9, 2
    %s16 = sadd.s32 %s9, 1
    %s17 = ssub.s32 %s9, %s16
    %p18 = scmp.eq.s32.totalorder %s17, 0
    %s20 = sadd.s32 %s19, 1
    %s21 = scalar_select %p18, %s19, %s20
    %p24 = pneg %p18
    %p25 = scmp.eq.s32.totalorder %s9, 1
    %p26 = por %p24, %p25
    %p27 = scmp.ne.s32.totalorder %s19, %s22
    %p28 = scmp.eq.s32.totalorder %s9, 0
    %p29 = por %p27, %p28
    %p30 = scmp.ne.s32.totalorder %s19, %s22
    %p31 = scmp.eq.s32.totalorder %s14, 1
    %p32 = por %p30, %p31
    %p33 = scmp.ne.s32.totalorder %s22, %s23
    %p34 = scmp.eq.s32.totalorder %s14, 0
    %p35 = por %p33, %p34
    %p36 = scmp.ne.s32.totalorder %s22, %s23
    %p37 = scmp.eq.s32.totalorder %s15, 1
    %p38 = por %p36, %p37
    %p40 = scmp.ne.s32.totalorder %s23, %s39
    %p41 = scmp.eq.s32.totalorder %s15, 0
    %p42 = por %p40, %p41
    %s44 = sadd.s32 %s43, 1
    %p47 = scmp.eq.s32.totalorder %s9, 1
    %p48 = scmp.ne.s32.totalorder %s43, %s45
    %p49 = scmp.eq.s32.totalorder %s9, 0
    %p50 = por %p48, %p49
    %p51 = scmp.ne.s32.totalorder %s43, %s45
    %p52 = scmp.eq.s32.totalorder %s14, 1
    %p53 = por %p51, %p52
    %p54 = scmp.ne.s32.totalorder %s45, %s46
    %p55 = scmp.eq.s32.totalorder %s14, 0
    %p56 = por %p54, %p55
    %p57 = scmp.ne.s32.totalorder %s45, %s46
    %p58 = scmp.eq.s32.totalorder %s15, 1
    %p59 = por %p57, %p58
    %p61 = scmp.ne.s32.totalorder %s46, %s60
    %p62 = scmp.eq.s32.totalorder %s15, 0
    %p63 = por %p61, %p62
    %s65 = sadd.s32 %s64, 1
    %p68 = scmp.eq.s32.totalorder %s9, 1
    %p69 = scmp.ne.s32.totalorder %s64, %s66
    %p70 = scmp.eq.s32.totalorder %s9, 0
    %p71 = por %p69, %p70
    %p72 = scmp.ne.s32.totalorder %s64, %s66
    %p73 = scmp.eq.s32.totalorder %s14, 1
    %p74 = por %p72, %p73
    %p75 = scmp.ne.s32.totalorder %s66, %s67
    %p76 = scmp.eq.s32.totalorder %s14, 0
    %p77 = por %p75, %p76
    %p78 = scmp.ne.s32.totalorder %s66, %s67
    %p79 = scmp.eq.s32.totalorder %s15, 1
    %p80 = por %p78, %p79
    %p82 = scmp.ne.s32.totalorder %s67, %s81
    %p83 = scmp.eq.s32.totalorder %s15, 0
    %p84 = por %p82, %p83
    %s85 = ssub.s32 %s9, %s16
    %p86 = scmp.eq.s32.totalorder %s85, 0
    %s88 = sadd.s32 %s87, 1
    %s89 = scalar_select %p86, %s87, %s88
    %p92 = pneg %p86
    %p93 = scmp.eq.s32.totalorder %s9, 1
    %p94 = por %p92, %p93
    %p95 = scmp.ne.s32.totalorder %s87, %s90
    %p96 = scmp.eq.s32.totalorder %s9, 0
    %p97 = por %p95, %p96
    %p98 = scmp.ne.s32.totalorder %s87, %s90
    %p99 = scmp.eq.s32.totalorder %s14, 1
    %p100 = por %p98, %p99
    %p101 = scmp.ne.s32.totalorder %s90, %s91
    %p102 = scmp.eq.s32.totalorder %s14, 0
    %p103 = por %p101, %p102
    %p104 = scmp.ne.s32.totalorder %s90, %s91
    %p105 = scmp.eq.s32.totalorder %s15, 1
    %p106 = por %p104, %p105
    %p108 = scmp.ne.s32.totalorder %s91, %s107
    %p109 = scmp.eq.s32.totalorder %s15, 0
    %p110 = por %p108, %p109
    %p111 = scmp.le.s32.totalorder 1, %s9
    %p112 = scmp.lt.s32.totalorder %s9, 3
    %p113 = pnand %p111, %p112
    %p114 = pneg %p113
    // Predicated region
    $region9: #{tpu_custom_call.1} parent=5 // pred_check
      _
    $region10: #{tpu_custom_call.1} parent=5 // pred_check_branch
      %116 = sbr.rel (%p113) target = $region12
    $region11: #{tpu_custom_call.1} parent=5 // pred_region
      %s117 = ssub.s32 %s9, 1
      // Predicated region
      $region13: #{tpu_custom_call.1} parent=11 // pred_check
        %p118 = pneg %p56
      $region14: #{tpu_custom_call.1} parent=11 // pred_check_branch
        %120 = sbr.rel (%p118) target = $region16
      $region15: #{tpu_custom_call.1} parent=11 // pred_region
        _
      $region16: #{tpu_custom_call.1} parent=11 // pred_fallthru
        _
      // Predicated region
      $region17: #{tpu_custom_call.1} parent=11 // pred_check
        %p121 = pneg %p77
      $region18: #{tpu_custom_call.1} parent=11 // pred_check_branch
        %123 = sbr.rel (%p121) target = $region20
      $region19: #{tpu_custom_call.1} parent=11 // pred_region
        _
      $region20: #{tpu_custom_call.1} parent=11 // pred_fallthru
        _
    $region12: #{tpu_custom_call.1} parent=5 // pred_fallthru
      _
    %p124 = scmp.lt.s32.totalorder %s9, 2
    // Predicated region
    $region21: #{tpu_custom_call.1} parent=5 // pred_check
      %p125 = pneg %p124
    $region22: #{tpu_custom_call.1} parent=5 // pred_check_branch
      %127 = sbr.rel (%p125) target = $region24
    $region23: #{tpu_custom_call.1} parent=5 // pred_region
      // Predicated region
      $region25: #{tpu_custom_call.1} parent=23 // pred_check
        %p128 = pneg %p29
      $region26: #{tpu_custom_call.1} parent=23 // pred_check_branch
        %130 = sbr.rel (%p128) target = $region28
      $region27: #{tpu_custom_call.1} parent=23 // pred_region
        %p131 = scmp.lt.s32.totalorder %s9, 1
        %s132 = scalar_select %p131, %s9, 1
        %s133 = smul.addr %s132, 54
        %s134 = smul.addr %s133, 8
        %s135 = scalar_lea.vmem %s0, %s134
      $region28: #{tpu_custom_call.1} parent=23 // pred_fallthru
        _
    $region24: #{tpu_custom_call.1} parent=5 // pred_fallthru
      _
    %p136 = scmp.le.s32.totalorder 1, %s9
    %p137 = scmp.lt.s32.totalorder %s9, 3
    %p138 = pnand %p136, %p137
    %p139 = pneg %p138
    // Predicated region
    $region29: #{tpu_custom_call.1} parent=5 // pred_check
      _
    $region30: #{tpu_custom_call.1} parent=5 // pred_check_branch
      %141 = sbr.rel (%p138) target = $region32
    $region31: #{tpu_custom_call.1} parent=5 // pred_region
      %s142 = ssub.s32 %s9, 1
      %p143 = scmp.lt.s32.totalorder %s14, 1
      %s144 = scalar_select %p143, %s14, 1
      %s145 = smul.addr %s144, 54
      %s146 = smul.addr %s145, 8
      %s147 = scalar_lea.vmem %s0, %s146
      %p148 = pneg %p35
      %p149 = pneg %p32
      %p150 = pneg %p56
      %p151 = pneg %p53
      %p152 = pneg %p77
      %p153 = pneg %p74
      %p154 = pneg %p103
      %p155 = pneg %p100
      %p156 = scmp.lt.s32.totalorder %s14, 1
      %s157 = scalar_select %p156, %s14, 1
      %s158 = smul.addr %s157, 32
      %s159 = smul.addr %s158, 8
      %s160 = scalar_lea.vmem %s3, %s159
      %p161 = scmp.lt.s32.totalorder %s14, 1
      %s162 = scalar_select %p161, %s14, 1
      %s163 = smul.addr %s162, 54
      %s164 = smul.addr %s163, 8
      %s165 = scalar_lea.vmem %s0, %s164
      %p166 = scmp.lt.s32.totalorder %s14, 1
      %s167 = scalar_select %p166, %s14, 1
      %s168 = smul.addr %s167, 32
      %s169 = smul.addr %s168, 8
      %s170 = scalar_lea.vmem %s3, %s169
      %v171 = vld [vmem:[%s165] sm:$0xff]
      %v172 = vld [vmem:[%s165 + $0x8] sm:$0xff]
      %v173 = vld [vmem:[%s165 + $0x18] sm:$0xff]
      %v174 = vld [vmem:[%s165 + $0x20] sm:$0xff]
      %v175 = vld [vmem:[%s165 + $0x30] sm:$0xff]
      %v176 = vld [vmem:[%s165 + $0x38] sm:$0xff]
      %v177 = vld [vmem:[%s165 + $0x48] sm:$0xff]
      %v178 = vld [vmem:[%s165 + $0x50] sm:$0xff]
      %v179 = vld [vmem:[%s165 + $0x60] sm:$0xff]
      %v180 = vld [vmem:[%s165 + $0x68] sm:$0xff]
      %v181 = vld [vmem:[%s165 + $0x78] sm:$0xff]
      %v182 = vld [vmem:[%s165 + $0x80] sm:$0xff]
      %v183 = vld [vmem:[%s165 + $0x90] sm:$0xff]
      %v184 = vld [vmem:[%s165 + $0x98] sm:$0xff]
      %v185 = vld [vmem:[%s165 + $0xa8] sm:$0xff]
      %v186 = vld [vmem:[%s165 + $0xb0] sm:$0xff]
      %v187 = vld [vmem:[%s165 + $0xc0] sm:$0xff]
      %v188 = vld [vmem:[%s165 + $0xc8] sm:$0xff]
      %v189 = vld [vmem:[%s165 + $0xd8] sm:$0xff]
      %v190 = vld [vmem:[%s165 + $0xe0] sm:$0xff]
      %v191 = vld [vmem:[%s165 + $0xf0] sm:$0xff]
      %v192 = vld [vmem:[%s165 + $0xf8] sm:$0xff]
      %v193 = vld [vmem:[%s165 + $0x108] sm:$0xff]
      %v194 = vld [vmem:[%s165 + $0x110] sm:$0xff]
      %v195 = vld [vmem:[%s165 + $0x120] sm:$0xff]
      %v196 = vld [vmem:[%s165 + $0x128] sm:$0xff]
      %v197 = vld [vmem:[%s165 + $0x138] sm:$0xff]
      %v198 = vld [vmem:[%s165 + $0x140] sm:$0xff]
      %v199 = vld [vmem:[%s165 + $0x150] sm:$0xff]
      %v200 = vld [vmem:[%s165 + $0x158] sm:$0xff]
      %v201 = vld [vmem:[%s165 + $0x168] sm:$0xff]
      %v202 = vld [vmem:[%s165 + $0x170] sm:$0xff]
      %v203 = vld [vmem:[%s1] sm:$0xff]
      %v204 = vld [vmem:[%s165 + $0x1] sm:$0xff]
      %v205 = vld [vmem:[%s165 + $0x9] sm:$0xff]
      %v206 = vld [vmem:[%s165 + $0x19] sm:$0xff]
      %v207 = vld [vmem:[%s165 + $0x21] sm:$0xff]
      %v208 = vld [vmem:[%s165 + $0x31] sm:$0xff]
      %v209 = vld [vmem:[%s165 + $0x39] sm:$0xff]
      %v210 = vld [vmem:[%s165 + $0x49] sm:$0xff]
      %v211 = vld [vmem:[%s165 + $0x51] sm:$0xff]
      %v212 = vld [vmem:[%s165 + $0x61] sm:$0xff]
      %v213 = vld [vmem:[%s165 + $0x69] sm:$0xff]
      %v214 = vld [vmem:[%s165 + $0x79] sm:$0xff]
      %v215 = vld [vmem:[%s165 + $0x81] sm:$0xff]
      %v216 = vld [vmem:[%s165 + $0x91] sm:$0xff]
      %v217 = vld [vmem:[%s165 + $0x99] sm:$0xff]
      %v218 = vld [vmem:[%s165 + $0xa9] sm:$0xff]
      %v219 = vld [vmem:[%s165 + $0xb1] sm:$0xff]
      %v220 = vld [vmem:[%s165 + $0xc1] sm:$0xff]
      %v221 = vld [vmem:[%s165 + $0xc9] sm:$0xff]
      %v222 = vld [vmem:[%s165 + $0xd9] sm:$0xff]
      %v223 = vld [vmem:[%s165 + $0xe1] sm:$0xff]
      %v224 = vld [vmem:[%s165 + $0xf1] sm:$0xff]
      %v225 = vld [vmem:[%s165 + $0xf9] sm:$0xff]
      %v226 = vld [vmem:[%s165 + $0x109] sm:$0xff]
      %v227 = vld [vmem:[%s165 + $0x111] sm:$0xff]
      %v228 = vld [vmem:[%s165 + $0x121] sm:$0xff]
      %v229 = vld [vmem:[%s165 + $0x129] sm:$0xff]
      %v230 = vld [vmem:[%s165 + $0x139] sm:$0xff]
      %v231 = vld [vmem:[%s165 + $0x141] sm:$0xff]
      %v232 = vld [vmem:[%s165 + $0x151] sm:$0xff]
      %v233 = vld [vmem:[%s165 + $0x159] sm:$0xff]
      %v234 = vld [vmem:[%s165 + $0x169] sm:$0xff]
      %v235 = vld [vmem:[%s165 + $0x171] sm:$0xff]
      %v236 = vld [vmem:[%s1 + $0x8] sm:$0xff]
      %vm237 = vcmask 64512
      %v239 = vsel %vm237, %v204, 0
      %v242 = vsel %vm237, %v205, 0
      %v245 = vsel %vm237, %v206, 0
      %v248 = vsel %vm237, %v207, 0
      %v251 = vsel %vm237, %v208, 0
      %v254 = vsel %vm237, %v209, 0
      %v257 = vsel %vm237, %v210, 0
      %v260 = vsel %vm237, %v211, 0
      %v263 = vsel %vm237, %v212, 0
      %v266 = vsel %vm237, %v213, 0
      %v269 = vsel %vm237, %v214, 0
      %v272 = vsel %vm237, %v215, 0
      %v275 = vsel %vm237, %v216, 0
      %v278 = vsel %vm237, %v217, 0
      %v281 = vsel %vm237, %v218, 0
      %v284 = vsel %vm237, %v219, 0
      %v287 = vsel %vm237, %v220, 0
      %v290 = vsel %vm237, %v221, 0
      %v293 = vsel %vm237, %v222, 0
      %v296 = vsel %vm237, %v223, 0
      %v299 = vsel %vm237, %v224, 0
      %v302 = vsel %vm237, %v225, 0
      %v305 = vsel %vm237, %v226, 0
      %v308 = vsel %vm237, %v227, 0
      %v311 = vsel %vm237, %v228, 0
      %v314 = vsel %vm237, %v229, 0
      %v317 = vsel %vm237, %v230, 0
      %v320 = vsel %vm237, %v231, 0
      %v323 = vsel %vm237, %v232, 0
      %v326 = vsel %vm237, %v233, 0
      %v329 = vsel %vm237, %v234, 0
      %v332 = vsel %vm237, %v235, 0
      %334 = vmatpush.msra.mxu0 0.0
      %335 = vmatpush.msra.mxu0 0.0
      %336 = vmatpush.msra.mxu0 0.0
      %337 = vmatpush.msra.mxu0 0.0
      %338 = vmatpush.msra.mxu0 0.0
      %339 = vmatpush.msra.mxu0 0.0
      %340 = vmatpush.msra.mxu0 0.0
      %341 = vmatpush.msra.mxu0 0.0
      %342 = vmatpush.msra.mxu0 0.0
      %343 = vmatpush.msra.mxu0 0.0
      %344 = vmatpush.msra.mxu0 0.0
      %345 = vmatpush.msra.mxu0 0.0
      %346 = vmatpush.msra.mxu0 0.0
      %347 = vmatpush.msra.mxu0 0.0
      %348 = vmatpush.msra.mxu0 0.0
      %349 = vmatpush.msra.mxu0 %v236
      %350 = vmatmul.f32.gmra.mxu0 %v239
      %v351 = vpop.f32.mrf.mxu0
      %v352 = vadd.f32 0.0, %v351
      %353 = vmatmul.f32.gmra.mxu0 %v242
      %v354 = vpop.f32.mrf.mxu0
      %v355 = vadd.f32 0.0, %v354
      %356 = vmatmul.f32.gmra.mxu0 %v245
      %v357 = vpop.f32.mrf.mxu0
      %v358 = vadd.f32 0.0, %v357
      %359 = vmatmul.f32.gmra.mxu0 %v248
      %v360 = vpop.f32.mrf.mxu0
      %v361 = vadd.f32 0.0, %v360
      %362 = vmatmul.f32.gmra.mxu0 %v251
      %v363 = vpop.f32.mrf.mxu0
      %v364 = vadd.f32 0.0, %v363
      %365 = vmatmul.f32.gmra.mxu0 %v254
      %v366 = vpop.f32.mrf.mxu0
      %v367 = vadd.f32 0.0, %v366
      %368 = vmatmul.f32.gmra.mxu0 %v257
      %v369 = vpop.f32.mrf.mxu0
      %v370 = vadd.f32 0.0, %v369
      %371 = vmatmul.f32.gmra.mxu0 %v260
      %v372 = vpop.f32.mrf.mxu0
      %v373 = vadd.f32 0.0, %v372
      %374 = vmatmul.f32.gmra.mxu0 %v263
      %v375 = vpop.f32.mrf.mxu0
      %v376 = vadd.f32 0.0, %v375
      %377 = vmatmul.f32.gmra.mxu0 %v266
      %v378 = vpop.f32.mrf.mxu0
      %v379 = vadd.f32 0.0, %v378
      %380 = vmatmul.f32.gmra.mxu0 %v269
      %v381 = vpop.f32.mrf.mxu0
      %v382 = vadd.f32 0.0, %v381
      %383 = vmatmul.f32.gmra.mxu0 %v272
      %v384 = vpop.f32.mrf.mxu0
      %v385 = vadd.f32 0.0, %v384
      %386 = vmatmul.f32.gmra.mxu0 %v275
      %v387 = vpop.f32.mrf.mxu0
      %v388 = vadd.f32 0.0, %v387
      %389 = vmatmul.f32.gmra.mxu0 %v278
      %v390 = vpop.f32.mrf.mxu0
      %v391 = vadd.f32 0.0, %v390
      %392 = vmatmul.f32.gmra.mxu0 %v281
      %v393 = vpop.f32.mrf.mxu0
      %v394 = vadd.f32 0.0, %v393
      %395 = vmatmul.f32.gmra.mxu0 %v284
      %v396 = vpop.f32.mrf.mxu0
      %v397 = vadd.f32 0.0, %v396
      %398 = vmatmul.f32.gmra.mxu0 %v287
      %v399 = vpop.f32.mrf.mxu0
      %v400 = vadd.f32 0.0, %v399
      %401 = vmatmul.f32.gmra.mxu0 %v290
      %v402 = vpop.f32.mrf.mxu0
      %v403 = vadd.f32 0.0, %v402
      %404 = vmatmul.f32.gmra.mxu0 %v293
      %v405 = vpop.f32.mrf.mxu0
      %v406 = vadd.f32 0.0, %v405
      %407 = vmatmul.f32.gmra.mxu0 %v296
      %v408 = vpop.f32.mrf.mxu0
      %v409 = vadd.f32 0.0, %v408
      %410 = vmatmul.f32.gmra.mxu0 %v299
      %v411 = vpop.f32.mrf.mxu0
      %v412 = vadd.f32 0.0, %v411
      %413 = vmatmul.f32.gmra.mxu0 %v302
      %v414 = vpop.f32.mrf.mxu0
      %v415 = vadd.f32 0.0, %v414
      %416 = vmatmul.f32.gmra.mxu0 %v305
      %v417 = vpop.f32.mrf.mxu0
      %v418 = vadd.f32 0.0, %v417
      %419 = vmatmul.f32.gmra.mxu0 %v308
      %v420 = vpop.f32.mrf.mxu0
      %v421 = vadd.f32 0.0, %v420
      %422 = vmatmul.f32.gmra.mxu0 %v311
      %v423 = vpop.f32.mrf.mxu0
      %v424 = vadd.f32 0.0, %v423
      %425 = vmatmul.f32.gmra.mxu0 %v314
      %v426 = vpop.f32.mrf.mxu0
      %v427 = vadd.f32 0.0, %v426
      %428 = vmatmul.f32.gmra.mxu0 %v317
      %v429 = vpop.f32.mrf.mxu0
      %v430 = vadd.f32 0.0, %v429
      %431 = vmatmul.f32.gmra.mxu0 %v320
      %v432 = vpop.f32.mrf.mxu0
      %v433 = vadd.f32 0.0, %v432
      %434 = vmatmul.f32.gmra.mxu0 %v323
      %v435 = vpop.f32.mrf.mxu0
      %v436 = vadd.f32 0.0, %v435
      %437 = vmatmul.f32.gmra.mxu0 %v326
      %v438 = vpop.f32.mrf.mxu0
      %v439 = vadd.f32 0.0, %v438
      %440 = vmatmul.f32.gmra.mxu0 %v329
      %v441 = vpop.f32.mrf.mxu0
      %v442 = vadd.f32 0.0, %v441
      %443 = vmatmul.f32.gmra.mxu0 %v332
      %v444 = vpop.f32.mrf.mxu0
      %v445 = vadd.f32 0.0, %v444
      %446 = vdwg.mxu0
      %v448 = vsel %vm237, %v171, 0
      %v451 = vsel %vm237, %v172, 0
      %v454 = vsel %vm237, %v173, 0
      %v457 = vsel %vm237, %v174, 0
      %v460 = vsel %vm237, %v175, 0
      %v463 = vsel %vm237, %v176, 0
      %v466 = vsel %vm237, %v177, 0
      %v469 = vsel %vm237, %v178, 0
      %v472 = vsel %vm237, %v179, 0
      %v475 = vsel %vm237, %v180, 0
      %v478 = vsel %vm237, %v181, 0
      %v481 = vsel %vm237, %v182, 0
      %v484 = vsel %vm237, %v183, 0
      %v487 = vsel %vm237, %v184, 0
      %v490 = vsel %vm237, %v185, 0
      %v493 = vsel %vm237, %v186, 0
      %v496 = vsel %vm237, %v187, 0
      %v499 = vsel %vm237, %v188, 0
      %v502 = vsel %vm237, %v189, 0
      %v505 = vsel %vm237, %v190, 0
      %v508 = vsel %vm237, %v191, 0
      %v511 = vsel %vm237, %v192, 0
      %v514 = vsel %vm237, %v193, 0
      %v517 = vsel %vm237, %v194, 0
      %v520 = vsel %vm237, %v195, 0
      %v523 = vsel %vm237, %v196, 0
      %v526 = vsel %vm237, %v197, 0
      %v529 = vsel %vm237, %v198, 0
      %v532 = vsel %vm237, %v199, 0
      %v535 = vsel %vm237, %v200, 0
      %v538 = vsel %vm237, %v201, 0
      %v541 = vsel %vm237, %v202, 0
      %543 = vmatpush.msra.mxu0 0.0
      %544 = vmatpush.msra.mxu0 0.0
      %545 = vmatpush.msra.mxu0 0.0
      %546 = vmatpush.msra.mxu0 0.0
      %547 = vmatpush.msra.mxu0 0.0
      %548 = vmatpush.msra.mxu0 0.0
      %549 = vmatpush.msra.mxu0 0.0
      %550 = vmatpush.msra.mxu0 0.0
      %551 = vmatpush.msra.mxu0 0.0
      %552 = vmatpush.msra.mxu0 0.0
      %553 = vmatpush.msra.mxu0 0.0
      %554 = vmatpush.msra.mxu0 0.0
      %555 = vmatpush.msra.mxu0 0.0
      %556 = vmatpush.msra.mxu0 0.0
      %557 = vmatpush.msra.mxu0 0.0
      %558 = vmatpush.msra.mxu0 %v203
      %559 = vmatmul.f32.gmra.mxu0 %v448
      %v560 = vpop.f32.mrf.mxu0
      %v561 = vadd.f32 %v352, %v560
      %562 = vmatmul.f32.gmra.mxu0 %v451
      %v563 = vpop.f32.mrf.mxu0
      %v564 = vadd.f32 %v355, %v563
      %565 = vmatmul.f32.gmra.mxu0 %v454
      %v566 = vpop.f32.mrf.mxu0
      %v567 = vadd.f32 %v358, %v566
      %568 = vmatmul.f32.gmra.mxu0 %v457
      %v569 = vpop.f32.mrf.mxu0
      %v570 = vadd.f32 %v361, %v569
      %571 = vmatmul.f32.gmra.mxu0 %v460
      %v572 = vpop.f32.mrf.mxu0
      %v573 = vadd.f32 %v364, %v572
      %574 = vmatmul.f32.gmra.mxu0 %v463
      %v575 = vpop.f32.mrf.mxu0
      %v576 = vadd.f32 %v367, %v575
      %577 = vmatmul.f32.gmra.mxu0 %v466
      %v578 = vpop.f32.mrf.mxu0
      %v579 = vadd.f32 %v370, %v578
      %580 = vmatmul.f32.gmra.mxu0 %v469
      %v581 = vpop.f32.mrf.mxu0
      %v582 = vadd.f32 %v373, %v581
      %583 = vmatmul.f32.gmra.mxu0 %v472
      %v584 = vpop.f32.mrf.mxu0
      %v585 = vadd.f32 %v376, %v584
      %586 = vmatmul.f32.gmra.mxu0 %v475
      %v587 = vpop.f32.mrf.mxu0
      %v588 = vadd.f32 %v379, %v587
      %589 = vmatmul.f32.gmra.mxu0 %v478
      %v590 = vpop.f32.mrf.mxu0
      %v591 = vadd.f32 %v382, %v590
      %592 = vmatmul.f32.gmra.mxu0 %v481
      %v593 = vpop.f32.mrf.mxu0
      %v594 = vadd.f32 %v385, %v593
      %595 = vmatmul.f32.gmra.mxu0 %v484
      %v596 = vpop.f32.mrf.mxu0
      %v597 = vadd.f32 %v388, %v596
      %598 = vmatmul.f32.gmra.mxu0 %v487
      %v599 = vpop.f32.mrf.mxu0
      %v600 = vadd.f32 %v391, %v599
      %601 = vmatmul.f32.gmra.mxu0 %v490
      %v602 = vpop.f32.mrf.mxu0
      %v603 = vadd.f32 %v394, %v602
      %604 = vmatmul.f32.gmra.mxu0 %v493
      %v605 = vpop.f32.mrf.mxu0
      %v606 = vadd.f32 %v397, %v605
      %607 = vmatmul.f32.gmra.mxu0 %v496
      %v608 = vpop.f32.mrf.mxu0
      %v609 = vadd.f32 %v400, %v608
      %610 = vmatmul.f32.gmra.mxu0 %v499
      %v611 = vpop.f32.mrf.mxu0
      %v612 = vadd.f32 %v403, %v611
      %613 = vmatmul.f32.gmra.mxu0 %v502
      %v614 = vpop.f32.mrf.mxu0
      %v615 = vadd.f32 %v406, %v614
      %616 = vmatmul.f32.gmra.mxu0 %v505
      %v617 = vpop.f32.mrf.mxu0
      %v618 = vadd.f32 %v409, %v617
      %619 = vmatmul.f32.gmra.mxu0 %v508
      %v620 = vpop.f32.mrf.mxu0
      %v621 = vadd.f32 %v412, %v620
      %622 = vmatmul.f32.gmra.mxu0 %v511
      %v623 = vpop.f32.mrf.mxu0
      %v624 = vadd.f32 %v415, %v623
      %625 = vmatmul.f32.gmra.mxu0 %v514
      %v626 = vpop.f32.mrf.mxu0
      %v627 = vadd.f32 %v418, %v626
      %628 = vmatmul.f32.gmra.mxu0 %v517
      %v629 = vpop.f32.mrf.mxu0
      %v630 = vadd.f32 %v421, %v629
      %631 = vmatmul.f32.gmra.mxu0 %v520
      %v632 = vpop.f32.mrf.mxu0
      %v633 = vadd.f32 %v424, %v632
      %634 = vmatmul.f32.gmra.mxu0 %v523
      %v635 = vpop.f32.mrf.mxu0
      %v636 = vadd.f32 %v427, %v635
      %637 = vmatmul.f32.gmra.mxu0 %v526
      %v638 = vpop.f32.mrf.mxu0
      %v639 = vadd.f32 %v430, %v638
      %640 = vmatmul.f32.gmra.mxu0 %v529
      %v641 = vpop.f32.mrf.mxu0
      %v642 = vadd.f32 %v433, %v641
      %643 = vmatmul.f32.gmra.mxu0 %v532
      %v644 = vpop.f32.mrf.mxu0
      %v645 = vadd.f32 %v436, %v644
      %646 = vmatmul.f32.gmra.mxu0 %v535
      %v647 = vpop.f32.mrf.mxu0
      %v648 = vadd.f32 %v439, %v647
      %649 = vmatmul.f32.gmra.mxu0 %v538
      %v650 = vpop.f32.mrf.mxu0
      %v651 = vadd.f32 %v442, %v650
      %652 = vmatmul.f32.gmra.mxu0 %v541
      %v653 = vpop.f32.mrf.mxu0
      %v654 = vadd.f32 %v445, %v653
      %655 = vdwg.mxu0
      %v656 = vld [vmem:[%s165 + $0x2] sm:$0xff]
      %v657 = vld [vmem:[%s165 + $0xa] sm:$0xff]
      %v658 = vld [vmem:[%s165 + $0x1a] sm:$0xff]
      %v659 = vld [vmem:[%s165 + $0x22] sm:$0xff]
      %v660 = vld [vmem:[%s165 + $0x32] sm:$0xff]
      %v661 = vld [vmem:[%s165 + $0x3a] sm:$0xff]
      %v662 = vld [vmem:[%s165 + $0x4a] sm:$0xff]
      %v663 = vld [vmem:[%s165 + $0x52] sm:$0xff]
      %v664 = vld [vmem:[%s165 + $0x62] sm:$0xff]
      %v665 = vld [vmem:[%s165 + $0x6a] sm:$0xff]
      %v666 = vld [vmem:[%s165 + $0x7a] sm:$0xff]
      %v667 = vld [vmem:[%s165 + $0x82] sm:$0xff]
      %v668 = vld [vmem:[%s165 + $0x92] sm:$0xff]
      %v669 = vld [vmem:[%s165 + $0x9a] sm:$0xff]
      %v670 = vld [vmem:[%s165 + $0xaa] sm:$0xff]
      %v671 = vld [vmem:[%s165 + $0xb2] sm:$0xff]
      %v672 = vld [vmem:[%s165 + $0xc2] sm:$0xff]
      %v673 = vld [vmem:[%s165 + $0xca] sm:$0xff]
      %v674 = vld [vmem:[%s165 + $0xda] sm:$0xff]
      %v675 = vld [vmem:[%s165 + $0xe2] sm:$0xff]
      %v676 = vld [vmem:[%s165 + $0xf2] sm:$0xff]
      %v677 = vld [vmem:[%s165 + $0xfa] sm:$0xff]
      %v678 = vld [vmem:[%s165 + $0x10a] sm:$0xff]
      %v679 = vld [vmem:[%s165 + $0x112] sm:$0xff]
      %v680 = vld [vmem:[%s165 + $0x122] sm:$0xff]
      %v681 = vld [vmem:[%s165 + $0x12a] sm:$0xff]
      %v682 = vld [vmem:[%s165 + $0x13a] sm:$0xff]
      %v683 = vld [vmem:[%s165 + $0x142] sm:$0xff]
      %v684 = vld [vmem:[%s165 + $0x152] sm:$0xff]
      %v685 = vld [vmem:[%s165 + $0x15a] sm:$0xff]
      %v686 = vld [vmem:[%s165 + $0x16a] sm:$0xff]
      %v687 = vld [vmem:[%s165 + $0x172] sm:$0xff]
      %v688 = vld [vmem:[%s1 + $0x10] sm:$0xff]
      %v690 = vsel %vm237, %v656, 0
      %v693 = vsel %vm237, %v657, 0
      %v696 = vsel %vm237, %v658, 0
      %v699 = vsel %vm237, %v659, 0
      %v702 = vsel %vm237, %v660, 0
      %v705 = vsel %vm237, %v661, 0
      %v708 = vsel %vm237, %v662, 0
      %v711 = vsel %vm237, %v663, 0
      %v714 = vsel %vm237, %v664, 0
      %v717 = vsel %vm237, %v665, 0
      %v720 = vsel %vm237, %v666, 0
      %v723 = vsel %vm237, %v667, 0
      %v726 = vsel %vm237, %v668, 0
      %v729 = vsel %vm237, %v669, 0
      %v732 = vsel %vm237, %v670, 0
      %v735 = vsel %vm237, %v671, 0
      %v738 = vsel %vm237, %v672, 0
      %v741 = vsel %vm237, %v673, 0
      %v744 = vsel %vm237, %v674, 0
      %v747 = vsel %vm237, %v675, 0
      %v750 = vsel %vm237, %v676, 0
      %v753 = vsel %vm237, %v677, 0
      %v756 = vsel %vm237, %v678, 0
      %v759 = vsel %vm237, %v679, 0
      %v762 = vsel %vm237, %v680, 0
      %v765 = vsel %vm237, %v681, 0
      %v768 = vsel %vm237, %v682, 0
      %v771 = vsel %vm237, %v683, 0
      %v774 = vsel %vm237, %v684, 0
      %v777 = vsel %vm237, %v685, 0
      %v780 = vsel %vm237, %v686, 0
      %v783 = vsel %vm237, %v687, 0
      %785 = vmatpush.msra.mxu0 0.0
      %786 = vmatpush.msra.mxu0 0.0
      %787 = vmatpush.msra.mxu0 0.0
      %788 = vmatpush.msra.mxu0 0.0
      %789 = vmatpush.msra.mxu0 0.0
      %790 = vmatpush.msra.mxu0 0.0
      %791 = vmatpush.msra.mxu0 0.0
      %792 = vmatpush.msra.mxu0 0.0
      %793 = vmatpush.msra.mxu0 0.0
      %794 = vmatpush.msra.mxu0 0.0
      %795 = vmatpush.msra.mxu0 0.0
      %796 = vmatpush.msra.mxu0 0.0
      %797 = vmatpush.msra.mxu0 0.0
      %798 = vmatpush.msra.mxu0 0.0
      %799 = vmatpush.msra.mxu0 0.0
      %800 = vmatpush.msra.mxu0 %v688
      %801 = vmatmul.f32.gmra.mxu0 %v690
      %v802 = vpop.f32.mrf.mxu0
      %v803 = vadd.f32 0.0, %v802
      %804 = vmatmul.f32.gmra.mxu0 %v693
      %v805 = vpop.f32.mrf.mxu0
      %v806 = vadd.f32 0.0, %v805
      %807 = vmatmul.f32.gmra.mxu0 %v696
      %v808 = vpop.f32.mrf.mxu0
      %v809 = vadd.f32 0.0, %v808
      %810 = vmatmul.f32.gmra.mxu0 %v699
      %v811 = vpop.f32.mrf.mxu0
      %v812 = vadd.f32 0.0, %v811
      %813 = vmatmul.f32.gmra.mxu0 %v702
      %v814 = vpop.f32.mrf.mxu0
      %v815 = vadd.f32 0.0, %v814
      %816 = vmatmul.f32.gmra.mxu0 %v705
      %v817 = vpop.f32.mrf.mxu0
      %v818 = vadd.f32 0.0, %v817
      %819 = vmatmul.f32.gmra.mxu0 %v708
      %v820 = vpop.f32.mrf.mxu0
      %v821 = vadd.f32 0.0, %v820
      %822 = vmatmul.f32.gmra.mxu0 %v711
      %v823 = vpop.f32.mrf.mxu0
      %v824 = vadd.f32 0.0, %v823
      %825 = vmatmul.f32.gmra.mxu0 %v714
      %v826 = vpop.f32.mrf.mxu0
      %v827 = vadd.f32 0.0, %v826
      %828 = vmatmul.f32.gmra.mxu0 %v717
      %v829 = vpop.f32.mrf.mxu0
      %v830 = vadd.f32 0.0, %v829
      %831 = vmatmul.f32.gmra.mxu0 %v720
      %v832 = vpop.f32.mrf.mxu0
      %v833 = vadd.f32 0.0, %v832
      %834 = vmatmul.f32.gmra.mxu0 %v723
      %v835 = vpop.f32.mrf.mxu0
      %v836 = vadd.f32 0.0, %v835
      %837 = vmatmul.f32.gmra.mxu0 %v726
      %v838 = vpop.f32.mrf.mxu0
      %v839 = vadd.f32 0.0, %v838
      %840 = vmatmul.f32.gmra.mxu0 %v729
      %v841 = vpop.f32.mrf.mxu0
      %v842 = vadd.f32 0.0, %v841
      %843 = vmatmul.f32.gmra.mxu0 %v732
      %v844 = vpop.f32.mrf.mxu0
      %v845 = vadd.f32 0.0, %v844
      %846 = vmatmul.f32.gmra.mxu0 %v735
      %v847 = vpop.f32.mrf.mxu0
      %v848 = vadd.f32 0.0, %v847
      %849 = vmatmul.f32.gmra.mxu0 %v738
      %v850 = vpop.f32.mrf.mxu0
      %v851 = vadd.f32 0.0, %v850
      %852 = vmatmul.f32.gmra.mxu0 %v741
      %v853 = vpop.f32.mrf.mxu0
      %v854 = vadd.f32 0.0, %v853
      %855 = vmatmul.f32.gmra.mxu0 %v744
      %v856 = vpop.f32.mrf.mxu0
      %v857 = vadd.f32 0.0, %v856
      %858 = vmatmul.f32.gmra.mxu0 %v747
      %v859 = vpop.f32.mrf.mxu0
      %v860 = vadd.f32 0.0, %v859
      %861 = vmatmul.f32.gmra.mxu0 %v750
      %v862 = vpop.f32.mrf.mxu0
      %v863 = vadd.f32 0.0, %v862
      %864 = vmatmul.f32.gmra.mxu0 %v753
      %v865 = vpop.f32.mrf.mxu0
      %v866 = vadd.f32 0.0, %v865
      %867 = vmatmul.f32.gmra.mxu0 %v756
      %v868 = vpop.f32.mrf.mxu0
      %v869 = vadd.f32 0.0, %v868
      %870 = vmatmul.f32.gmra.mxu0 %v759
      %v871 = vpop.f32.mrf.mxu0
      %v872 = vadd.f32 0.0, %v871
      %873 = vmatmul.f32.gmra.mxu0 %v762
      %v874 = vpop.f32.mrf.mxu0
      %v875 = vadd.f32 0.0, %v874
      %876 = vmatmul.f32.gmra.mxu0 %v765
      %v877 = vpop.f32.mrf.mxu0
      %v878 = vadd.f32 0.0, %v877
      %879 = vmatmul.f32.gmra.mxu0 %v768
      %v880 = vpop.f32.mrf.mxu0
      %v881 = vadd.f32 0.0, %v880
      %882 = vmatmul.f32.gmra.mxu0 %v771
      %v883 = vpop.f32.mrf.mxu0
      %v884 = vadd.f32 0.0, %v883
      %885 = vmatmul.f32.gmra.mxu0 %v774
      %v886 = vpop.f32.mrf.mxu0
      %v887 = vadd.f32 0.0, %v886
      %888 = vmatmul.f32.gmra.mxu0 %v777
      %v889 = vpop.f32.mrf.mxu0
      %v890 = vadd.f32 0.0, %v889
      %891 = vmatmul.f32.gmra.mxu0 %v780
      %v892 = vpop.f32.mrf.mxu0
      %v893 = vadd.f32 0.0, %v892
      %894 = vmatmul.f32.gmra.mxu0 %v783
      %v895 = vpop.f32.mrf.mxu0
      %v896 = vadd.f32 0.0, %v895
      %897 = vdwg.mxu0
      %v898 = vadd.f32 %v561, %v803
      %v899 = vadd.f32 %v564, %v806
      %v900 = vadd.f32 %v567, %v809
      %v901 = vadd.f32 %v570, %v812
      %v902 = vadd.f32 %v573, %v815
      %v903 = vadd.f32 %v576, %v818
      %v904 = vadd.f32 %v579, %v821
      %v905 = vadd.f32 %v582, %v824
      %v906 = vadd.f32 %v585, %v827
      %v907 = vadd.f32 %v588, %v830
      %v908 = vadd.f32 %v591, %v833
      %v909 = vadd.f32 %v594, %v836
      %v910 = vadd.f32 %v597, %v839
      %v911 = vadd.f32 %v600, %v842
      %v912 = vadd.f32 %v603, %v845
      %v913 = vadd.f32 %v606, %v848
      %v914 = vadd.f32 %v609, %v851
      %v915 = vadd.f32 %v612, %v854
      %v916 = vadd.f32 %v615, %v857
      %v917 = vadd.f32 %v618, %v860
      %v918 = vadd.f32 %v621, %v863
      %v919 = vadd.f32 %v624, %v866
      %v920 = vadd.f32 %v627, %v869
      %v921 = vadd.f32 %v630, %v872
      %v922 = vadd.f32 %v633, %v875
      %v923 = vadd.f32 %v636, %v878
      %v924 = vadd.f32 %v639, %v881
      %v925 = vadd.f32 %v642, %v884
      %v926 = vadd.f32 %v645, %v887
      %v927 = vadd.f32 %v648, %v890
      %v928 = vadd.f32 %v651, %v893
      %v929 = vadd.f32 %v654, %v896
      %s930 = scalar_lea.vmem %s165, 24
      %v931 = vld [vmem:[%s930] sm:$0xff]
      %v932 = vld [vmem:[%s930 + $0x8] sm:$0xff]
      %v933 = vld [vmem:[%s930 + $0x18] sm:$0xff]
      %v934 = vld [vmem:[%s930 + $0x20] sm:$0xff]
      %v935 = vld [vmem:[%s930 + $0x30] sm:$0xff]
      %v936 = vld [vmem:[%s930 + $0x38] sm:$0xff]
      %v937 = vld [vmem:[%s930 + $0x48] sm:$0xff]
      %v938 = vld [vmem:[%s930 + $0x50] sm:$0xff]
      %v939 = vld [vmem:[%s930 + $0x60] sm:$0xff]
      %v940 = vld [vmem:[%s930 + $0x68] sm:$0xff]
      %v941 = vld [vmem:[%s930 + $0x78] sm:$0xff]
      %v942 = vld [vmem:[%s930 + $0x80] sm:$0xff]
      %v943 = vld [vmem:[%s930 + $0x90] sm:$0xff]
      %v944 = vld [vmem:[%s930 + $0x98] sm:$0xff]
      %v945 = vld [vmem:[%s930 + $0xa8] sm:$0xff]
      %v946 = vld [vmem:[%s930 + $0xb0] sm:$0xff]
      %v947 = vld [vmem:[%s930 + $0xc0] sm:$0xff]
      %v948 = vld [vmem:[%s930 + $0xc8] sm:$0xff]
      %v949 = vld [vmem:[%s930 + $0xd8] sm:$0xff]
      %v950 = vld [vmem:[%s930 + $0xe0] sm:$0xff]
      %v951 = vld [vmem:[%s930 + $0xf0] sm:$0xff]
      %v952 = vld [vmem:[%s930 + $0xf8] sm:$0xff]
      %v953 = vld [vmem:[%s930 + $0x108] sm:$0xff]
      %v954 = vld [vmem:[%s930 + $0x110] sm:$0xff]
      %v955 = vld [vmem:[%s930 + $0x120] sm:$0xff]
      %v956 = vld [vmem:[%s930 + $0x128] sm:$0xff]
      %v957 = vld [vmem:[%s930 + $0x138] sm:$0xff]
      %v958 = vld [vmem:[%s930 + $0x140] sm:$0xff]
      %v959 = vld [vmem:[%s930 + $0x150] sm:$0xff]
      %v960 = vld [vmem:[%s930 + $0x158] sm:$0xff]
      %v961 = vld [vmem:[%s930 + $0x168] sm:$0xff]
      %v962 = vld [vmem:[%s930 + $0x170] sm:$0xff]
      %v963 = vld [vmem:[%s1 + $0x18] sm:$0xff]
      %v965 = vsel %vm237, %v931, 0
      %v968 = vsel %vm237, %v932, 0
      %v971 = vsel %vm237, %v933, 0
      %v974 = vsel %vm237, %v934, 0
      %v977 = vsel %vm237, %v935, 0
      %v980 = vsel %vm237, %v936, 0
      %v983 = vsel %vm237, %v937, 0
      %v986 = vsel %vm237, %v938, 0
      %v989 = vsel %vm237, %v939, 0
      %v992 = vsel %vm237, %v940, 0
      %v995 = vsel %vm237, %v941, 0
      %v998 = vsel %vm237, %v942, 0
      %v1001 = vsel %vm237, %v943, 0
      %v1004 = vsel %vm237, %v944, 0
      %v1007 = vsel %vm237, %v945, 0
      %v1010 = vsel %vm237, %v946, 0
      %v1013 = vsel %vm237, %v947, 0
      %v1016 = vsel %vm237, %v948, 0
      %v1019 = vsel %vm237, %v949, 0
      %v1022 = vsel %vm237, %v950, 0
      %v1025 = vsel %vm237, %v951, 0
      %v1028 = vsel %vm237, %v952, 0
      %v1031 = vsel %vm237, %v953, 0
      %v1034 = vsel %vm237, %v954, 0
      %v1037 = vsel %vm237, %v955, 0
      %v1040 = vsel %vm237, %v956, 0
      %v1043 = vsel %vm237, %v957, 0
      %v1046 = vsel %vm237, %v958, 0
      %v1049 = vsel %vm237, %v959, 0
      %v1052 = vsel %vm237, %v960, 0
      %v1055 = vsel %vm237, %v961, 0
      %v1058 = vsel %vm237, %v962, 0
      %1060 = vmatpush.msra.mxu0 0.0
      %1061 = vmatpush.msra.mxu0 0.0
      %1062 = vmatpush.msra.mxu0 0.0
      %1063 = vmatpush.msra.mxu0 0.0
      %1064 = vmatpush.msra.mxu0 0.0
      %1065 = vmatpush.msra.mxu0 0.0
      %1066 = vmatpush.msra.mxu0 0.0
      %1067 = vmatpush.msra.mxu0 0.0
      %1068 = vmatpush.msra.mxu0 0.0
      %1069 = vmatpush.msra.mxu0 0.0
      %1070 = vmatpush.msra.mxu0 0.0
      %1071 = vmatpush.msra.mxu0 0.0
      %1072 = vmatpush.msra.mxu0 0.0
      %1073 = vmatpush.msra.mxu0 0.0
      %1074 = vmatpush.msra.mxu0 0.0
      %1075 = vmatpush.msra.mxu0 %v963
      %1076 = vmatmul.f32.gmra.mxu0 %v965
      %v1077 = vpop.f32.mrf.mxu0
      %v1078 = vadd.f32 0.0, %v1077
      %1079 = vmatmul.f32.gmra.mxu0 %v968
      %v1080 = vpop.f32.mrf.mxu0
      %v1081 = vadd.f32 0.0, %v1080
      %1082 = vmatmul.f32.gmra.mxu0 %v971
      %v1083 = vpop.f32.mrf.mxu0
      %v1084 = vadd.f32 0.0, %v1083
      %1085 = vmatmul.f32.gmra.mxu0 %v974
      %v1086 = vpop.f32.mrf.mxu0
      %v1087 = vadd.f32 0.0, %v1086
      %1088 = vmatmul.f32.gmra.mxu0 %v977
      %v1089 = vpop.f32.mrf.mxu0
      %v1090 = vadd.f32 0.0, %v1089
      %1091 = vmatmul.f32.gmra.mxu0 %v980
      %v1092 = vpop.f32.mrf.mxu0
      %v1093 = vadd.f32 0.0, %v1092
      %1094 = vmatmul.f32.gmra.mxu0 %v983
      %v1095 = vpop.f32.mrf.mxu0
      %v1096 = vadd.f32 0.0, %v1095
      %1097 = vmatmul.f32.gmra.mxu0 %v986
      %v1098 = vpop.f32.mrf.mxu0
      %v1099 = vadd.f32 0.0, %v1098
      %1100 = vmatmul.f32.gmra.mxu0 %v989
      %v1101 = vpop.f32.mrf.mxu0
      %v1102 = vadd.f32 0.0, %v1101
      %1103 = vmatmul.f32.gmra.mxu0 %v992
      %v1104 = vpop.f32.mrf.mxu0
      %v1105 = vadd.f32 0.0, %v1104
      %1106 = vmatmul.f32.gmra.mxu0 %v995
      %v1107 = vpop.f32.mrf.mxu0
      %v1108 = vadd.f32 0.0, %v1107
      %1109 = vmatmul.f32.gmra.mxu0 %v998
      %v1110 = vpop.f32.mrf.mxu0
      %v1111 = vadd.f32 0.0, %v1110
      %1112 = vmatmul.f32.gmra.mxu0 %v1001
      %v1113 = vpop.f32.mrf.mxu0
      %v1114 = vadd.f32 0.0, %v1113
      %1115 = vmatmul.f32.gmra.mxu0 %v1004
      %v1116 = vpop.f32.mrf.mxu0
      %v1117 = vadd.f32 0.0, %v1116
      %1118 = vmatmul.f32.gmra.mxu0 %v1007
      %v1119 = vpop.f32.mrf.mxu0
      %v1120 = vadd.f32 0.0, %v1119
      %1121 = vmatmul.f32.gmra.mxu0 %v1010
      %v1122 = vpop.f32.mrf.mxu0
      %v1123 = vadd.f32 0.0, %v1122
      %1124 = vmatmul.f32.gmra.mxu0 %v1013
      %v1125 = vpop.f32.mrf.mxu0
      %v1126 = vadd.f32 0.0, %v1125
      %1127 = vmatmul.f32.gmra.mxu0 %v1016
      %v1128 = vpop.f32.mrf.mxu0
      %v1129 = vadd.f32 0.0, %v1128
      %1130 = vmatmul.f32.gmra.mxu0 %v1019
      %v1131 = vpop.f32.mrf.mxu0
      %v1132 = vadd.f32 0.0, %v1131
      %1133 = vmatmul.f32.gmra.mxu0 %v1022
      %v1134 = vpop.f32.mrf.mxu0
      %v1135 = vadd.f32 0.0, %v1134
      %1136 = vmatmul.f32.gmra.mxu0 %v1025
      %v1137 = vpop.f32.mrf.mxu0
      %v1138 = vadd.f32 0.0, %v1137
      %1139 = vmatmul.f32.gmra.mxu0 %v1028
      %v1140 = vpop.f32.mrf.mxu0
      %v1141 = vadd.f32 0.0, %v1140
      %1142 = vmatmul.f32.gmra.mxu0 %v1031
      %v1143 = vpop.f32.mrf.mxu0
      %v1144 = vadd.f32 0.0, %v1143
      %1145 = vmatmul.f32.gmra.mxu0 %v1034
      %v1146 = vpop.f32.mrf.mxu0
      %v1147 = vadd.f32 0.0, %v1146
      %1148 = vmatmul.f32.gmra.mxu0 %v1037
      %v1149 = vpop.f32.mrf.mxu0
      %v1150 = vadd.f32 0.0, %v1149
      %1151 = vmatmul.f32.gmra.mxu0 %v1040
      %v1152 = vpop.f32.mrf.mxu0
      %v1153 = vadd.f32 0.0, %v1152
      %1154 = vmatmul.f32.gmra.mxu0 %v1043
      %v1155 = vpop.f32.mrf.mxu0
      %v1156 = vadd.f32 0.0, %v1155
      %1157 = vmatmul.f32.gmra.mxu0 %v1046
      %v1158 = vpop.f32.mrf.mxu0
      %v1159 = vadd.f32 0.0, %v1158
      %1160 = vmatmul.f32.gmra.mxu0 %v1049
      %v1161 = vpop.f32.mrf.mxu0
      %v1162 = vadd.f32 0.0, %v1161
      %1163 = vmatmul.f32.gmra.mxu0 %v1052
      %v1164 = vpop.f32.mrf.mxu0
      %v1165 = vadd.f32 0.0, %v1164
      %1166 = vmatmul.f32.gmra.mxu0 %v1055
      %v1167 = vpop.f32.mrf.mxu0
      %v1168 = vadd.f32 0.0, %v1167
      %1169 = vmatmul.f32.gmra.mxu0 %v1058
      %v1170 = vpop.f32.mrf.mxu0
      %v1171 = vadd.f32 0.0, %v1170
      %1172 = vdwg.mxu0
      %v1173 = vadd.f32 %v898, %v1078
      %v1174 = vadd.f32 %v899, %v1081
      %v1175 = vadd.f32 %v900, %v1084
      %v1176 = vadd.f32 %v901, %v1087
      %v1177 = vadd.f32 %v902, %v1090
      %v1178 = vadd.f32 %v903, %v1093
      %v1179 = vadd.f32 %v904, %v1096
      %v1180 = vadd.f32 %v905, %v1099
      %v1181 = vadd.f32 %v906, %v1102
      %v1182 = vadd.f32 %v907, %v1105
      %v1183 = vadd.f32 %v908, %v1108
      %v1184 = vadd.f32 %v909, %v1111
      %v1185 = vadd.f32 %v910, %v1114
      %v1186 = vadd.f32 %v911, %v1117
      %v1187 = vadd.f32 %v912, %v1120
      %v1188 = vadd.f32 %v913, %v1123
      %v1189 = vadd.f32 %v914, %v1126
      %v1190 = vadd.f32 %v915, %v1129
      %v1191 = vadd.f32 %v916, %v1132
      %v1192 = vadd.f32 %v917, %v1135
      %v1193 = vadd.f32 %v918, %v1138
      %v1194 = vadd.f32 %v919, %v1141
      %v1195 = vadd.f32 %v920, %v1144
      %v1196 = vadd.f32 %v921, %v1147
      %v1197 = vadd.f32 %v922, %v1150
      %v1198 = vadd.f32 %v923, %v1153
      %v1199 = vadd.f32 %v924, %v1156
      %v1200 = vadd.f32 %v925, %v1159
      %v1201 = vadd.f32 %v926, %v1162
      %v1202 = vadd.f32 %v927, %v1165
      %v1203 = vadd.f32 %v928, %v1168
      %v1204 = vadd.f32 %v929, %v1171
      %v1205 = vld [vmem:[%s930 + $0x1] sm:$0xff]
      %v1206 = vld [vmem:[%s930 + $0x9] sm:$0xff]
      %v1207 = vld [vmem:[%s930 + $0x19] sm:$0xff]
      %v1208 = vld [vmem:[%s930 + $0x21] sm:$0xff]
      %v1209 = vld [vmem:[%s930 + $0x31] sm:$0xff]
      %v1210 = vld [vmem:[%s930 + $0x39] sm:$0xff]
      %v1211 = vld [vmem:[%s930 + $0x49] sm:$0xff]
      %v1212 = vld [vmem:[%s930 + $0x51] sm:$0xff]
      %v1213 = vld [vmem:[%s930 + $0x61] sm:$0xff]
      %v1214 = vld [vmem:[%s930 + $0x69] sm:$0xff]
      %v1215 = vld [vmem:[%s930 + $0x79] sm:$0xff]
      %v1216 = vld [vmem:[%s930 + $0x81] sm:$0xff]
      %v1217 = vld [vmem:[%s930 + $0x91] sm:$0xff]
      %v1218 = vld [vmem:[%s930 + $0x99] sm:$0xff]
      %v1219 = vld [vmem:[%s930 + $0xa9] sm:$0xff]
      %v1220 = vld [vmem:[%s930 + $0xb1] sm:$0xff]
      %v1221 = vld [vmem:[%s930 + $0xc1] sm:$0xff]
      %v1222 = vld [vmem:[%s930 + $0xc9] sm:$0xff]
      %v1223 = vld [vmem:[%s930 + $0xd9] sm:$0xff]
      %v1224 = vld [vmem:[%s930 + $0xe1] sm:$0xff]
      %v1225 = vld [vmem:[%s930 + $0xf1] sm:$0xff]
      %v1226 = vld [vmem:[%s930 + $0xf9] sm:$0xff]
      %v1227 = vld [vmem:[%s930 + $0x109] sm:$0xff]
      %v1228 = vld [vmem:[%s930 + $0x111] sm:$0xff]
      %v1229 = vld [vmem:[%s930 + $0x121] sm:$0xff]
      %v1230 = vld [vmem:[%s930 + $0x129] sm:$0xff]
      %v1231 = vld [vmem:[%s930 + $0x139] sm:$0xff]
      %v1232 = vld [vmem:[%s930 + $0x141] sm:$0xff]
      %v1233 = vld [vmem:[%s930 + $0x151] sm:$0xff]
      %v1234 = vld [vmem:[%s930 + $0x159] sm:$0xff]
      %v1235 = vld [vmem:[%s930 + $0x169] sm:$0xff]
      %v1236 = vld [vmem:[%s930 + $0x171] sm:$0xff]
      %v1237 = vld [vmem:[%s1 + $0x20] sm:$0xff]
      %v1239 = vsel %vm237, %v1205, 0
      %v1242 = vsel %vm237, %v1206, 0
      %v1245 = vsel %vm237, %v1207, 0
      %v1248 = vsel %vm237, %v1208, 0
      %v1251 = vsel %vm237, %v1209, 0
      %v1254 = vsel %vm237, %v1210, 0
      %v1257 = vsel %vm237, %v1211, 0
      %v1260 = vsel %vm237, %v1212, 0
      %v1263 = vsel %vm237, %v1213, 0
      %v1266 = vsel %vm237, %v1214, 0
      %v1269 = vsel %vm237, %v1215, 0
      %v1272 = vsel %vm237, %v1216, 0
      %v1275 = vsel %vm237, %v1217, 0
      %v1278 = vsel %vm237, %v1218, 0
      %v1281 = vsel %vm237, %v1219, 0
      %v1284 = vsel %vm237, %v1220, 0
      %v1287 = vsel %vm237, %v1221, 0
      %v1290 = vsel %vm237, %v1222, 0
      %v1293 = vsel %vm237, %v1223, 0
      %v1296 = vsel %vm237, %v1224, 0
      %v1299 = vsel %vm237, %v1225, 0
      %v1302 = vsel %vm237, %v1226, 0
      %v1305 = vsel %vm237, %v1227, 0
      %v1308 = vsel %vm237, %v1228, 0
      %v1311 = vsel %vm237, %v1229, 0
      %v1314 = vsel %vm237, %v1230, 0
      %v1317 = vsel %vm237, %v1231, 0
      %v1320 = vsel %vm237, %v1232, 0
      %v1323 = vsel %vm237, %v1233, 0
      %v1326 = vsel %vm237, %v1234, 0
      %v1329 = vsel %vm237, %v1235, 0
      %v1332 = vsel %vm237, %v1236, 0
      %1334 = vmatpush.msra.mxu0 0.0
      %1335 = vmatpush.msra.mxu0 0.0
      %1336 = vmatpush.msra.mxu0 0.0
      %1337 = vmatpush.msra.mxu0 0.0
      %1338 = vmatpush.msra.mxu0 0.0
      %1339 = vmatpush.msra.mxu0 0.0
      %1340 = vmatpush.msra.mxu0 0.0
      %1341 = vmatpush.msra.mxu0 0.0
      %1342 = vmatpush.msra.mxu0 0.0
      %1343 = vmatpush.msra.mxu0 0.0
      %1344 = vmatpush.msra.mxu0 0.0
      %1345 = vmatpush.msra.mxu0 0.0
      %1346 = vmatpush.msra.mxu0 0.0
      %1347 = vmatpush.msra.mxu0 0.0
      %1348 = vmatpush.msra.mxu0 0.0
      %1349 = vmatpush.msra.mxu0 %v1237
      %1350 = vmatmul.f32.gmra.mxu0 %v1239
      %v1351 = vpop.f32.mrf.mxu0
      %v1352 = vadd.f32 0.0, %v1351
      %1353 = vmatmul.f32.gmra.mxu0 %v1242
      %v1354 = vpop.f32.mrf.mxu0
      %v1355 = vadd.f32 0.0, %v1354
      %1356 = vmatmul.f32.gmra.mxu0 %v1245
      %v1357 = vpop.f32.mrf.mxu0
      %v1358 = vadd.f32 0.0, %v1357
      %1359 = vmatmul.f32.gmra.mxu0 %v1248
      %v1360 = vpop.f32.mrf.mxu0
      %v1361 = vadd.f32 0.0, %v1360
      %1362 = vmatmul.f32.gmra.mxu0 %v1251
      %v1363 = vpop.f32.mrf.mxu0
      %v1364 = vadd.f32 0.0, %v1363
      %1365 = vmatmul.f32.gmra.mxu0 %v1254
      %v1366 = vpop.f32.mrf.mxu0
      %v1367 = vadd.f32 0.0, %v1366
      %1368 = vmatmul.f32.gmra.mxu0 %v1257
      %v1369 = vpop.f32.mrf.mxu0
      %v1370 = vadd.f32 0.0, %v1369
      %1371 = vmatmul.f32.gmra.mxu0 %v1260
      %v1372 = vpop.f32.mrf.mxu0
      %v1373 = vadd.f32 0.0, %v1372
      %1374 = vmatmul.f32.gmra.mxu0 %v1263
      %v1375 = vpop.f32.mrf.mxu0
      %v1376 = vadd.f32 0.0, %v1375
      %1377 = vmatmul.f32.gmra.mxu0 %v1266
      %v1378 = vpop.f32.mrf.mxu0
      %v1379 = vadd.f32 0.0, %v1378
      %1380 = vmatmul.f32.gmra.mxu0 %v1269
      %v1381 = vpop.f32.mrf.mxu0
      %v1382 = vadd.f32 0.0, %v1381
      %1383 = vmatmul.f32.gmra.mxu0 %v1272
      %v1384 = vpop.f32.mrf.mxu0
      %v1385 = vadd.f32 0.0, %v1384
      %1386 = vmatmul.f32.gmra.mxu0 %v1275
      %v1387 = vpop.f32.mrf.mxu0
      %v1388 = vadd.f32 0.0, %v1387
      %1389 = vmatmul.f32.gmra.mxu0 %v1278
      %v1390 = vpop.f32.mrf.mxu0
      %v1391 = vadd.f32 0.0, %v1390
      %1392 = vmatmul.f32.gmra.mxu0 %v1281
      %v1393 = vpop.f32.mrf.mxu0
      %v1394 = vadd.f32 0.0, %v1393
      %1395 = vmatmul.f32.gmra.mxu0 %v1284
      %v1396 = vpop.f32.mrf.mxu0
      %v1397 = vadd.f32 0.0, %v1396
      %1398 = vmatmul.f32.gmra.mxu0 %v1287
      %v1399 = vpop.f32.mrf.mxu0
      %v1400 = vadd.f32 0.0, %v1399
      %1401 = vmatmul.f32.gmra.mxu0 %v1290
      %v1402 = vpop.f32.mrf.mxu0
      %v1403 = vadd.f32 0.0, %v1402
      %1404 = vmatmul.f32.gmra.mxu0 %v1293
      %v1405 = vpop.f32.mrf.mxu0
      %v1406 = vadd.f32 0.0, %v1405
      %1407 = vmatmul.f32.gmra.mxu0 %v1296
      %v1408 = vpop.f32.mrf.mxu0
      %v1409 = vadd.f32 0.0, %v1408
      %1410 = vmatmul.f32.gmra.mxu0 %v1299
      %v1411 = vpop.f32.mrf.mxu0
      %v1412 = vadd.f32 0.0, %v1411
      %1413 = vmatmul.f32.gmra.mxu0 %v1302
      %v1414 = vpop.f32.mrf.mxu0
      %v1415 = vadd.f32 0.0, %v1414
      %1416 = vmatmul.f32.gmra.mxu0 %v1305
      %v1417 = vpop.f32.mrf.mxu0
      %v1418 = vadd.f32 0.0, %v1417
      %1419 = vmatmul.f32.gmra.mxu0 %v1308
      %v1420 = vpop.f32.mrf.mxu0
      %v1421 = vadd.f32 0.0, %v1420
      %1422 = vmatmul.f32.gmra.mxu0 %v1311
      %v1423 = vpop.f32.mrf.mxu0
      %v1424 = vadd.f32 0.0, %v1423
      %1425 = vmatmul.f32.gmra.mxu0 %v1314
      %v1426 = vpop.f32.mrf.mxu0
      %v1427 = vadd.f32 0.0, %v1426
      %1428 = vmatmul.f32.gmra.mxu0 %v1317
      %v1429 = vpop.f32.mrf.mxu0
      %v1430 = vadd.f32 0.0, %v1429
      %1431 = vmatmul.f32.gmra.mxu0 %v1320
      %v1432 = vpop.f32.mrf.mxu0
      %v1433 = vadd.f32 0.0, %v1432
      %1434 = vmatmul.f32.gmra.mxu0 %v1323
      %v1435 = vpop.f32.mrf.mxu0
      %v1436 = vadd.f32 0.0, %v1435
      %1437 = vmatmul.f32.gmra.mxu0 %v1326
      %v1438 = vpop.f32.mrf.mxu0
      %v1439 = vadd.f32 0.0, %v1438
      %1440 = vmatmul.f32.gmra.mxu0 %v1329
      %v1441 = vpop.f32.mrf.mxu0
      %v1442 = vadd.f32 0.0, %v1441
      %1443 = vmatmul.f32.gmra.mxu0 %v1332
      %v1444 = vpop.f32.mrf.mxu0
      %v1445 = vadd.f32 0.0, %v1444
      %1446 = vdwg.mxu0
      %v1447 = vadd.f32 %v1173, %v1352
      %v1448 = vadd.f32 %v1174, %v1355
      %v1449 = vadd.f32 %v1175, %v1358
      %v1450 = vadd.f32 %v1176, %v1361
      %v1451 = vadd.f32 %v1177, %v1364
      %v1452 = vadd.f32 %v1178, %v1367
      %v1453 = vadd.f32 %v1179, %v1370
      %v1454 = vadd.f32 %v1180, %v1373
      %v1455 = vadd.f32 %v1181, %v1376
      %v1456 = vadd.f32 %v1182, %v1379
      %v1457 = vadd.f32 %v1183, %v1382
      %v1458 = vadd.f32 %v1184, %v1385
      %v1459 = vadd.f32 %v1185, %v1388
      %v1460 = vadd.f32 %v1186, %v1391
      %v1461 = vadd.f32 %v1187, %v1394
      %v1462 = vadd.f32 %v1188, %v1397
      %v1463 = vadd.f32 %v1189, %v1400
      %v1464 = vadd.f32 %v1190, %v1403
      %v1465 = vadd.f32 %v1191, %v1406
      %v1466 = vadd.f32 %v1192, %v1409
      %v1467 = vadd.f32 %v1193, %v1412
      %v1468 = vadd.f32 %v1194, %v1415
      %v1469 = vadd.f32 %v1195, %v1418
      %v1470 = vadd.f32 %v1196, %v1421
      %v1471 = vadd.f32 %v1197, %v1424
      %v1472 = vadd.f32 %v1198, %v1427
      %v1473 = vadd.f32 %v1199, %v1430
      %v1474 = vadd.f32 %v1200, %v1433
      %v1475 = vadd.f32 %v1201, %v1436
      %v1476 = vadd.f32 %v1202, %v1439
      %v1477 = vadd.f32 %v1203, %v1442
      %v1478 = vadd.f32 %v1204, %v1445
      %v1479 = vld [vmem:[%s930 + $0x2] sm:$0xff]
      %v1480 = vld [vmem:[%s930 + $0xa] sm:$0xff]
      %v1481 = vld [vmem:[%s930 + $0x1a] sm:$0xff]
      %v1482 = vld [vmem:[%s930 + $0x22] sm:$0xff]
      %v1483 = vld [vmem:[%s930 + $0x32] sm:$0xff]
      %v1484 = vld [vmem:[%s930 + $0x3a] sm:$0xff]
      %v1485 = vld [vmem:[%s930 + $0x4a] sm:$0xff]
      %v1486 = vld [vmem:[%s930 + $0x52] sm:$0xff]
      %v1487 = vld [vmem:[%s930 + $0x62] sm:$0xff]
      %v1488 = vld [vmem:[%s930 + $0x6a] sm:$0xff]
      %v1489 = vld [vmem:[%s930 + $0x7a] sm:$0xff]
      %v1490 = vld [vmem:[%s930 + $0x82] sm:$0xff]
      %v1491 = vld [vmem:[%s930 + $0x92] sm:$0xff]
      %v1492 = vld [vmem:[%s930 + $0x9a] sm:$0xff]
      %v1493 = vld [vmem:[%s930 + $0xaa] sm:$0xff]
      %v1494 = vld [vmem:[%s930 + $0xb2] sm:$0xff]
      %v1495 = vld [vmem:[%s930 + $0xc2] sm:$0xff]
      %v1496 = vld [vmem:[%s930 + $0xca] sm:$0xff]
      %v1497 = vld [vmem:[%s930 + $0xda] sm:$0xff]
      %v1498 = vld [vmem:[%s930 + $0xe2] sm:$0xff]
      %v1499 = vld [vmem:[%s930 + $0xf2] sm:$0xff]
      %v1500 = vld [vmem:[%s930 + $0xfa] sm:$0xff]
      %v1501 = vld [vmem:[%s930 + $0x10a] sm:$0xff]
      %v1502 = vld [vmem:[%s930 + $0x112] sm:$0xff]
      %v1503 = vld [vmem:[%s930 + $0x122] sm:$0xff]
      %v1504 = vld [vmem:[%s930 + $0x12a] sm:$0xff]
      %v1505 = vld [vmem:[%s930 + $0x13a] sm:$0xff]
      %v1506 = vld [vmem:[%s930 + $0x142] sm:$0xff]
      %v1507 = vld [vmem:[%s930 + $0x152] sm:$0xff]
      %v1508 = vld [vmem:[%s930 + $0x15a] sm:$0xff]
      %v1509 = vld [vmem:[%s930 + $0x16a] sm:$0xff]
      %v1510 = vld [vmem:[%s930 + $0x172] sm:$0xff]
      %v1511 = vld [vmem:[%s1 + $0x28] sm:$0xff]
      %v1513 = vsel %vm237, %v1479, 0
      %v1516 = vsel %vm237, %v1480, 0
      %v1519 = vsel %vm237, %v1481, 0
      %v1522 = vsel %vm237, %v1482, 0
      %v1525 = vsel %vm237, %v1483, 0
      %v1528 = vsel %vm237, %v1484, 0
      %v1531 = vsel %vm237, %v1485, 0
      %v1534 = vsel %vm237, %v1486, 0
      %v1537 = vsel %vm237, %v1487, 0
      %v1540 = vsel %vm237, %v1488, 0
      %v1543 = vsel %vm237, %v1489, 0
      %v1546 = vsel %vm237, %v1490, 0
      %v1549 = vsel %vm237, %v1491, 0
      %v1552 = vsel %vm237, %v1492, 0
      %v1555 = vsel %vm237, %v1493, 0
      %v1558 = vsel %vm237, %v1494, 0
      %v1561 = vsel %vm237, %v1495, 0
      %v1564 = vsel %vm237, %v1496, 0
      %v1567 = vsel %vm237, %v1497, 0
      %v1570 = vsel %vm237, %v1498, 0
      %v1573 = vsel %vm237, %v1499, 0
      %v1576 = vsel %vm237, %v1500, 0
      %v1579 = vsel %vm237, %v1501, 0
      %v1582 = vsel %vm237, %v1502, 0
      %v1585 = vsel %vm237, %v1503, 0
      %v1588 = vsel %vm237, %v1504, 0
      %v1591 = vsel %vm237, %v1505, 0
      %v1594 = vsel %vm237, %v1506, 0
      %v1597 = vsel %vm237, %v1507, 0
      %v1600 = vsel %vm237, %v1508, 0
      %v1603 = vsel %vm237, %v1509, 0
      %v1606 = vsel %vm237, %v1510, 0
      %1608 = vmatpush.msra.mxu0 0.0
      %1609 = vmatpush.msra.mxu0 0.0
      %1610 = vmatpush.msra.mxu0 0.0
      %1611 = vmatpush.msra.mxu0 0.0
      %1612 = vmatpush.msra.mxu0 0.0
      %1613 = vmatpush.msra.mxu0 0.0
      %1614 = vmatpush.msra.mxu0 0.0
      %1615 = vmatpush.msra.mxu0 0.0
      %1616 = vmatpush.msra.mxu0 0.0
      %1617 = vmatpush.msra.mxu0 0.0
      %1618 = vmatpush.msra.mxu0 0.0
      %1619 = vmatpush.msra.mxu0 0.0
      %1620 = vmatpush.msra.mxu0 0.0
      %1621 = vmatpush.msra.mxu0 0.0
      %1622 = vmatpush.msra.mxu0 0.0
      %1623 = vmatpush.msra.mxu0 %v1511
      %1624 = vmatmul.f32.gmra.mxu0 %v1513
      %v1625 = vpop.f32.mrf.mxu0
      %v1626 = vadd.f32 0.0, %v1625
      %1627 = vmatmul.f32.gmra.mxu0 %v1516
      %v1628 = vpop.f32.mrf.mxu0
      %v1629 = vadd.f32 0.0, %v1628
      %1630 = vmatmul.f32.gmra.mxu0 %v1519
      %v1631 = vpop.f32.mrf.mxu0
      %v1632 = vadd.f32 0.0, %v1631
      %1633 = vmatmul.f32.gmra.mxu0 %v1522
      %v1634 = vpop.f32.mrf.mxu0
      %v1635 = vadd.f32 0.0, %v1634
      %1636 = vmatmul.f32.gmra.mxu0 %v1525
      %v1637 = vpop.f32.mrf.mxu0
      %v1638 = vadd.f32 0.0, %v1637
      %1639 = vmatmul.f32.gmra.mxu0 %v1528
      %v1640 = vpop.f32.mrf.mxu0
      %v1641 = vadd.f32 0.0, %v1640
      %1642 = vmatmul.f32.gmra.mxu0 %v1531
      %v1643 = vpop.f32.mrf.mxu0
      %v1644 = vadd.f32 0.0, %v1643
      %1645 = vmatmul.f32.gmra.mxu0 %v1534
      %v1646 = vpop.f32.mrf.mxu0
      %v1647 = vadd.f32 0.0, %v1646
      %1648 = vmatmul.f32.gmra.mxu0 %v1537
      %v1649 = vpop.f32.mrf.mxu0
      %v1650 = vadd.f32 0.0, %v1649
      %1651 = vmatmul.f32.gmra.mxu0 %v1540
      %v1652 = vpop.f32.mrf.mxu0
      %v1653 = vadd.f32 0.0, %v1652
      %1654 = vmatmul.f32.gmra.mxu0 %v1543
      %v1655 = vpop.f32.mrf.mxu0
      %v1656 = vadd.f32 0.0, %v1655
      %1657 = vmatmul.f32.gmra.mxu0 %v1546
      %v1658 = vpop.f32.mrf.mxu0
      %v1659 = vadd.f32 0.0, %v1658
      %1660 = vmatmul.f32.gmra.mxu0 %v1549
      %v1661 = vpop.f32.mrf.mxu0
      %v1662 = vadd.f32 0.0, %v1661
      %1663 = vmatmul.f32.gmra.mxu0 %v1552
      %v1664 = vpop.f32.mrf.mxu0
      %v1665 = vadd.f32 0.0, %v1664
      %1666 = vmatmul.f32.gmra.mxu0 %v1555
      %v1667 = vpop.f32.mrf.mxu0
      %v1668 = vadd.f32 0.0, %v1667
      %1669 = vmatmul.f32.gmra.mxu0 %v1558
      %v1670 = vpop.f32.mrf.mxu0
      %v1671 = vadd.f32 0.0, %v1670
      %1672 = vmatmul.f32.gmra.mxu0 %v1561
      %v1673 = vpop.f32.mrf.mxu0
      %v1674 = vadd.f32 0.0, %v1673
      %1675 = vmatmul.f32.gmra.mxu0 %v1564
      %v1676 = vpop.f32.mrf.mxu0
      %v1677 = vadd.f32 0.0, %v1676
      %1678 = vmatmul.f32.gmra.mxu0 %v1567
      %v1679 = vpop.f32.mrf.mxu0
      %v1680 = vadd.f32 0.0, %v1679
      %1681 = vmatmul.f32.gmra.mxu0 %v1570
      %v1682 = vpop.f32.mrf.mxu0
      %v1683 = vadd.f32 0.0, %v1682
      %1684 = vmatmul.f32.gmra.mxu0 %v1573
      %v1685 = vpop.f32.mrf.mxu0
      %v1686 = vadd.f32 0.0, %v1685
      %1687 = vmatmul.f32.gmra.mxu0 %v1576
      %v1688 = vpop.f32.mrf.mxu0
      %v1689 = vadd.f32 0.0, %v1688
      %1690 = vmatmul.f32.gmra.mxu0 %v1579
      %v1691 = vpop.f32.mrf.mxu0
      %v1692 = vadd.f32 0.0, %v1691
      %1693 = vmatmul.f32.gmra.mxu0 %v1582
      %v1694 = vpop.f32.mrf.mxu0
      %v1695 = vadd.f32 0.0, %v1694
      %1696 = vmatmul.f32.gmra.mxu0 %v1585
      %v1697 = vpop.f32.mrf.mxu0
      %v1698 = vadd.f32 0.0, %v1697
      %1699 = vmatmul.f32.gmra.mxu0 %v1588
      %v1700 = vpop.f32.mrf.mxu0
      %v1701 = vadd.f32 0.0, %v1700
      %1702 = vmatmul.f32.gmra.mxu0 %v1591
      %v1703 = vpop.f32.mrf.mxu0
      %v1704 = vadd.f32 0.0, %v1703
      %1705 = vmatmul.f32.gmra.mxu0 %v1594
      %v1706 = vpop.f32.mrf.mxu0
      %v1707 = vadd.f32 0.0, %v1706
      %1708 = vmatmul.f32.gmra.mxu0 %v1597
      %v1709 = vpop.f32.mrf.mxu0
      %v1710 = vadd.f32 0.0, %v1709
      %1711 = vmatmul.f32.gmra.mxu0 %v1600
      %v1712 = vpop.f32.mrf.mxu0
      %v1713 = vadd.f32 0.0, %v1712
      %1714 = vmatmul.f32.gmra.mxu0 %v1603
      %v1715 = vpop.f32.mrf.mxu0
      %v1716 = vadd.f32 0.0, %v1715
      %1717 = vmatmul.f32.gmra.mxu0 %v1606
      %v1718 = vpop.f32.mrf.mxu0
      %v1719 = vadd.f32 0.0, %v1718
      %1720 = vdwg.mxu0
      %v1721 = vadd.f32 %v1447, %v1626
      %v1722 = vadd.f32 %v1448, %v1629
      %v1723 = vadd.f32 %v1449, %v1632
      %v1724 = vadd.f32 %v1450, %v1635
      %v1725 = vadd.f32 %v1451, %v1638
      %v1726 = vadd.f32 %v1452, %v1641
      %v1727 = vadd.f32 %v1453, %v1644
      %v1728 = vadd.f32 %v1454, %v1647
      %v1729 = vadd.f32 %v1455, %v1650
      %v1730 = vadd.f32 %v1456, %v1653
      %v1731 = vadd.f32 %v1457, %v1656
      %v1732 = vadd.f32 %v1458, %v1659
      %v1733 = vadd.f32 %v1459, %v1662
      %v1734 = vadd.f32 %v1460, %v1665
      %v1735 = vadd.f32 %v1461, %v1668
      %v1736 = vadd.f32 %v1462, %v1671
      %v1737 = vadd.f32 %v1463, %v1674
      %v1738 = vadd.f32 %v1464, %v1677
      %v1739 = vadd.f32 %v1465, %v1680
      %v1740 = vadd.f32 %v1466, %v1683
      %v1741 = vadd.f32 %v1467, %v1686
      %v1742 = vadd.f32 %v1468, %v1689
      %v1743 = vadd.f32 %v1469, %v1692
      %v1744 = vadd.f32 %v1470, %v1695
      %v1745 = vadd.f32 %v1471, %v1698
      %v1746 = vadd.f32 %v1472, %v1701
      %v1747 = vadd.f32 %v1473, %v1704
      %v1748 = vadd.f32 %v1474, %v1707
      %v1749 = vadd.f32 %v1475, %v1710
      %v1750 = vadd.f32 %v1476, %v1713
      %v1751 = vadd.f32 %v1477, %v1716
      %v1752 = vadd.f32 %v1478, %v1719
      %s1753 = scalar_lea.vmem %s165, 48
      %v1754 = vld [vmem:[%s1753] sm:$0xff]
      %v1755 = vld [vmem:[%s1753 + $0x8] sm:$0xff]
      %v1756 = vld [vmem:[%s1753 + $0x18] sm:$0xff]
      %v1757 = vld [vmem:[%s1753 + $0x20] sm:$0xff]
      %v1758 = vld [vmem:[%s1753 + $0x30] sm:$0xff]
      %v1759 = vld [vmem:[%s1753 + $0x38] sm:$0xff]
      %v1760 = vld [vmem:[%s1753 + $0x48] sm:$0xff]
      %v1761 = vld [vmem:[%s1753 + $0x50] sm:$0xff]
      %v1762 = vld [vmem:[%s1753 + $0x60] sm:$0xff]
      %v1763 = vld [vmem:[%s1753 + $0x68] sm:$0xff]
      %v1764 = vld [vmem:[%s1753 + $0x78] sm:$0xff]
      %v1765 = vld [vmem:[%s1753 + $0x80] sm:$0xff]
      %v1766 = vld [vmem:[%s1753 + $0x90] sm:$0xff]
      %v1767 = vld [vmem:[%s1753 + $0x98] sm:$0xff]
      %v1768 = vld [vmem:[%s1753 + $0xa8] sm:$0xff]
      %v1769 = vld [vmem:[%s1753 + $0xb0] sm:$0xff]
      %v1770 = vld [vmem:[%s1753 + $0xc0] sm:$0xff]
      %v1771 = vld [vmem:[%s1753 + $0xc8] sm:$0xff]
      %v1772 = vld [vmem:[%s1753 + $0xd8] sm:$0xff]
      %v1773 = vld [vmem:[%s1753 + $0xe0] sm:$0xff]
      %v1774 = vld [vmem:[%s1753 + $0xf0] sm:$0xff]
      %v1775 = vld [vmem:[%s1753 + $0xf8] sm:$0xff]
      %v1776 = vld [vmem:[%s1753 + $0x108] sm:$0xff]
      %v1777 = vld [vmem:[%s1753 + $0x110] sm:$0xff]
      %v1778 = vld [vmem:[%s1753 + $0x120] sm:$0xff]
      %v1779 = vld [vmem:[%s1753 + $0x128] sm:$0xff]
      %v1780 = vld [vmem:[%s1753 + $0x138] sm:$0xff]
      %v1781 = vld [vmem:[%s1753 + $0x140] sm:$0xff]
      %v1782 = vld [vmem:[%s1753 + $0x150] sm:$0xff]
      %v1783 = vld [vmem:[%s1753 + $0x158] sm:$0xff]
      %v1784 = vld [vmem:[%s1753 + $0x168] sm:$0xff]
      %v1785 = vld [vmem:[%s1753 + $0x170] sm:$0xff]
      %v1786 = vld [vmem:[%s1 + $0x30] sm:$0xff]
      %v1788 = vsel %vm237, %v1754, 0
      %v1791 = vsel %vm237, %v1755, 0
      %v1794 = vsel %vm237, %v1756, 0
      %v1797 = vsel %vm237, %v1757, 0
      %v1800 = vsel %vm237, %v1758, 0
      %v1803 = vsel %vm237, %v1759, 0
      %v1806 = vsel %vm237, %v1760, 0
      %v1809 = vsel %vm237, %v1761, 0
      %v1812 = vsel %vm237, %v1762, 0
      %v1815 = vsel %vm237, %v1763, 0
      %v1818 = vsel %vm237, %v1764, 0
      %v1821 = vsel %vm237, %v1765, 0
      %v1824 = vsel %vm237, %v1766, 0
      %v1827 = vsel %vm237, %v1767, 0
      %v1830 = vsel %vm237, %v1768, 0
      %v1833 = vsel %vm237, %v1769, 0
      %v1836 = vsel %vm237, %v1770, 0
      %v1839 = vsel %vm237, %v1771, 0
      %v1842 = vsel %vm237, %v1772, 0
      %v1845 = vsel %vm237, %v1773, 0
      %v1848 = vsel %vm237, %v1774, 0
      %v1851 = vsel %vm237, %v1775, 0
      %v1854 = vsel %vm237, %v1776, 0
      %v1857 = vsel %vm237, %v1777, 0
      %v1860 = vsel %vm237, %v1778, 0
      %v1863 = vsel %vm237, %v1779, 0
      %v1866 = vsel %vm237, %v1780, 0
      %v1869 = vsel %vm237, %v1781, 0
      %v1872 = vsel %vm237, %v1782, 0
      %v1875 = vsel %vm237, %v1783, 0
      %v1878 = vsel %vm237, %v1784, 0
      %v1881 = vsel %vm237, %v1785, 0
      %1883 = vmatpush.msra.mxu0 0.0
      %1884 = vmatpush.msra.mxu0 0.0
      %1885 = vmatpush.msra.mxu0 0.0
      %1886 = vmatpush.msra.mxu0 0.0
      %1887 = vmatpush.msra.mxu0 0.0
      %1888 = vmatpush.msra.mxu0 0.0
      %1889 = vmatpush.msra.mxu0 0.0
      %1890 = vmatpush.msra.mxu0 0.0
      %1891 = vmatpush.msra.mxu0 0.0
      %1892 = vmatpush.msra.mxu0 0.0
      %1893 = vmatpush.msra.mxu0 0.0
      %1894 = vmatpush.msra.mxu0 0.0
      %1895 = vmatpush.msra.mxu0 0.0
      %1896 = vmatpush.msra.mxu0 0.0
      %1897 = vmatpush.msra.mxu0 0.0
      %1898 = vmatpush.msra.mxu0 %v1786
      %1899 = vmatmul.f32.gmra.mxu0 %v1788
      %v1900 = vpop.f32.mrf.mxu0
      %v1901 = vadd.f32 0.0, %v1900
      %1902 = vmatmul.f32.gmra.mxu0 %v1791
      %v1903 = vpop.f32.mrf.mxu0
      %v1904 = vadd.f32 0.0, %v1903
      %1905 = vmatmul.f32.gmra.mxu0 %v1794
      %v1906 = vpop.f32.mrf.mxu0
      %v1907 = vadd.f32 0.0, %v1906
      %1908 = vmatmul.f32.gmra.mxu0 %v1797
      %v1909 = vpop.f32.mrf.mxu0
      %v1910 = vadd.f32 0.0, %v1909
      %1911 = vmatmul.f32.gmra.mxu0 %v1800
      %v1912 = vpop.f32.mrf.mxu0
      %v1913 = vadd.f32 0.0, %v1912
      %1914 = vmatmul.f32.gmra.mxu0 %v1803
      %v1915 = vpop.f32.mrf.mxu0
      %v1916 = vadd.f32 0.0, %v1915
      %1917 = vmatmul.f32.gmra.mxu0 %v1806
      %v1918 = vpop.f32.mrf.mxu0
      %v1919 = vadd.f32 0.0, %v1918
      %1920 = vmatmul.f32.gmra.mxu0 %v1809
      %v1921 = vpop.f32.mrf.mxu0
      %v1922 = vadd.f32 0.0, %v1921
      %1923 = vmatmul.f32.gmra.mxu0 %v1812
      %v1924 = vpop.f32.mrf.mxu0
      %v1925 = vadd.f32 0.0, %v1924
      %1926 = vmatmul.f32.gmra.mxu0 %v1815
      %v1927 = vpop.f32.mrf.mxu0
      %v1928 = vadd.f32 0.0, %v1927
      %1929 = vmatmul.f32.gmra.mxu0 %v1818
      %v1930 = vpop.f32.mrf.mxu0
      %v1931 = vadd.f32 0.0, %v1930
      %1932 = vmatmul.f32.gmra.mxu0 %v1821
      %v1933 = vpop.f32.mrf.mxu0
      %v1934 = vadd.f32 0.0, %v1933
      %1935 = vmatmul.f32.gmra.mxu0 %v1824
      %v1936 = vpop.f32.mrf.mxu0
      %v1937 = vadd.f32 0.0, %v1936
      %1938 = vmatmul.f32.gmra.mxu0 %v1827
      %v1939 = vpop.f32.mrf.mxu0
      %v1940 = vadd.f32 0.0, %v1939
      %1941 = vmatmul.f32.gmra.mxu0 %v1830
      %v1942 = vpop.f32.mrf.mxu0
      %v1943 = vadd.f32 0.0, %v1942
      %1944 = vmatmul.f32.gmra.mxu0 %v1833
      %v1945 = vpop.f32.mrf.mxu0
      %v1946 = vadd.f32 0.0, %v1945
      %1947 = vmatmul.f32.gmra.mxu0 %v1836
      %v1948 = vpop.f32.mrf.mxu0
      %v1949 = vadd.f32 0.0, %v1948
      %1950 = vmatmul.f32.gmra.mxu0 %v1839
      %v1951 = vpop.f32.mrf.mxu0
      %v1952 = vadd.f32 0.0, %v1951
      %1953 = vmatmul.f32.gmra.mxu0 %v1842
      %v1954 = vpop.f32.mrf.mxu0
      %v1955 = vadd.f32 0.0, %v1954
      %1956 = vmatmul.f32.gmra.mxu0 %v1845
      %v1957 = vpop.f32.mrf.mxu0
      %v1958 = vadd.f32 0.0, %v1957
      %1959 = vmatmul.f32.gmra.mxu0 %v1848
      %v1960 = vpop.f32.mrf.mxu0
      %v1961 = vadd.f32 0.0, %v1960
      %1962 = vmatmul.f32.gmra.mxu0 %v1851
      %v1963 = vpop.f32.mrf.mxu0
      %v1964 = vadd.f32 0.0, %v1963
      %1965 = vmatmul.f32.gmra.mxu0 %v1854
      %v1966 = vpop.f32.mrf.mxu0
      %v1967 = vadd.f32 0.0, %v1966
      %1968 = vmatmul.f32.gmra.mxu0 %v1857
      %v1969 = vpop.f32.mrf.mxu0
      %v1970 = vadd.f32 0.0, %v1969
      %1971 = vmatmul.f32.gmra.mxu0 %v1860
      %v1972 = vpop.f32.mrf.mxu0
      %v1973 = vadd.f32 0.0, %v1972
      %1974 = vmatmul.f32.gmra.mxu0 %v1863
      %v1975 = vpop.f32.mrf.mxu0
      %v1976 = vadd.f32 0.0, %v1975
      %1977 = vmatmul.f32.gmra.mxu0 %v1866
      %v1978 = vpop.f32.mrf.mxu0
      %v1979 = vadd.f32 0.0, %v1978
      %1980 = vmatmul.f32.gmra.mxu0 %v1869
      %v1981 = vpop.f32.mrf.mxu0
      %v1982 = vadd.f32 0.0, %v1981
      %1983 = vmatmul.f32.gmra.mxu0 %v1872
      %v1984 = vpop.f32.mrf.mxu0
      %v1985 = vadd.f32 0.0, %v1984
      %1986 = vmatmul.f32.gmra.mxu0 %v1875
      %v1987 = vpop.f32.mrf.mxu0
      %v1988 = vadd.f32 0.0, %v1987
      %1989 = vmatmul.f32.gmra.mxu0 %v1878
      %v1990 = vpop.f32.mrf.mxu0
      %v1991 = vadd.f32 0.0, %v1990
      %1992 = vmatmul.f32.gmra.mxu0 %v1881
      %v1993 = vpop.f32.mrf.mxu0
      %v1994 = vadd.f32 0.0, %v1993
      %1995 = vdwg.mxu0
      %v1996 = vadd.f32 %v1721, %v1901
      %v1997 = vadd.f32 %v1722, %v1904
      %v1998 = vadd.f32 %v1723, %v1907
      %v1999 = vadd.f32 %v1724, %v1910
      %v2000 = vadd.f32 %v1725, %v1913
      %v2001 = vadd.f32 %v1726, %v1916
      %v2002 = vadd.f32 %v1727, %v1919
      %v2003 = vadd.f32 %v1728, %v1922
      %v2004 = vadd.f32 %v1729, %v1925
      %v2005 = vadd.f32 %v1730, %v1928
      %v2006 = vadd.f32 %v1731, %v1931
      %v2007 = vadd.f32 %v1732, %v1934
      %v2008 = vadd.f32 %v1733, %v1937
      %v2009 = vadd.f32 %v1734, %v1940
      %v2010 = vadd.f32 %v1735, %v1943
      %v2011 = vadd.f32 %v1736, %v1946
      %v2012 = vadd.f32 %v1737, %v1949
      %v2013 = vadd.f32 %v1738, %v1952
      %v2014 = vadd.f32 %v1739, %v1955
      %v2015 = vadd.f32 %v1740, %v1958
      %v2016 = vadd.f32 %v1741, %v1961
      %v2017 = vadd.f32 %v1742, %v1964
      %v2018 = vadd.f32 %v1743, %v1967
      %v2019 = vadd.f32 %v1744, %v1970
      %v2020 = vadd.f32 %v1745, %v1973
      %v2021 = vadd.f32 %v1746, %v1976
      %v2022 = vadd.f32 %v1747, %v1979
      %v2023 = vadd.f32 %v1748, %v1982
      %v2024 = vadd.f32 %v1749, %v1985
      %v2025 = vadd.f32 %v1750, %v1988
      %v2026 = vadd.f32 %v1751, %v1991
      %v2027 = vadd.f32 %v1752, %v1994
      %v2028 = vld [vmem:[%s1753 + $0x1] sm:$0xff]
      %v2029 = vld [vmem:[%s1753 + $0x9] sm:$0xff]
      %v2030 = vld [vmem:[%s1753 + $0x19] sm:$0xff]
      %v2031 = vld [vmem:[%s1753 + $0x21] sm:$0xff]
      %v2032 = vld [vmem:[%s1753 + $0x31] sm:$0xff]
      %v2033 = vld [vmem:[%s1753 + $0x39] sm:$0xff]
      %v2034 = vld [vmem:[%s1753 + $0x49] sm:$0xff]
      %v2035 = vld [vmem:[%s1753 + $0x51] sm:$0xff]
      %v2036 = vld [vmem:[%s1753 + $0x61] sm:$0xff]
      %v2037 = vld [vmem:[%s1753 + $0x69] sm:$0xff]
      %v2038 = vld [vmem:[%s1753 + $0x79] sm:$0xff]
      %v2039 = vld [vmem:[%s1753 + $0x81] sm:$0xff]
      %v2040 = vld [vmem:[%s1753 + $0x91] sm:$0xff]
      %v2041 = vld [vmem:[%s1753 + $0x99] sm:$0xff]
      %v2042 = vld [vmem:[%s1753 + $0xa9] sm:$0xff]
      %v2043 = vld [vmem:[%s1753 + $0xb1] sm:$0xff]
      %v2044 = vld [vmem:[%s1753 + $0xc1] sm:$0xff]
      %v2045 = vld [vmem:[%s1753 + $0xc9] sm:$0xff]
      %v2046 = vld [vmem:[%s1753 + $0xd9] sm:$0xff]
      %v2047 = vld [vmem:[%s1753 + $0xe1] sm:$0xff]
      %v2048 = vld [vmem:[%s1753 + $0xf1] sm:$0xff]
      %v2049 = vld [vmem:[%s1753 + $0xf9] sm:$0xff]
      %v2050 = vld [vmem:[%s1753 + $0x109] sm:$0xff]
      %v2051 = vld [vmem:[%s1753 + $0x111] sm:$0xff]
      %v2052 = vld [vmem:[%s1753 + $0x121] sm:$0xff]
      %v2053 = vld [vmem:[%s1753 + $0x129] sm:$0xff]
      %v2054 = vld [vmem:[%s1753 + $0x139] sm:$0xff]
      %v2055 = vld [vmem:[%s1753 + $0x141] sm:$0xff]
      %v2056 = vld [vmem:[%s1753 + $0x151] sm:$0xff]
      %v2057 = vld [vmem:[%s1753 + $0x159] sm:$0xff]
      %v2058 = vld [vmem:[%s1753 + $0x169] sm:$0xff]
      %v2059 = vld [vmem:[%s1753 + $0x171] sm:$0xff]
      %v2060 = vld [vmem:[%s1 + $0x38] sm:$0xff]
      %v2062 = vsel %vm237, %v2028, 0
      %v2065 = vsel %vm237, %v2029, 0
      %v2068 = vsel %vm237, %v2030, 0
      %v2071 = vsel %vm237, %v2031, 0
      %v2074 = vsel %vm237, %v2032, 0
      %v2077 = vsel %vm237, %v2033, 0
      %v2080 = vsel %vm237, %v2034, 0
      %v2083 = vsel %vm237, %v2035, 0
      %v2086 = vsel %vm237, %v2036, 0
      %v2089 = vsel %vm237, %v2037, 0
      %v2092 = vsel %vm237, %v2038, 0
      %v2095 = vsel %vm237, %v2039, 0
      %v2098 = vsel %vm237, %v2040, 0
      %v2101 = vsel %vm237, %v2041, 0
      %v2104 = vsel %vm237, %v2042, 0
      %v2107 = vsel %vm237, %v2043, 0
      %v2110 = vsel %vm237, %v2044, 0
      %v2113 = vsel %vm237, %v2045, 0
      %v2116 = vsel %vm237, %v2046, 0
      %v2119 = vsel %vm237, %v2047, 0
      %v2122 = vsel %vm237, %v2048, 0
      %v2125 = vsel %vm237, %v2049, 0
      %v2128 = vsel %vm237, %v2050, 0
      %v2131 = vsel %vm237, %v2051, 0
      %v2134 = vsel %vm237, %v2052, 0
      %v2137 = vsel %vm237, %v2053, 0
      %v2140 = vsel %vm237, %v2054, 0
      %v2143 = vsel %vm237, %v2055, 0
      %v2146 = vsel %vm237, %v2056, 0
      %v2149 = vsel %vm237, %v2057, 0
      %v2152 = vsel %vm237, %v2058, 0
      %v2155 = vsel %vm237, %v2059, 0
      %2157 = vmatpush.msra.mxu0 0.0
      %2158 = vmatpush.msra.mxu0 0.0
      %2159 = vmatpush.msra.mxu0 0.0
      %2160 = vmatpush.msra.mxu0 0.0
      %2161 = vmatpush.msra.mxu0 0.0
      %2162 = vmatpush.msra.mxu0 0.0
      %2163 = vmatpush.msra.mxu0 0.0
      %2164 = vmatpush.msra.mxu0 0.0
      %2165 = vmatpush.msra.mxu0 0.0
      %2166 = vmatpush.msra.mxu0 0.0
      %2167 = vmatpush.msra.mxu0 0.0
      %2168 = vmatpush.msra.mxu0 0.0
      %2169 = vmatpush.msra.mxu0 0.0
      %2170 = vmatpush.msra.mxu0 0.0
      %2171 = vmatpush.msra.mxu0 0.0
      %2172 = vmatpush.msra.mxu0 %v2060
      %2173 = vmatmul.f32.gmra.mxu0 %v2062
      %v2174 = vpop.f32.mrf.mxu0
      %v2175 = vadd.f32 0.0, %v2174
      %2176 = vmatmul.f32.gmra.mxu0 %v2065
      %v2177 = vpop.f32.mrf.mxu0
      %v2178 = vadd.f32 0.0, %v2177
      %2179 = vmatmul.f32.gmra.mxu0 %v2068
      %v2180 = vpop.f32.mrf.mxu0
      %v2181 = vadd.f32 0.0, %v2180
      %2182 = vmatmul.f32.gmra.mxu0 %v2071
      %v2183 = vpop.f32.mrf.mxu0
      %v2184 = vadd.f32 0.0, %v2183
      %2185 = vmatmul.f32.gmra.mxu0 %v2074
      %v2186 = vpop.f32.mrf.mxu0
      %v2187 = vadd.f32 0.0, %v2186
      %2188 = vmatmul.f32.gmra.mxu0 %v2077
      %v2189 = vpop.f32.mrf.mxu0
      %v2190 = vadd.f32 0.0, %v2189
      %2191 = vmatmul.f32.gmra.mxu0 %v2080
      %v2192 = vpop.f32.mrf.mxu0
      %v2193 = vadd.f32 0.0, %v2192
      %2194 = vmatmul.f32.gmra.mxu0 %v2083
      %v2195 = vpop.f32.mrf.mxu0
      %v2196 = vadd.f32 0.0, %v2195
      %2197 = vmatmul.f32.gmra.mxu0 %v2086
      %v2198 = vpop.f32.mrf.mxu0
      %v2199 = vadd.f32 0.0, %v2198
      %2200 = vmatmul.f32.gmra.mxu0 %v2089
      %v2201 = vpop.f32.mrf.mxu0
      %v2202 = vadd.f32 0.0, %v2201
      %2203 = vmatmul.f32.gmra.mxu0 %v2092
      %v2204 = vpop.f32.mrf.mxu0
      %v2205 = vadd.f32 0.0, %v2204
      %2206 = vmatmul.f32.gmra.mxu0 %v2095
      %v2207 = vpop.f32.mrf.mxu0
      %v2208 = vadd.f32 0.0, %v2207
      %2209 = vmatmul.f32.gmra.mxu0 %v2098
      %v2210 = vpop.f32.mrf.mxu0
      %v2211 = vadd.f32 0.0, %v2210
      %2212 = vmatmul.f32.gmra.mxu0 %v2101
      %v2213 = vpop.f32.mrf.mxu0
      %v2214 = vadd.f32 0.0, %v2213
      %2215 = vmatmul.f32.gmra.mxu0 %v2104
      %v2216 = vpop.f32.mrf.mxu0
      %v2217 = vadd.f32 0.0, %v2216
      %2218 = vmatmul.f32.gmra.mxu0 %v2107
      %v2219 = vpop.f32.mrf.mxu0
      %v2220 = vadd.f32 0.0, %v2219
      %2221 = vmatmul.f32.gmra.mxu0 %v2110
      %v2222 = vpop.f32.mrf.mxu0
      %v2223 = vadd.f32 0.0, %v2222
      %2224 = vmatmul.f32.gmra.mxu0 %v2113
      %v2225 = vpop.f32.mrf.mxu0
      %v2226 = vadd.f32 0.0, %v2225
      %2227 = vmatmul.f32.gmra.mxu0 %v2116
      %v2228 = vpop.f32.mrf.mxu0
      %v2229 = vadd.f32 0.0, %v2228
      %2230 = vmatmul.f32.gmra.mxu0 %v2119
      %v2231 = vpop.f32.mrf.mxu0
      %v2232 = vadd.f32 0.0, %v2231
      %2233 = vmatmul.f32.gmra.mxu0 %v2122
      %v2234 = vpop.f32.mrf.mxu0
      %v2235 = vadd.f32 0.0, %v2234
      %2236 = vmatmul.f32.gmra.mxu0 %v2125
      %v2237 = vpop.f32.mrf.mxu0
      %v2238 = vadd.f32 0.0, %v2237
      %2239 = vmatmul.f32.gmra.mxu0 %v2128
      %v2240 = vpop.f32.mrf.mxu0
      %v2241 = vadd.f32 0.0, %v2240
      %2242 = vmatmul.f32.gmra.mxu0 %v2131
      %v2243 = vpop.f32.mrf.mxu0
      %v2244 = vadd.f32 0.0, %v2243
      %2245 = vmatmul.f32.gmra.mxu0 %v2134
      %v2246 = vpop.f32.mrf.mxu0
      %v2247 = vadd.f32 0.0, %v2246
      %2248 = vmatmul.f32.gmra.mxu0 %v2137
      %v2249 = vpop.f32.mrf.mxu0
      %v2250 = vadd.f32 0.0, %v2249
      %2251 = vmatmul.f32.gmra.mxu0 %v2140
      %v2252 = vpop.f32.mrf.mxu0
      %v2253 = vadd.f32 0.0, %v2252
      %2254 = vmatmul.f32.gmra.mxu0 %v2143
      %v2255 = vpop.f32.mrf.mxu0
      %v2256 = vadd.f32 0.0, %v2255
      %2257 = vmatmul.f32.gmra.mxu0 %v2146
      %v2258 = vpop.f32.mrf.mxu0
      %v2259 = vadd.f32 0.0, %v2258
      %2260 = vmatmul.f32.gmra.mxu0 %v2149
      %v2261 = vpop.f32.mrf.mxu0
      %v2262 = vadd.f32 0.0, %v2261
      %2263 = vmatmul.f32.gmra.mxu0 %v2152
      %v2264 = vpop.f32.mrf.mxu0
      %v2265 = vadd.f32 0.0, %v2264
      %2266 = vmatmul.f32.gmra.mxu0 %v2155
      %v2267 = vpop.f32.mrf.mxu0
      %v2268 = vadd.f32 0.0, %v2267
      %2269 = vdwg.mxu0
      %v2270 = vadd.f32 %v1996, %v2175
      %v2271 = vadd.f32 %v1997, %v2178
      %v2272 = vadd.f32 %v1998, %v2181
      %v2273 = vadd.f32 %v1999, %v2184
      %v2274 = vadd.f32 %v2000, %v2187
      %v2275 = vadd.f32 %v2001, %v2190
      %v2276 = vadd.f32 %v2002, %v2193
      %v2277 = vadd.f32 %v2003, %v2196
      %v2278 = vadd.f32 %v2004, %v2199
      %v2279 = vadd.f32 %v2005, %v2202
      %v2280 = vadd.f32 %v2006, %v2205
      %v2281 = vadd.f32 %v2007, %v2208
      %v2282 = vadd.f32 %v2008, %v2211
      %v2283 = vadd.f32 %v2009, %v2214
      %v2284 = vadd.f32 %v2010, %v2217
      %v2285 = vadd.f32 %v2011, %v2220
      %v2286 = vadd.f32 %v2012, %v2223
      %v2287 = vadd.f32 %v2013, %v2226
      %v2288 = vadd.f32 %v2014, %v2229
      %v2289 = vadd.f32 %v2015, %v2232
      %v2290 = vadd.f32 %v2016, %v2235
      %v2291 = vadd.f32 %v2017, %v2238
      %v2292 = vadd.f32 %v2018, %v2241
      %v2293 = vadd.f32 %v2019, %v2244
      %v2294 = vadd.f32 %v2020, %v2247
      %v2295 = vadd.f32 %v2021, %v2250
      %v2296 = vadd.f32 %v2022, %v2253
      %v2297 = vadd.f32 %v2023, %v2256
      %v2298 = vadd.f32 %v2024, %v2259
      %v2299 = vadd.f32 %v2025, %v2262
      %v2300 = vadd.f32 %v2026, %v2265
      %v2301 = vadd.f32 %v2027, %v2268
      %v2302 = vld [vmem:[%s1753 + $0x2] sm:$0xff]
      %v2303 = vld [vmem:[%s1753 + $0xa] sm:$0xff]
      %v2304 = vld [vmem:[%s1753 + $0x1a] sm:$0xff]
      %v2305 = vld [vmem:[%s1753 + $0x22] sm:$0xff]
      %v2306 = vld [vmem:[%s1753 + $0x32] sm:$0xff]
      %v2307 = vld [vmem:[%s1753 + $0x3a] sm:$0xff]
      %v2308 = vld [vmem:[%s1753 + $0x4a] sm:$0xff]
      %v2309 = vld [vmem:[%s1753 + $0x52] sm:$0xff]
      %v2310 = vld [vmem:[%s1753 + $0x62] sm:$0xff]
      %v2311 = vld [vmem:[%s1753 + $0x6a] sm:$0xff]
      %v2312 = vld [vmem:[%s1753 + $0x7a] sm:$0xff]
      %v2313 = vld [vmem:[%s1753 + $0x82] sm:$0xff]
      %v2314 = vld [vmem:[%s1753 + $0x92] sm:$0xff]
      %v2315 = vld [vmem:[%s1753 + $0x9a] sm:$0xff]
      %v2316 = vld [vmem:[%s1753 + $0xaa] sm:$0xff]
      %v2317 = vld [vmem:[%s1753 + $0xb2] sm:$0xff]
      %v2318 = vld [vmem:[%s1753 + $0xc2] sm:$0xff]
      %v2319 = vld [vmem:[%s1753 + $0xca] sm:$0xff]
      %v2320 = vld [vmem:[%s1753 + $0xda] sm:$0xff]
      %v2321 = vld [vmem:[%s1753 + $0xe2] sm:$0xff]
      %v2322 = vld [vmem:[%s1753 + $0xf2] sm:$0xff]
      %v2323 = vld [vmem:[%s1753 + $0xfa] sm:$0xff]
      %v2324 = vld [vmem:[%s1753 + $0x10a] sm:$0xff]
      %v2325 = vld [vmem:[%s1753 + $0x112] sm:$0xff]
      %v2326 = vld [vmem:[%s1753 + $0x122] sm:$0xff]
      %v2327 = vld [vmem:[%s1753 + $0x12a] sm:$0xff]
      %v2328 = vld [vmem:[%s1753 + $0x13a] sm:$0xff]
      %v2329 = vld [vmem:[%s1753 + $0x142] sm:$0xff]
      %v2330 = vld [vmem:[%s1753 + $0x152] sm:$0xff]
      %v2331 = vld [vmem:[%s1753 + $0x15a] sm:$0xff]
      %v2332 = vld [vmem:[%s1753 + $0x16a] sm:$0xff]
      %v2333 = vld [vmem:[%s1753 + $0x172] sm:$0xff]
      %v2334 = vld [vmem:[%s1 + $0x40] sm:$0xff]
      %v2336 = vsel %vm237, %v2302, 0
      %v2339 = vsel %vm237, %v2303, 0
      %v2342 = vsel %vm237, %v2304, 0
      %v2345 = vsel %vm237, %v2305, 0
      %v2348 = vsel %vm237, %v2306, 0
      %v2351 = vsel %vm237, %v2307, 0
      %v2354 = vsel %vm237, %v2308, 0
      %v2357 = vsel %vm237, %v2309, 0
      %v2360 = vsel %vm237, %v2310, 0
      %v2363 = vsel %vm237, %v2311, 0
      %v2366 = vsel %vm237, %v2312, 0
      %v2369 = vsel %vm237, %v2313, 0
      %v2372 = vsel %vm237, %v2314, 0
      %v2375 = vsel %vm237, %v2315, 0
      %v2378 = vsel %vm237, %v2316, 0
      %v2381 = vsel %vm237, %v2317, 0
      %v2384 = vsel %vm237, %v2318, 0
      %v2387 = vsel %vm237, %v2319, 0
      %v2390 = vsel %vm237, %v2320, 0
      %v2393 = vsel %vm237, %v2321, 0
      %v2396 = vsel %vm237, %v2322, 0
      %v2399 = vsel %vm237, %v2323, 0
      %v2402 = vsel %vm237, %v2324, 0
      %v2405 = vsel %vm237, %v2325, 0
      %v2408 = vsel %vm237, %v2326, 0
      %v2411 = vsel %vm237, %v2327, 0
      %v2414 = vsel %vm237, %v2328, 0
      %v2417 = vsel %vm237, %v2329, 0
      %v2420 = vsel %vm237, %v2330, 0
      %v2423 = vsel %vm237, %v2331, 0
      %v2426 = vsel %vm237, %v2332, 0
      %v2429 = vsel %vm237, %v2333, 0
      %2431 = vmatpush.msra.mxu0 0.0
      %2432 = vmatpush.msra.mxu0 0.0
      %2433 = vmatpush.msra.mxu0 0.0
      %2434 = vmatpush.msra.mxu0 0.0
      %2435 = vmatpush.msra.mxu0 0.0
      %2436 = vmatpush.msra.mxu0 0.0
      %2437 = vmatpush.msra.mxu0 0.0
      %2438 = vmatpush.msra.mxu0 0.0
      %2439 = vmatpush.msra.mxu0 0.0
      %2440 = vmatpush.msra.mxu0 0.0
      %2441 = vmatpush.msra.mxu0 0.0
      %2442 = vmatpush.msra.mxu0 0.0
      %2443 = vmatpush.msra.mxu0 0.0
      %2444 = vmatpush.msra.mxu0 0.0
      %2445 = vmatpush.msra.mxu0 0.0
      %2446 = vmatpush.msra.mxu0 %v2334
      %2447 = vmatmul.f32.gmra.mxu0 %v2336
      %v2448 = vpop.f32.mrf.mxu0
      %v2449 = vadd.f32 0.0, %v2448
      %2450 = vmatmul.f32.gmra.mxu0 %v2339
      %v2451 = vpop.f32.mrf.mxu0
      %v2452 = vadd.f32 0.0, %v2451
      %2453 = vmatmul.f32.gmra.mxu0 %v2342
      %v2454 = vpop.f32.mrf.mxu0
      %v2455 = vadd.f32 0.0, %v2454
      %2456 = vmatmul.f32.gmra.mxu0 %v2345
      %v2457 = vpop.f32.mrf.mxu0
      %v2458 = vadd.f32 0.0, %v2457
      %2459 = vmatmul.f32.gmra.mxu0 %v2348
      %v2460 = vpop.f32.mrf.mxu0
      %v2461 = vadd.f32 0.0, %v2460
      %2462 = vmatmul.f32.gmra.mxu0 %v2351
      %v2463 = vpop.f32.mrf.mxu0
      %v2464 = vadd.f32 0.0, %v2463
      %2465 = vmatmul.f32.gmra.mxu0 %v2354
      %v2466 = vpop.f32.mrf.mxu0
      %v2467 = vadd.f32 0.0, %v2466
      %2468 = vmatmul.f32.gmra.mxu0 %v2357
      %v2469 = vpop.f32.mrf.mxu0
      %v2470 = vadd.f32 0.0, %v2469
      %2471 = vmatmul.f32.gmra.mxu0 %v2360
      %v2472 = vpop.f32.mrf.mxu0
      %v2473 = vadd.f32 0.0, %v2472
      %2474 = vmatmul.f32.gmra.mxu0 %v2363
      %v2475 = vpop.f32.mrf.mxu0
      %v2476 = vadd.f32 0.0, %v2475
      %2477 = vmatmul.f32.gmra.mxu0 %v2366
      %v2478 = vpop.f32.mrf.mxu0
      %v2479 = vadd.f32 0.0, %v2478
      %2480 = vmatmul.f32.gmra.mxu0 %v2369
      %v2481 = vpop.f32.mrf.mxu0
      %v2482 = vadd.f32 0.0, %v2481
      %2483 = vmatmul.f32.gmra.mxu0 %v2372
      %v2484 = vpop.f32.mrf.mxu0
      %v2485 = vadd.f32 0.0, %v2484
      %2486 = vmatmul.f32.gmra.mxu0 %v2375
      %v2487 = vpop.f32.mrf.mxu0
      %v2488 = vadd.f32 0.0, %v2487
      %2489 = vmatmul.f32.gmra.mxu0 %v2378
      %v2490 = vpop.f32.mrf.mxu0
      %v2491 = vadd.f32 0.0, %v2490
      %2492 = vmatmul.f32.gmra.mxu0 %v2381
      %v2493 = vpop.f32.mrf.mxu0
      %v2494 = vadd.f32 0.0, %v2493
      %2495 = vmatmul.f32.gmra.mxu0 %v2384
      %v2496 = vpop.f32.mrf.mxu0
      %v2497 = vadd.f32 0.0, %v2496
      %2498 = vmatmul.f32.gmra.mxu0 %v2387
      %v2499 = vpop.f32.mrf.mxu0
      %v2500 = vadd.f32 0.0, %v2499
      %2501 = vmatmul.f32.gmra.mxu0 %v2390
      %v2502 = vpop.f32.mrf.mxu0
      %v2503 = vadd.f32 0.0, %v2502
      %2504 = vmatmul.f32.gmra.mxu0 %v2393
      %v2505 = vpop.f32.mrf.mxu0
      %v2506 = vadd.f32 0.0, %v2505
      %2507 = vmatmul.f32.gmra.mxu0 %v2396
      %v2508 = vpop.f32.mrf.mxu0
      %v2509 = vadd.f32 0.0, %v2508
      %2510 = vmatmul.f32.gmra.mxu0 %v2399
      %v2511 = vpop.f32.mrf.mxu0
      %v2512 = vadd.f32 0.0, %v2511
      %2513 = vmatmul.f32.gmra.mxu0 %v2402
      %v2514 = vpop.f32.mrf.mxu0
      %v2515 = vadd.f32 0.0, %v2514
      %2516 = vmatmul.f32.gmra.mxu0 %v2405
      %v2517 = vpop.f32.mrf.mxu0
      %v2518 = vadd.f32 0.0, %v2517
      %2519 = vmatmul.f32.gmra.mxu0 %v2408
      %v2520 = vpop.f32.mrf.mxu0
      %v2521 = vadd.f32 0.0, %v2520
      %2522 = vmatmul.f32.gmra.mxu0 %v2411
      %v2523 = vpop.f32.mrf.mxu0
      %v2524 = vadd.f32 0.0, %v2523
      %2525 = vmatmul.f32.gmra.mxu0 %v2414
      %v2526 = vpop.f32.mrf.mxu0
      %v2527 = vadd.f32 0.0, %v2526
      %2528 = vmatmul.f32.gmra.mxu0 %v2417
      %v2529 = vpop.f32.mrf.mxu0
      %v2530 = vadd.f32 0.0, %v2529
      %2531 = vmatmul.f32.gmra.mxu0 %v2420
      %v2532 = vpop.f32.mrf.mxu0
      %v2533 = vadd.f32 0.0, %v2532
      %2534 = vmatmul.f32.gmra.mxu0 %v2423
      %v2535 = vpop.f32.mrf.mxu0
      %v2536 = vadd.f32 0.0, %v2535
      %2537 = vmatmul.f32.gmra.mxu0 %v2426
      %v2538 = vpop.f32.mrf.mxu0
      %v2539 = vadd.f32 0.0, %v2538
      %2540 = vmatmul.f32.gmra.mxu0 %v2429
      %v2541 = vpop.f32.mrf.mxu0
      %v2542 = vadd.f32 0.0, %v2541
      %2543 = vdwg.mxu0
      %v2544 = vadd.f32 %v2270, %v2449
      %v2545 = vadd.f32 %v2271, %v2452
      %v2546 = vadd.f32 %v2272, %v2455
      %v2547 = vadd.f32 %v2273, %v2458
      %v2548 = vadd.f32 %v2274, %v2461
      %v2549 = vadd.f32 %v2275, %v2464
      %v2550 = vadd.f32 %v2276, %v2467
      %v2551 = vadd.f32 %v2277, %v2470
      %v2552 = vadd.f32 %v2278, %v2473
      %v2553 = vadd.f32 %v2279, %v2476
      %v2554 = vadd.f32 %v2280, %v2479
      %v2555 = vadd.f32 %v2281, %v2482
      %v2556 = vadd.f32 %v2282, %v2485
      %v2557 = vadd.f32 %v2283, %v2488
      %v2558 = vadd.f32 %v2284, %v2491
      %v2559 = vadd.f32 %v2285, %v2494
      %v2560 = vadd.f32 %v2286, %v2497
      %v2561 = vadd.f32 %v2287, %v2500
      %v2562 = vadd.f32 %v2288, %v2503
      %v2563 = vadd.f32 %v2289, %v2506
      %v2564 = vadd.f32 %v2290, %v2509
      %v2565 = vadd.f32 %v2291, %v2512
      %v2566 = vadd.f32 %v2292, %v2515
      %v2567 = vadd.f32 %v2293, %v2518
      %v2568 = vadd.f32 %v2294, %v2521
      %v2569 = vadd.f32 %v2295, %v2524
      %v2570 = vadd.f32 %v2296, %v2527
      %v2571 = vadd.f32 %v2297, %v2530
      %v2572 = vadd.f32 %v2298, %v2533
      %v2573 = vadd.f32 %v2299, %v2536
      %v2574 = vadd.f32 %v2300, %v2539
      %v2575 = vadd.f32 %v2301, %v2542
      %v2576 = vsel %vm237, %v2544, 0.0
      %v2577 = vsel %vm237, %v2545, 0.0
      %v2578 = vadd.f32 %v2576, %v2577
      %v2579 = vsel %vm237, %v2546, 0.0
      %v2580 = vadd.f32 %v2578, %v2579
      %v2581 = vsel %vm237, %v2547, 0.0
      %v2582 = vadd.f32 %v2580, %v2581
      %v2583 = vsel %vm237, %v2548, 0.0
      %v2584 = vadd.f32 %v2582, %v2583
      %v2585 = vsel %vm237, %v2549, 0.0
      %v2586 = vadd.f32 %v2584, %v2585
      %v2587 = vsel %vm237, %v2550, 0.0
      %v2588 = vadd.f32 %v2586, %v2587
      %v2589 = vsel %vm237, %v2551, 0.0
      %v2590 = vadd.f32 %v2588, %v2589
      %v2591 = vsel %vm237, %v2552, 0.0
      %v2592 = vadd.f32 %v2590, %v2591
      %v2593 = vsel %vm237, %v2553, 0.0
      %v2594 = vadd.f32 %v2592, %v2593
      %v2595 = vsel %vm237, %v2554, 0.0
      %v2596 = vadd.f32 %v2594, %v2595
      %v2597 = vsel %vm237, %v2555, 0.0
      %v2598 = vadd.f32 %v2596, %v2597
      %v2599 = vsel %vm237, %v2556, 0.0
      %v2600 = vadd.f32 %v2598, %v2599
      %v2601 = vsel %vm237, %v2557, 0.0
      %v2602 = vadd.f32 %v2600, %v2601
      %v2603 = vsel %vm237, %v2558, 0.0
      %v2604 = vadd.f32 %v2602, %v2603
      %v2605 = vsel %vm237, %v2559, 0.0
      %v2606 = vadd.f32 %v2604, %v2605
      %v2607 = vsel %vm237, %v2560, 0.0
      %v2608 = vadd.f32 %v2606, %v2607
      %v2609 = vsel %vm237, %v2561, 0.0
      %v2610 = vadd.f32 %v2608, %v2609
      %v2611 = vsel %vm237, %v2562, 0.0
      %v2612 = vadd.f32 %v2610, %v2611
      %v2613 = vsel %vm237, %v2563, 0.0
      %v2614 = vadd.f32 %v2612, %v2613
      %v2615 = vsel %vm237, %v2564, 0.0
      %v2616 = vadd.f32 %v2614, %v2615
      %v2617 = vsel %vm237, %v2565, 0.0
      %v2618 = vadd.f32 %v2616, %v2617
      %v2619 = vsel %vm237, %v2566, 0.0
      %v2620 = vadd.f32 %v2618, %v2619
      %v2621 = vsel %vm237, %v2567, 0.0
      %v2622 = vadd.f32 %v2620, %v2621
      %v2623 = vsel %vm237, %v2568, 0.0
      %v2624 = vadd.f32 %v2622, %v2623
      %v2625 = vsel %vm237, %v2569, 0.0
      %v2626 = vadd.f32 %v2624, %v2625
      %v2627 = vsel %vm237, %v2570, 0.0
      %v2628 = vadd.f32 %v2626, %v2627
      %v2629 = vsel %vm237, %v2571, 0.0
      %v2630 = vadd.f32 %v2628, %v2629
      %v2631 = vsel %vm237, %v2572, 0.0
      %v2632 = vadd.f32 %v2630, %v2631
      %v2633 = vsel %vm237, %v2573, 0.0
      %v2634 = vadd.f32 %v2632, %v2633
      %v2635 = vsel %vm237, %v2574, 0.0
      %v2636 = vadd.f32 %v2634, %v2635
      %v2637 = vsel %vm237, %v2575, 0.0
      %v2638 = vadd.f32 %v2636, %v2637
      %v2639 = vrot.slane %v2638, 4
      %v2640 = vadd.f32 %v2638, %v2639
      %v2641 = vrot.slane %v2640, 2
      %v2642 = vadd.f32 %v2640, %v2641
      %v2643 = vrot.slane %v2642, 1
      %v2644 = vadd.f32 %v2642, %v2643
      %v2645 = vrcp.pop 256.0
      %v2646 = vmul.f32 256.0, %v2645
      %v2647 = vsub.f32 1.0, %v2646
      %v2648 = vmul.f32 %v2645, %v2647
      %v2649 = vadd.f32 %v2645, %v2648
      %vm2650 = vweird.f32 %v2645
      %v2651 = vsel %vm2650, %v2645, %v2649
      %v2652 = vmul.f32 %v2644, %v2651
      %v2653 = vsub.f32 %v2544, %v2652
      %v2654 = vsub.f32 %v2545, %v2652
      %v2655 = vsub.f32 %v2546, %v2652
      %v2656 = vsub.f32 %v2547, %v2652
      %v2657 = vsub.f32 %v2548, %v2652
      %v2658 = vsub.f32 %v2549, %v2652
      %v2659 = vsub.f32 %v2550, %v2652
      %v2660 = vsub.f32 %v2551, %v2652
      %v2661 = vsub.f32 %v2552, %v2652
      %v2662 = vsub.f32 %v2553, %v2652
      %v2663 = vsub.f32 %v2554, %v2652
      %v2664 = vsub.f32 %v2555, %v2652
      %v2665 = vsub.f32 %v2556, %v2652
      %v2666 = vsub.f32 %v2557, %v2652
      %v2667 = vsub.f32 %v2558, %v2652
      %v2668 = vsub.f32 %v2559, %v2652
      %v2669 = vsub.f32 %v2560, %v2652
      %v2670 = vsub.f32 %v2561, %v2652
      %v2671 = vsub.f32 %v2562, %v2652
      %v2672 = vsub.f32 %v2563, %v2652
      %v2673 = vsub.f32 %v2564, %v2652
      %v2674 = vsub.f32 %v2565, %v2652
      %v2675 = vsub.f32 %v2566, %v2652
      %v2676 = vsub.f32 %v2567, %v2652
      %v2677 = vsub.f32 %v2568, %v2652
      %v2678 = vsub.f32 %v2569, %v2652
      %v2679 = vsub.f32 %v2570, %v2652
      %v2680 = vsub.f32 %v2571, %v2652
      %v2681 = vsub.f32 %v2572, %v2652
      %v2682 = vsub.f32 %v2573, %v2652
      %v2683 = vsub.f32 %v2574, %v2652
      %v2684 = vsub.f32 %v2575, %v2652
      %v2685 = vmul.f32 %v2653, %v2653
      %v2686 = vmul.f32 %v2654, %v2654
      %v2687 = vmul.f32 %v2655, %v2655
      %v2688 = vmul.f32 %v2656, %v2656
      %v2689 = vmul.f32 %v2657, %v2657
      %v2690 = vmul.f32 %v2658, %v2658
      %v2691 = vmul.f32 %v2659, %v2659
      %v2692 = vmul.f32 %v2660, %v2660
      %v2693 = vmul.f32 %v2661, %v2661
      %v2694 = vmul.f32 %v2662, %v2662
      %v2695 = vmul.f32 %v2663, %v2663
      %v2696 = vmul.f32 %v2664, %v2664
      %v2697 = vmul.f32 %v2665, %v2665
      %v2698 = vmul.f32 %v2666, %v2666
      %v2699 = vmul.f32 %v2667, %v2667
      %v2700 = vmul.f32 %v2668, %v2668
      %v2701 = vmul.f32 %v2669, %v2669
      %v2702 = vmul.f32 %v2670, %v2670
      %v2703 = vmul.f32 %v2671, %v2671
      %v2704 = vmul.f32 %v2672, %v2672
      %v2705 = vmul.f32 %v2673, %v2673
      %v2706 = vmul.f32 %v2674, %v2674
      %v2707 = vmul.f32 %v2675, %v2675
      %v2708 = vmul.f32 %v2676, %v2676
      %v2709 = vmul.f32 %v2677, %v2677
      %v2710 = vmul.f32 %v2678, %v2678
      %v2711 = vmul.f32 %v2679, %v2679
      %v2712 = vmul.f32 %v2680, %v2680
      %v2713 = vmul.f32 %v2681, %v2681
      %v2714 = vmul.f32 %v2682, %v2682
      %v2715 = vmul.f32 %v2683, %v2683
      %v2716 = vmul.f32 %v2684, %v2684
      %v2717 = vsel %vm237, %v2685, 0.0
      %v2718 = vsel %vm237, %v2686, 0.0
      %v2719 = vadd.f32 %v2717, %v2718
      %v2720 = vsel %vm237, %v2687, 0.0
      %v2721 = vadd.f32 %v2719, %v2720
      %v2722 = vsel %vm237, %v2688, 0.0
      %v2723 = vadd.f32 %v2721, %v2722
      %v2724 = vsel %vm237, %v2689, 0.0
      %v2725 = vadd.f32 %v2723, %v2724
      %v2726 = vsel %vm237, %v2690, 0.0
      %v2727 = vadd.f32 %v2725, %v2726
      %v2728 = vsel %vm237, %v2691, 0.0
      %v2729 = vadd.f32 %v2727, %v2728
      %v2730 = vsel %vm237, %v2692, 0.0
      %v2731 = vadd.f32 %v2729, %v2730
      %v2732 = vsel %vm237, %v2693, 0.0
      %v2733 = vadd.f32 %v2731, %v2732
      %v2734 = vsel %vm237, %v2694, 0.0
      %v2735 = vadd.f32 %v2733, %v2734
      %v2736 = vsel %vm237, %v2695, 0.0
      %v2737 = vadd.f32 %v2735, %v2736
      %v2738 = vsel %vm237, %v2696, 0.0
      %v2739 = vadd.f32 %v2737, %v2738
      %v2740 = vsel %vm237, %v2697, 0.0
      %v2741 = vadd.f32 %v2739, %v2740
      %v2742 = vsel %vm237, %v2698, 0.0
      %v2743 = vadd.f32 %v2741, %v2742
      %v2744 = vsel %vm237, %v2699, 0.0
      %v2745 = vadd.f32 %v2743, %v2744
      %v2746 = vsel %vm237, %v2700, 0.0
      %v2747 = vadd.f32 %v2745, %v2746
      %v2748 = vsel %vm237, %v2701, 0.0
      %v2749 = vadd.f32 %v2747, %v2748
      %v2750 = vsel %vm237, %v2702, 0.0
      %v2751 = vadd.f32 %v2749, %v2750
      %v2752 = vsel %vm237, %v2703, 0.0
      %v2753 = vadd.f32 %v2751, %v2752
      %v2754 = vsel %vm237, %v2704, 0.0
      %v2755 = vadd.f32 %v2753, %v2754
      %v2756 = vsel %vm237, %v2705, 0.0
      %v2757 = vadd.f32 %v2755, %v2756
      %v2758 = vsel %vm237, %v2706, 0.0
      %v2759 = vadd.f32 %v2757, %v2758
      %v2760 = vsel %vm237, %v2707, 0.0
      %v2761 = vadd.f32 %v2759, %v2760
      %v2762 = vsel %vm237, %v2708, 0.0
      %v2763 = vadd.f32 %v2761, %v2762
      %v2764 = vsel %vm237, %v2709, 0.0
      %v2765 = vadd.f32 %v2763, %v2764
      %v2766 = vsel %vm237, %v2710, 0.0
      %v2767 = vadd.f32 %v2765, %v2766
      %v2768 = vsel %vm237, %v2711, 0.0
      %v2769 = vadd.f32 %v2767, %v2768
      %v2770 = vsel %vm237, %v2712, 0.0
      %v2771 = vadd.f32 %v2769, %v2770
      %v2772 = vsel %vm237, %v2713, 0.0
      %v2773 = vadd.f32 %v2771, %v2772
      %v2774 = vsel %vm237, %v2714, 0.0
      %v2775 = vadd.f32 %v2773, %v2774
      %v2776 = vsel %vm237, %v2715, 0.0
      %v2777 = vadd.f32 %v2775, %v2776
      %v2778 = vsel %vm237, %v2716, 0.0
      %v2779 = vadd.f32 %v2777, %v2778
      %v2780 = vrot.slane %v2779, 4
      %v2781 = vadd.f32 %v2779, %v2780
      %v2782 = vrot.slane %v2781, 2
      %v2783 = vadd.f32 %v2781, %v2782
      %v2784 = vrot.slane %v2783, 1
      %v2785 = vadd.f32 %v2783, %v2784
      %v2786 = vmul.f32 %v2785, %v2651
      %v2787 = vadd.f32 %v2786, 1e-05
      %v2788 = vrsqrt.pop %v2787
      %v2789 = vmul.f32 %v2788, %v2787
      %v2790 = vmul.f32 %v2789, %v2788
      %v2791 = vmul.f32 0.5, %v2790
      %v2792 = vsub.f32 1.5, %v2791
      %v2793 = vmul.f32 %v2788, %v2792
      %vm2794 = vweird.f32 %v2787
      %vm2795 = vweird.f32 %v2788
      %vm2796 = vmor %vm2794, %vm2795
      %v2797 = vsel %vm2796, %v2788, %v2793
      %v2798 = vmul.f32 %v2653, %v2797
      %v2799 = vmul.f32 %v2654, %v2797
      %v2800 = vmul.f32 %v2655, %v2797
      %v2801 = vmul.f32 %v2656, %v2797
      %v2802 = vmul.f32 %v2657, %v2797
      %v2803 = vmul.f32 %v2658, %v2797
      %v2804 = vmul.f32 %v2659, %v2797
      %v2805 = vmul.f32 %v2660, %v2797
      %v2806 = vmul.f32 %v2661, %v2797
      %v2807 = vmul.f32 %v2662, %v2797
      %v2808 = vmul.f32 %v2663, %v2797
      %v2809 = vmul.f32 %v2664, %v2797
      %v2810 = vmul.f32 %v2665, %v2797
      %v2811 = vmul.f32 %v2666, %v2797
      %v2812 = vmul.f32 %v2667, %v2797
      %v2813 = vmul.f32 %v2668, %v2797
      %v2814 = vmul.f32 %v2669, %v2797
      %v2815 = vmul.f32 %v2670, %v2797
      %v2816 = vmul.f32 %v2671, %v2797
      %v2817 = vmul.f32 %v2672, %v2797
      %v2818 = vmul.f32 %v2673, %v2797
      %v2819 = vmul.f32 %v2674, %v2797
      %v2820 = vmul.f32 %v2675, %v2797
      %v2821 = vmul.f32 %v2676, %v2797
      %v2822 = vmul.f32 %v2677, %v2797
      %v2823 = vmul.f32 %v2678, %v2797
      %v2824 = vmul.f32 %v2679, %v2797
      %v2825 = vmul.f32 %v2680, %v2797
      %v2826 = vmul.f32 %v2681, %v2797
      %v2827 = vmul.f32 %v2682, %v2797
      %v2828 = vmul.f32 %v2683, %v2797
      %v2829 = vmul.f32 %v2684, %v2797
      %v2830 = vmax.f32 %v2798, 0.0
      %v2831 = vmax.f32 %v2799, 0.0
      %v2832 = vmax.f32 %v2800, 0.0
      %v2833 = vmax.f32 %v2801, 0.0
      %v2834 = vmax.f32 %v2802, 0.0
      %v2835 = vmax.f32 %v2803, 0.0
      %v2836 = vmax.f32 %v2804, 0.0
      %v2837 = vmax.f32 %v2805, 0.0
      %v2838 = vmax.f32 %v2806, 0.0
      %v2839 = vmax.f32 %v2807, 0.0
      %v2840 = vmax.f32 %v2808, 0.0
      %v2841 = vmax.f32 %v2809, 0.0
      %v2842 = vmax.f32 %v2810, 0.0
      %v2843 = vmax.f32 %v2811, 0.0
      %v2844 = vmax.f32 %v2812, 0.0
      %v2845 = vmax.f32 %v2813, 0.0
      %v2846 = vmax.f32 %v2814, 0.0
      %v2847 = vmax.f32 %v2815, 0.0
      %v2848 = vmax.f32 %v2816, 0.0
      %v2849 = vmax.f32 %v2817, 0.0
      %v2850 = vmax.f32 %v2818, 0.0
      %v2851 = vmax.f32 %v2819, 0.0
      %v2852 = vmax.f32 %v2820, 0.0
      %v2853 = vmax.f32 %v2821, 0.0
      %v2854 = vmax.f32 %v2822, 0.0
      %v2855 = vmax.f32 %v2823, 0.0
      %v2856 = vmax.f32 %v2824, 0.0
      %v2857 = vmax.f32 %v2825, 0.0
      %v2858 = vmax.f32 %v2826, 0.0
      %v2859 = vmax.f32 %v2827, 0.0
      %v2860 = vmax.f32 %v2828, 0.0
      %v2861 = vmax.f32 %v2829, 0.0
      %s2862 = scalar_lea.vmem [#allocation2], 24
      %2863 = vst.msk [vmem:[%s2862 + $0x1] sm:$0xff] %vm237, %v2830
      %2864 = vst.msk [vmem:[%s2862 + $0x9] sm:$0xff] %vm237, %v2831
      %2865 = vst.msk [vmem:[%s2862 + $0x19] sm:$0xff] %vm237, %v2832
      %2866 = vst.msk [vmem:[%s2862 + $0x21] sm:$0xff] %vm237, %v2833
      %2867 = vst.msk [vmem:[%s2862 + $0x31] sm:$0xff] %vm237, %v2834
      %2868 = vst.msk [vmem:[%s2862 + $0x39] sm:$0xff] %vm237, %v2835
      %2869 = vst.msk [vmem:[%s2862 + $0x49] sm:$0xff] %vm237, %v2836
      %2870 = vst.msk [vmem:[%s2862 + $0x51] sm:$0xff] %vm237, %v2837
      %2871 = vst.msk [vmem:[%s2862 + $0x61] sm:$0xff] %vm237, %v2838
      %2872 = vst.msk [vmem:[%s2862 + $0x69] sm:$0xff] %vm237, %v2839
      %2873 = vst.msk [vmem:[%s2862 + $0x79] sm:$0xff] %vm237, %v2840
      %2874 = vst.msk [vmem:[%s2862 + $0x81] sm:$0xff] %vm237, %v2841
      %2875 = vst.msk [vmem:[%s2862 + $0x91] sm:$0xff] %vm237, %v2842
      %2876 = vst.msk [vmem:[%s2862 + $0x99] sm:$0xff] %vm237, %v2843
      %2877 = vst.msk [vmem:[%s2862 + $0xa9] sm:$0xff] %vm237, %v2844
      %2878 = vst.msk [vmem:[%s2862 + $0xb1] sm:$0xff] %vm237, %v2845
      %2879 = vst.msk [vmem:[%s2862 + $0xc1] sm:$0xff] %vm237, %v2846
      %2880 = vst.msk [vmem:[%s2862 + $0xc9] sm:$0xff] %vm237, %v2847
      %2881 = vst.msk [vmem:[%s2862 + $0xd9] sm:$0xff] %vm237, %v2848
      %2882 = vst.msk [vmem:[%s2862 + $0xe1] sm:$0xff] %vm237, %v2849
      %2883 = vst.msk [vmem:[%s2862 + $0xf1] sm:$0xff] %vm237, %v2850
      %2884 = vst.msk [vmem:[%s2862 + $0xf9] sm:$0xff] %vm237, %v2851
      %2885 = vst.msk [vmem:[%s2862 + $0x109] sm:$0xff] %vm237, %v2852
      %2886 = vst.msk [vmem:[%s2862 + $0x111] sm:$0xff] %vm237, %v2853
      %2887 = vst.msk [vmem:[%s2862 + $0x121] sm:$0xff] %vm237, %v2854
      %2888 = vst.msk [vmem:[%s2862 + $0x129] sm:$0xff] %vm237, %v2855
      %2889 = vst.msk [vmem:[%s2862 + $0x139] sm:$0xff] %vm237, %v2856
      %2890 = vst.msk [vmem:[%s2862 + $0x141] sm:$0xff] %vm237, %v2857
      %2891 = vst.msk [vmem:[%s2862 + $0x151] sm:$0xff] %vm237, %v2858
      %2892 = vst.msk [vmem:[%s2862 + $0x159] sm:$0xff] %vm237, %v2859
      %2893 = vst.msk [vmem:[%s2862 + $0x169] sm:$0xff] %vm237, %v2860
      %2894 = vst.msk [vmem:[%s2862 + $0x171] sm:$0xff] %vm237, %v2861
      %2895 = vst.msk [vmem:[#allocation2 + $0x1] sm:$0xff] %vm237, %v2832
      %2896 = vst.msk [vmem:[#allocation2 + $0x9] sm:$0xff] %vm237, %v2833
      %s2897 = scalar_lea.vmem [#allocation2], 408
      %2898 = vst.msk [vmem:[%s2897 + $0x1] sm:$0xff] %vm237, %v2858
      %2899 = vst.msk [vmem:[%s2897 + $0x9] sm:$0xff] %vm237, %v2859
      %v2900 = vld [vmem:[#allocation2 + $0x2] sm:$0x1]
      %v2901 = vld [vmem:[#allocation2 + $0x1a] sm:$0x1]
      %v2902 = vld [vmem:[#allocation2 + $0x32] sm:$0x1]
      %v2903 = vld [vmem:[#allocation2 + $0x4a] sm:$0x1]
      %v2904 = vld [vmem:[#allocation2 + $0x62] sm:$0x1]
      %v2905 = vld [vmem:[#allocation2 + $0x7a] sm:$0x1]
      %v2906 = vld [vmem:[#allocation2 + $0x92] sm:$0x1]
      %v2907 = vld [vmem:[#allocation2 + $0xaa] sm:$0x1]
      %v2908 = vld [vmem:[#allocation2 + $0xc2] sm:$0x1]
      %v2909 = vld [vmem:[#allocation2 + $0xda] sm:$0x1]
      %v2910 = vld [vmem:[#allocation2 + $0xf2] sm:$0x1]
      %v2911 = vld [vmem:[#allocation2 + $0x10a] sm:$0x1]
      %v2912 = vld [vmem:[#allocation2 + $0x122] sm:$0x1]
      %v2913 = vld [vmem:[#allocation2 + $0x13a] sm:$0x1]
      %v2914 = vld [vmem:[#allocation2 + $0x152] sm:$0x1]
      %v2915 = vld [vmem:[#allocation2 + $0x16a] sm:$0x1]
      %v2916 = vld [vmem:[#allocation2 + $0x182] sm:$0x1]
      %v2917 = vld [vmem:[#allocation2 + $0x19a] sm:$0x1]
      %vm2918 = vcmask 57344
      %2919 = vst.msk [vmem:[#allocation2] sm:$0x1] %vm2918, %v2900
      %2920 = vst.msk [vmem:[#allocation2 + $0x18] sm:$0x1] %vm2918, %v2901
      %2921 = vst.msk [vmem:[#allocation2 + $0x30] sm:$0x1] %vm2918, %v2902
      %2922 = vst.msk [vmem:[#allocation2 + $0x48] sm:$0x1] %vm2918, %v2903
      %2923 = vst.msk [vmem:[#allocation2 + $0x60] sm:$0x1] %vm2918, %v2904
      %2924 = vst.msk [vmem:[#allocation2 + $0x78] sm:$0x1] %vm2918, %v2905
      %2925 = vst.msk [vmem:[#allocation2 + $0x90] sm:$0x1] %vm2918, %v2906
      %2926 = vst.msk [vmem:[#allocation2 + $0xa8] sm:$0x1] %vm2918, %v2907
      %2927 = vst.msk [vmem:[#allocation2 + $0xc0] sm:$0x1] %vm2918, %v2908
      %2928 = vst.msk [vmem:[#allocation2 + $0xd8] sm:$0x1] %vm2918, %v2909
      %2929 = vst.msk [vmem:[#allocation2 + $0xf0] sm:$0x1] %vm2918, %v2910
      %2930 = vst.msk [vmem:[#allocation2 + $0x108] sm:$0x1] %vm2918, %v2911
      %2931 = vst.msk [vmem:[#allocation2 + $0x120] sm:$0x1] %vm2918, %v2912
      %2932 = vst.msk [vmem:[#allocation2 + $0x138] sm:$0x1] %vm2918, %v2913
      %2933 = vst.msk [vmem:[#allocation2 + $0x150] sm:$0x1] %vm2918, %v2914
      %2934 = vst.msk [vmem:[#allocation2 + $0x168] sm:$0x1] %vm2918, %v2915
      %2935 = vst.msk [vmem:[#allocation2 + $0x180] sm:$0x1] %vm2918, %v2916
      %2936 = vst.msk [vmem:[#allocation2 + $0x198] sm:$0x1] %vm2918, %v2917
      %v2937 = vld [vmem:[#allocation2 + $0xf] sm:$0x1]
      %v2938 = vld [vmem:[#allocation2 + $0x27] sm:$0x1]
      %v2939 = vld [vmem:[#allocation2 + $0x3f] sm:$0x1]
      %v2940 = vld [vmem:[#allocation2 + $0x57] sm:$0x1]
      %v2941 = vld [vmem:[#allocation2 + $0x6f] sm:$0x1]
      %v2942 = vld [vmem:[#allocation2 + $0x87] sm:$0x1]
      %v2943 = vld [vmem:[#allocation2 + $0x9f] sm:$0x1]
      %v2944 = vld [vmem:[#allocation2 + $0xb7] sm:$0x1]
      %v2945 = vld [vmem:[#allocation2 + $0xcf] sm:$0x1]
      %v2946 = vld [vmem:[#allocation2 + $0xe7] sm:$0x1]
      %v2947 = vld [vmem:[#allocation2 + $0xff] sm:$0x1]
      %v2948 = vld [vmem:[#allocation2 + $0x117] sm:$0x1]
      %v2949 = vld [vmem:[#allocation2 + $0x12f] sm:$0x1]
      %v2950 = vld [vmem:[#allocation2 + $0x147] sm:$0x1]
      %v2951 = vld [vmem:[#allocation2 + $0x15f] sm:$0x1]
      %v2952 = vld [vmem:[#allocation2 + $0x177] sm:$0x1]
      %v2953 = vld [vmem:[#allocation2 + $0x18f] sm:$0x1]
      %v2954 = vld [vmem:[#allocation2 + $0x1a7] sm:$0x1]
      %2955 = vst.msk [vmem:[#allocation2 + $0x11] sm:$0x1] %vm2918, %v2937
      %2956 = vst.msk [vmem:[#allocation2 + $0x29] sm:$0x1] %vm2918, %v2938
      %2957 = vst.msk [vmem:[#allocation2 + $0x41] sm:$0x1] %vm2918, %v2939
      %2958 = vst.msk [vmem:[#allocation2 + $0x59] sm:$0x1] %vm2918, %v2940
      %2959 = vst.msk [vmem:[#allocation2 + $0x71] sm:$0x1] %vm2918, %v2941
      %2960 = vst.msk [vmem:[#allocation2 + $0x89] sm:$0x1] %vm2918, %v2942
      %2961 = vst.msk [vmem:[#allocation2 + $0xa1] sm:$0x1] %vm2918, %v2943
      %2962 = vst.msk [vmem:[#allocation2 + $0xb9] sm:$0x1] %vm2918, %v2944
      %2963 = vst.msk [vmem:[#allocation2 + $0xd1] sm:$0x1] %vm2918, %v2945
      %2964 = vst.msk [vmem:[#allocation2 + $0xe9] sm:$0x1] %vm2918, %v2946
      %2965 = vst.msk [vmem:[#allocation2 + $0x101] sm:$0x1] %vm2918, %v2947
      %2966 = vst.msk [vmem:[#allocation2 + $0x119] sm:$0x1] %vm2918, %v2948
      %2967 = vst.msk [vmem:[#allocation2 + $0x131] sm:$0x1] %vm2918, %v2949
      %2968 = vst.msk [vmem:[#allocation2 + $0x149] sm:$0x1] %vm2918, %v2950
      %2969 = vst.msk [vmem:[#allocation2 + $0x161] sm:$0x1] %vm2918, %v2951
      %2970 = vst.msk [vmem:[#allocation2 + $0x179] sm:$0x1] %vm2918, %v2952
      %2971 = vst.msk [vmem:[#allocation2 + $0x191] sm:$0x1] %vm2918, %v2953
      %2972 = vst.msk [vmem:[#allocation2 + $0x1a9] sm:$0x1] %vm2918, %v2954
      %v2973 = vld [vmem:[#allocation2] sm:$0xff]
      %v2974 = vld [vmem:[#allocation2 + $0x8] sm:$0xff]
      %v2975 = vld [vmem:[#allocation2 + $0x18] sm:$0xff]
      %v2976 = vld [vmem:[#allocation2 + $0x20] sm:$0xff]
      %v2977 = vld [vmem:[#allocation2 + $0x30] sm:$0xff]
      %v2978 = vld [vmem:[#allocation2 + $0x38] sm:$0xff]
      %v2979 = vld [vmem:[#allocation2 + $0x48] sm:$0xff]
      %v2980 = vld [vmem:[#allocation2 + $0x50] sm:$0xff]
      %v2981 = vld [vmem:[#allocation2 + $0x60] sm:$0xff]
      %v2982 = vld [vmem:[#allocation2 + $0x68] sm:$0xff]
      %v2983 = vld [vmem:[#allocation2 + $0x78] sm:$0xff]
      %v2984 = vld [vmem:[#allocation2 + $0x80] sm:$0xff]
      %v2985 = vld [vmem:[#allocation2 + $0x90] sm:$0xff]
      %v2986 = vld [vmem:[#allocation2 + $0x98] sm:$0xff]
      %v2987 = vld [vmem:[#allocation2 + $0xa8] sm:$0xff]
      %v2988 = vld [vmem:[#allocation2 + $0xb0] sm:$0xff]
      %v2989 = vld [vmem:[#allocation2 + $0xc0] sm:$0xff]
      %v2990 = vld [vmem:[#allocation2 + $0xc8] sm:$0xff]
      %v2991 = vld [vmem:[#allocation2 + $0xd8] sm:$0xff]
      %v2992 = vld [vmem:[#allocation2 + $0xe0] sm:$0xff]
      %v2993 = vld [vmem:[#allocation2 + $0xf0] sm:$0xff]
      %v2994 = vld [vmem:[#allocation2 + $0xf8] sm:$0xff]
      %v2995 = vld [vmem:[#allocation2 + $0x108] sm:$0xff]
      %v2996 = vld [vmem:[#allocation2 + $0x110] sm:$0xff]
      %v2997 = vld [vmem:[#allocation2 + $0x120] sm:$0xff]
      %v2998 = vld [vmem:[#allocation2 + $0x128] sm:$0xff]
      %v2999 = vld [vmem:[#allocation2 + $0x138] sm:$0xff]
      %v3000 = vld [vmem:[#allocation2 + $0x140] sm:$0xff]
      %v3001 = vld [vmem:[#allocation2 + $0x150] sm:$0xff]
      %v3002 = vld [vmem:[#allocation2 + $0x158] sm:$0xff]
      %v3003 = vld [vmem:[#allocation2 + $0x168] sm:$0xff]
      %v3004 = vld [vmem:[#allocation2 + $0x170] sm:$0xff]
      %v3005 = vld [vmem:[%s2] sm:$0xff]
      %v3006 = vld [vmem:[#allocation2 + $0x1] sm:$0xff]
      %v3007 = vld [vmem:[#allocation2 + $0x9] sm:$0xff]
      %v3008 = vld [vmem:[#allocation2 + $0x19] sm:$0xff]
      %v3009 = vld [vmem:[#allocation2 + $0x21] sm:$0xff]
      %v3010 = vld [vmem:[#allocation2 + $0x31] sm:$0xff]
      %v3011 = vld [vmem:[#allocation2 + $0x39] sm:$0xff]
      %v3012 = vld [vmem:[#allocation2 + $0x49] sm:$0xff]
      %v3013 = vld [vmem:[#allocation2 + $0x51] sm:$0xff]
      %v3014 = vld [vmem:[#allocation2 + $0x61] sm:$0xff]
      %v3015 = vld [vmem:[#allocation2 + $0x69] sm:$0xff]
      %v3016 = vld [vmem:[#allocation2 + $0x79] sm:$0xff]
      %v3017 = vld [vmem:[#allocation2 + $0x81] sm:$0xff]
      %v3018 = vld [vmem:[#allocation2 + $0x91] sm:$0xff]
      %v3019 = vld [vmem:[#allocation2 + $0x99] sm:$0xff]
      %v3020 = vld [vmem:[#allocation2 + $0xa9] sm:$0xff]
      %v3021 = vld [vmem:[#allocation2 + $0xb1] sm:$0xff]
      %v3022 = vld [vmem:[#allocation2 + $0xc1] sm:$0xff]
      %v3023 = vld [vmem:[#allocation2 + $0xc9] sm:$0xff]
      %v3024 = vld [vmem:[#allocation2 + $0xd9] sm:$0xff]
      %v3025 = vld [vmem:[#allocation2 + $0xe1] sm:$0xff]
      %v3026 = vld [vmem:[#allocation2 + $0xf1] sm:$0xff]
      %v3027 = vld [vmem:[#allocation2 + $0xf9] sm:$0xff]
      %v3028 = vld [vmem:[#allocation2 + $0x109] sm:$0xff]
      %v3029 = vld [vmem:[#allocation2 + $0x111] sm:$0xff]
      %v3030 = vld [vmem:[#allocation2 + $0x121] sm:$0xff]
      %v3031 = vld [vmem:[#allocation2 + $0x129] sm:$0xff]
      %v3032 = vld [vmem:[#allocation2 + $0x139] sm:$0xff]
      %v3033 = vld [vmem:[#allocation2 + $0x141] sm:$0xff]
      %v3034 = vld [vmem:[#allocation2 + $0x151] sm:$0xff]
      %v3035 = vld [vmem:[#allocation2 + $0x159] sm:$0xff]
      %v3036 = vld [vmem:[#allocation2 + $0x169] sm:$0xff]
      %v3037 = vld [vmem:[#allocation2 + $0x171] sm:$0xff]
      %v3038 = vld [vmem:[%s2 + $0x8] sm:$0xff]
      %v3040 = vsel %vm237, %v3006, 0
      %v3043 = vsel %vm237, %v3007, 0
      %v3046 = vsel %vm237, %v3008, 0
      %v3049 = vsel %vm237, %v3009, 0
      %v3052 = vsel %vm237, %v3010, 0
      %v3055 = vsel %vm237, %v3011, 0
      %v3058 = vsel %vm237, %v3012, 0
      %v3061 = vsel %vm237, %v3013, 0
      %v3064 = vsel %vm237, %v3014, 0
      %v3067 = vsel %vm237, %v3015, 0
      %v3070 = vsel %vm237, %v3016, 0
      %v3073 = vsel %vm237, %v3017, 0
      %v3076 = vsel %vm237, %v3018, 0
      %v3079 = vsel %vm237, %v3019, 0
      %v3082 = vsel %vm237, %v3020, 0
      %v3085 = vsel %vm237, %v3021, 0
      %v3088 = vsel %vm237, %v3022, 0
      %v3091 = vsel %vm237, %v3023, 0
      %v3094 = vsel %vm237, %v3024, 0
      %v3097 = vsel %vm237, %v3025, 0
      %v3100 = vsel %vm237, %v3026, 0
      %v3103 = vsel %vm237, %v3027, 0
      %v3106 = vsel %vm237, %v3028, 0
      %v3109 = vsel %vm237, %v3029, 0
      %v3112 = vsel %vm237, %v3030, 0
      %v3115 = vsel %vm237, %v3031, 0
      %v3118 = vsel %vm237, %v3032, 0
      %v3121 = vsel %vm237, %v3033, 0
      %v3124 = vsel %vm237, %v3034, 0
      %v3127 = vsel %vm237, %v3035, 0
      %v3130 = vsel %vm237, %v3036, 0
      %v3133 = vsel %vm237, %v3037, 0
      %3135 = vmatpush.msra.mxu0 0.0
      %3136 = vmatpush.msra.mxu0 0.0
      %3137 = vmatpush.msra.mxu0 0.0
      %3138 = vmatpush.msra.mxu0 0.0
      %3139 = vmatpush.msra.mxu0 0.0
      %3140 = vmatpush.msra.mxu0 0.0
      %3141 = vmatpush.msra.mxu0 0.0
      %3142 = vmatpush.msra.mxu0 0.0
      %3143 = vmatpush.msra.mxu0 0.0
      %3144 = vmatpush.msra.mxu0 0.0
      %3145 = vmatpush.msra.mxu0 0.0
      %3146 = vmatpush.msra.mxu0 0.0
      %3147 = vmatpush.msra.mxu0 0.0
      %3148 = vmatpush.msra.mxu0 0.0
      %3149 = vmatpush.msra.mxu0 0.0
      %3150 = vmatpush.msra.mxu0 %v3038
      %3151 = vmatmul.f32.gmra.mxu0 %v3040
      %v3152 = vpop.f32.mrf.mxu0
      %v3153 = vadd.f32 0.0, %v3152
      %3154 = vmatmul.f32.gmra.mxu0 %v3043
      %v3155 = vpop.f32.mrf.mxu0
      %v3156 = vadd.f32 0.0, %v3155
      %3157 = vmatmul.f32.gmra.mxu0 %v3046
      %v3158 = vpop.f32.mrf.mxu0
      %v3159 = vadd.f32 0.0, %v3158
      %3160 = vmatmul.f32.gmra.mxu0 %v3049
      %v3161 = vpop.f32.mrf.mxu0
      %v3162 = vadd.f32 0.0, %v3161
      %3163 = vmatmul.f32.gmra.mxu0 %v3052
      %v3164 = vpop.f32.mrf.mxu0
      %v3165 = vadd.f32 0.0, %v3164
      %3166 = vmatmul.f32.gmra.mxu0 %v3055
      %v3167 = vpop.f32.mrf.mxu0
      %v3168 = vadd.f32 0.0, %v3167
      %3169 = vmatmul.f32.gmra.mxu0 %v3058
      %v3170 = vpop.f32.mrf.mxu0
      %v3171 = vadd.f32 0.0, %v3170
      %3172 = vmatmul.f32.gmra.mxu0 %v3061
      %v3173 = vpop.f32.mrf.mxu0
      %v3174 = vadd.f32 0.0, %v3173
      %3175 = vmatmul.f32.gmra.mxu0 %v3064
      %v3176 = vpop.f32.mrf.mxu0
      %v3177 = vadd.f32 0.0, %v3176
      %3178 = vmatmul.f32.gmra.mxu0 %v3067
      %v3179 = vpop.f32.mrf.mxu0
      %v3180 = vadd.f32 0.0, %v3179
      %3181 = vmatmul.f32.gmra.mxu0 %v3070
      %v3182 = vpop.f32.mrf.mxu0
      %v3183 = vadd.f32 0.0, %v3182
      %3184 = vmatmul.f32.gmra.mxu0 %v3073
      %v3185 = vpop.f32.mrf.mxu0
      %v3186 = vadd.f32 0.0, %v3185
      %3187 = vmatmul.f32.gmra.mxu0 %v3076
      %v3188 = vpop.f32.mrf.mxu0
      %v3189 = vadd.f32 0.0, %v3188
      %3190 = vmatmul.f32.gmra.mxu0 %v3079
      %v3191 = vpop.f32.mrf.mxu0
      %v3192 = vadd.f32 0.0, %v3191
      %3193 = vmatmul.f32.gmra.mxu0 %v3082
      %v3194 = vpop.f32.mrf.mxu0
      %v3195 = vadd.f32 0.0, %v3194
      %3196 = vmatmul.f32.gmra.mxu0 %v3085
      %v3197 = vpop.f32.mrf.mxu0
      %v3198 = vadd.f32 0.0, %v3197
      %3199 = vmatmul.f32.gmra.mxu0 %v3088
      %v3200 = vpop.f32.mrf.mxu0
      %v3201 = vadd.f32 0.0, %v3200
      %3202 = vmatmul.f32.gmra.mxu0 %v3091
      %v3203 = vpop.f32.mrf.mxu0
      %v3204 = vadd.f32 0.0, %v3203
      %3205 = vmatmul.f32.gmra.mxu0 %v3094
      %v3206 = vpop.f32.mrf.mxu0
      %v3207 = vadd.f32 0.0, %v3206
      %3208 = vmatmul.f32.gmra.mxu0 %v3097
      %v3209 = vpop.f32.mrf.mxu0
      %v3210 = vadd.f32 0.0, %v3209
      %3211 = vmatmul.f32.gmra.mxu0 %v3100
      %v3212 = vpop.f32.mrf.mxu0
      %v3213 = vadd.f32 0.0, %v3212
      %3214 = vmatmul.f32.gmra.mxu0 %v3103
      %v3215 = vpop.f32.mrf.mxu0
      %v3216 = vadd.f32 0.0, %v3215
      %3217 = vmatmul.f32.gmra.mxu0 %v3106
      %v3218 = vpop.f32.mrf.mxu0
      %v3219 = vadd.f32 0.0, %v3218
      %3220 = vmatmul.f32.gmra.mxu0 %v3109
      %v3221 = vpop.f32.mrf.mxu0
      %v3222 = vadd.f32 0.0, %v3221
      %3223 = vmatmul.f32.gmra.mxu0 %v3112
      %v3224 = vpop.f32.mrf.mxu0
      %v3225 = vadd.f32 0.0, %v3224
      %3226 = vmatmul.f32.gmra.mxu0 %v3115
      %v3227 = vpop.f32.mrf.mxu0
      %v3228 = vadd.f32 0.0, %v3227
      %3229 = vmatmul.f32.gmra.mxu0 %v3118
      %v3230 = vpop.f32.mrf.mxu0
      %v3231 = vadd.f32 0.0, %v3230
      %3232 = vmatmul.f32.gmra.mxu0 %v3121
      %v3233 = vpop.f32.mrf.mxu0
      %v3234 = vadd.f32 0.0, %v3233
      %3235 = vmatmul.f32.gmra.mxu0 %v3124
      %v3236 = vpop.f32.mrf.mxu0
      %v3237 = vadd.f32 0.0, %v3236
      %3238 = vmatmul.f32.gmra.mxu0 %v3127
      %v3239 = vpop.f32.mrf.mxu0
      %v3240 = vadd.f32 0.0, %v3239
      %3241 = vmatmul.f32.gmra.mxu0 %v3130
      %v3242 = vpop.f32.mrf.mxu0
      %v3243 = vadd.f32 0.0, %v3242
      %3244 = vmatmul.f32.gmra.mxu0 %v3133
      %v3245 = vpop.f32.mrf.mxu0
      %v3246 = vadd.f32 0.0, %v3245
      %3247 = vdwg.mxu0
      %v3249 = vsel %vm237, %v2973, 0
      %v3252 = vsel %vm237, %v2974, 0
      %v3255 = vsel %vm237, %v2975, 0
      %v3258 = vsel %vm237, %v2976, 0
      %v3261 = vsel %vm237, %v2977, 0
      %v3264 = vsel %vm237, %v2978, 0
      %v3267 = vsel %vm237, %v2979, 0
      %v3270 = vsel %vm237, %v2980, 0
      %v3273 = vsel %vm237, %v2981, 0
      %v3276 = vsel %vm237, %v2982, 0
      %v3279 = vsel %vm237, %v2983, 0
      %v3282 = vsel %vm237, %v2984, 0
      %v3285 = vsel %vm237, %v2985, 0
      %v3288 = vsel %vm237, %v2986, 0
      %v3291 = vsel %vm237, %v2987, 0
      %v3294 = vsel %vm237, %v2988, 0
      %v3297 = vsel %vm237, %v2989, 0
      %v3300 = vsel %vm237, %v2990, 0
      %v3303 = vsel %vm237, %v2991, 0
      %v3306 = vsel %vm237, %v2992, 0
      %v3309 = vsel %vm237, %v2993, 0
      %v3312 = vsel %vm237, %v2994, 0
      %v3315 = vsel %vm237, %v2995, 0
      %v3318 = vsel %vm237, %v2996, 0
      %v3321 = vsel %vm237, %v2997, 0
      %v3324 = vsel %vm237, %v2998, 0
      %v3327 = vsel %vm237, %v2999, 0
      %v3330 = vsel %vm237, %v3000, 0
      %v3333 = vsel %vm237, %v3001, 0
      %v3336 = vsel %vm237, %v3002, 0
      %v3339 = vsel %vm237, %v3003, 0
      %v3342 = vsel %vm237, %v3004, 0
      %3344 = vmatpush.msra.mxu0 0.0
      %3345 = vmatpush.msra.mxu0 0.0
      %3346 = vmatpush.msra.mxu0 0.0
      %3347 = vmatpush.msra.mxu0 0.0
      %3348 = vmatpush.msra.mxu0 0.0
      %3349 = vmatpush.msra.mxu0 0.0
      %3350 = vmatpush.msra.mxu0 0.0
      %3351 = vmatpush.msra.mxu0 0.0
      %3352 = vmatpush.msra.mxu0 0.0
      %3353 = vmatpush.msra.mxu0 0.0
      %3354 = vmatpush.msra.mxu0 0.0
      %3355 = vmatpush.msra.mxu0 0.0
      %3356 = vmatpush.msra.mxu0 0.0
      %3357 = vmatpush.msra.mxu0 0.0
      %3358 = vmatpush.msra.mxu0 0.0
      %3359 = vmatpush.msra.mxu0 %v3005
      %3360 = vmatmul.f32.gmra.mxu0 %v3249
      %v3361 = vpop.f32.mrf.mxu0
      %v3362 = vadd.f32 %v3153, %v3361
      %3363 = vmatmul.f32.gmra.mxu0 %v3252
      %v3364 = vpop.f32.mrf.mxu0
      %v3365 = vadd.f32 %v3156, %v3364
      %3366 = vmatmul.f32.gmra.mxu0 %v3255
      %v3367 = vpop.f32.mrf.mxu0
      %v3368 = vadd.f32 %v3159, %v3367
      %3369 = vmatmul.f32.gmra.mxu0 %v3258
      %v3370 = vpop.f32.mrf.mxu0
      %v3371 = vadd.f32 %v3162, %v3370
      %3372 = vmatmul.f32.gmra.mxu0 %v3261
      %v3373 = vpop.f32.mrf.mxu0
      %v3374 = vadd.f32 %v3165, %v3373
      %3375 = vmatmul.f32.gmra.mxu0 %v3264
      %v3376 = vpop.f32.mrf.mxu0
      %v3377 = vadd.f32 %v3168, %v3376
      %3378 = vmatmul.f32.gmra.mxu0 %v3267
      %v3379 = vpop.f32.mrf.mxu0
      %v3380 = vadd.f32 %v3171, %v3379
      %3381 = vmatmul.f32.gmra.mxu0 %v3270
      %v3382 = vpop.f32.mrf.mxu0
      %v3383 = vadd.f32 %v3174, %v3382
      %3384 = vmatmul.f32.gmra.mxu0 %v3273
      %v3385 = vpop.f32.mrf.mxu0
      %v3386 = vadd.f32 %v3177, %v3385
      %3387 = vmatmul.f32.gmra.mxu0 %v3276
      %v3388 = vpop.f32.mrf.mxu0
      %v3389 = vadd.f32 %v3180, %v3388
      %3390 = vmatmul.f32.gmra.mxu0 %v3279
      %v3391 = vpop.f32.mrf.mxu0
      %v3392 = vadd.f32 %v3183, %v3391
      %3393 = vmatmul.f32.gmra.mxu0 %v3282
      %v3394 = vpop.f32.mrf.mxu0
      %v3395 = vadd.f32 %v3186, %v3394
      %3396 = vmatmul.f32.gmra.mxu0 %v3285
      %v3397 = vpop.f32.mrf.mxu0
      %v3398 = vadd.f32 %v3189, %v3397
      %3399 = vmatmul.f32.gmra.mxu0 %v3288
      %v3400 = vpop.f32.mrf.mxu0
      %v3401 = vadd.f32 %v3192, %v3400
      %3402 = vmatmul.f32.gmra.mxu0 %v3291
      %v3403 = vpop.f32.mrf.mxu0
      %v3404 = vadd.f32 %v3195, %v3403
      %3405 = vmatmul.f32.gmra.mxu0 %v3294
      %v3406 = vpop.f32.mrf.mxu0
      %v3407 = vadd.f32 %v3198, %v3406
      %3408 = vmatmul.f32.gmra.mxu0 %v3297
      %v3409 = vpop.f32.mrf.mxu0
      %v3410 = vadd.f32 %v3201, %v3409
      %3411 = vmatmul.f32.gmra.mxu0 %v3300
      %v3412 = vpop.f32.mrf.mxu0
      %v3413 = vadd.f32 %v3204, %v3412
      %3414 = vmatmul.f32.gmra.mxu0 %v3303
      %v3415 = vpop.f32.mrf.mxu0
      %v3416 = vadd.f32 %v3207, %v3415
      %3417 = vmatmul.f32.gmra.mxu0 %v3306
      %v3418 = vpop.f32.mrf.mxu0
      %v3419 = vadd.f32 %v3210, %v3418
      %3420 = vmatmul.f32.gmra.mxu0 %v3309
      %v3421 = vpop.f32.mrf.mxu0
      %v3422 = vadd.f32 %v3213, %v3421
      %3423 = vmatmul.f32.gmra.mxu0 %v3312
      %v3424 = vpop.f32.mrf.mxu0
      %v3425 = vadd.f32 %v3216, %v3424
      %3426 = vmatmul.f32.gmra.mxu0 %v3315
      %v3427 = vpop.f32.mrf.mxu0
      %v3428 = vadd.f32 %v3219, %v3427
      %3429 = vmatmul.f32.gmra.mxu0 %v3318
      %v3430 = vpop.f32.mrf.mxu0
      %v3431 = vadd.f32 %v3222, %v3430
      %3432 = vmatmul.f32.gmra.mxu0 %v3321
      %v3433 = vpop.f32.mrf.mxu0
      %v3434 = vadd.f32 %v3225, %v3433
      %3435 = vmatmul.f32.gmra.mxu0 %v3324
      %v3436 = vpop.f32.mrf.mxu0
      %v3437 = vadd.f32 %v3228, %v3436
      %3438 = vmatmul.f32.gmra.mxu0 %v3327
      %v3439 = vpop.f32.mrf.mxu0
      %v3440 = vadd.f32 %v3231, %v3439
      %3441 = vmatmul.f32.gmra.mxu0 %v3330
      %v3442 = vpop.f32.mrf.mxu0
      %v3443 = vadd.f32 %v3234, %v3442
      %3444 = vmatmul.f32.gmra.mxu0 %v3333
      %v3445 = vpop.f32.mrf.mxu0
      %v3446 = vadd.f32 %v3237, %v3445
      %3447 = vmatmul.f32.gmra.mxu0 %v3336
      %v3448 = vpop.f32.mrf.mxu0
      %v3449 = vadd.f32 %v3240, %v3448
      %3450 = vmatmul.f32.gmra.mxu0 %v3339
      %v3451 = vpop.f32.mrf.mxu0
      %v3452 = vadd.f32 %v3243, %v3451
      %3453 = vmatmul.f32.gmra.mxu0 %v3342
      %v3454 = vpop.f32.mrf.mxu0
      %v3455 = vadd.f32 %v3246, %v3454
      %3456 = vdwg.mxu0
      %v3457 = vld [vmem:[#allocation2 + $0x2] sm:$0xff]
      %v3458 = vld [vmem:[#allocation2 + $0xa] sm:$0xff]
      %v3459 = vld [vmem:[#allocation2 + $0x1a] sm:$0xff]
      %v3460 = vld [vmem:[#allocation2 + $0x22] sm:$0xff]
      %v3461 = vld [vmem:[#allocation2 + $0x32] sm:$0xff]
      %v3462 = vld [vmem:[#allocation2 + $0x3a] sm:$0xff]
      %v3463 = vld [vmem:[#allocation2 + $0x4a] sm:$0xff]
      %v3464 = vld [vmem:[#allocation2 + $0x52] sm:$0xff]
      %v3465 = vld [vmem:[#allocation2 + $0x62] sm:$0xff]
      %v3466 = vld [vmem:[#allocation2 + $0x6a] sm:$0xff]
      %v3467 = vld [vmem:[#allocation2 + $0x7a] sm:$0xff]
      %v3468 = vld [vmem:[#allocation2 + $0x82] sm:$0xff]
      %v3469 = vld [vmem:[#allocation2 + $0x92] sm:$0xff]
      %v3470 = vld [vmem:[#allocation2 + $0x9a] sm:$0xff]
      %v3471 = vld [vmem:[#allocation2 + $0xaa] sm:$0xff]
      %v3472 = vld [vmem:[#allocation2 + $0xb2] sm:$0xff]
      %v3473 = vld [vmem:[#allocation2 + $0xc2] sm:$0xff]
      %v3474 = vld [vmem:[#allocation2 + $0xca] sm:$0xff]
      %v3475 = vld [vmem:[#allocation2 + $0xda] sm:$0xff]
      %v3476 = vld [vmem:[#allocation2 + $0xe2] sm:$0xff]
      %v3477 = vld [vmem:[#allocation2 + $0xf2] sm:$0xff]
      %v3478 = vld [vmem:[#allocation2 + $0xfa] sm:$0xff]
      %v3479 = vld [vmem:[#allocation2 + $0x10a] sm:$0xff]
      %v3480 = vld [vmem:[#allocation2 + $0x112] sm:$0xff]
      %v3481 = vld [vmem:[#allocation2 + $0x122] sm:$0xff]
      %v3482 = vld [vmem:[#allocation2 + $0x12a] sm:$0xff]
      %v3483 = vld [vmem:[#allocation2 + $0x13a] sm:$0xff]
      %v3484 = vld [vmem:[#allocation2 + $0x142] sm:$0xff]
      %v3485 = vld [vmem:[#allocation2 + $0x152] sm:$0xff]
      %v3486 = vld [vmem:[#allocation2 + $0x15a] sm:$0xff]
      %v3487 = vld [vmem:[#allocation2 + $0x16a] sm:$0xff]
      %v3488 = vld [vmem:[#allocation2 + $0x172] sm:$0xff]
      %v3489 = vld [vmem:[%s2 + $0x10] sm:$0xff]
      %v3491 = vsel %vm237, %v3457, 0
      %v3494 = vsel %vm237, %v3458, 0
      %v3497 = vsel %vm237, %v3459, 0
      %v3500 = vsel %vm237, %v3460, 0
      %v3503 = vsel %vm237, %v3461, 0
      %v3506 = vsel %vm237, %v3462, 0
      %v3509 = vsel %vm237, %v3463, 0
      %v3512 = vsel %vm237, %v3464, 0
      %v3515 = vsel %vm237, %v3465, 0
      %v3518 = vsel %vm237, %v3466, 0
      %v3521 = vsel %vm237, %v3467, 0
      %v3524 = vsel %vm237, %v3468, 0
      %v3527 = vsel %vm237, %v3469, 0
      %v3530 = vsel %vm237, %v3470, 0
      %v3533 = vsel %vm237, %v3471, 0
      %v3536 = vsel %vm237, %v3472, 0
      %v3539 = vsel %vm237, %v3473, 0
      %v3542 = vsel %vm237, %v3474, 0
      %v3545 = vsel %vm237, %v3475, 0
      %v3548 = vsel %vm237, %v3476, 0
      %v3551 = vsel %vm237, %v3477, 0
      %v3554 = vsel %vm237, %v3478, 0
      %v3557 = vsel %vm237, %v3479, 0
      %v3560 = vsel %vm237, %v3480, 0
      %v3563 = vsel %vm237, %v3481, 0
      %v3566 = vsel %vm237, %v3482, 0
      %v3569 = vsel %vm237, %v3483, 0
      %v3572 = vsel %vm237, %v3484, 0
      %v3575 = vsel %vm237, %v3485, 0
      %v3578 = vsel %vm237, %v3486, 0
      %v3581 = vsel %vm237, %v3487, 0
      %v3584 = vsel %vm237, %v3488, 0
      %3586 = vmatpush.msra.mxu0 0.0
      %3587 = vmatpush.msra.mxu0 0.0
      %3588 = vmatpush.msra.mxu0 0.0
      %3589 = vmatpush.msra.mxu0 0.0
      %3590 = vmatpush.msra.mxu0 0.0
      %3591 = vmatpush.msra.mxu0 0.0
      %3592 = vmatpush.msra.mxu0 0.0
      %3593 = vmatpush.msra.mxu0 0.0
      %3594 = vmatpush.msra.mxu0 0.0
      %3595 = vmatpush.msra.mxu0 0.0
      %3596 = vmatpush.msra.mxu0 0.0
      %3597 = vmatpush.msra.mxu0 0.0
      %3598 = vmatpush.msra.mxu0 0.0
      %3599 = vmatpush.msra.mxu0 0.0
      %3600 = vmatpush.msra.mxu0 0.0
      %3601 = vmatpush.msra.mxu0 %v3489
      %3602 = vmatmul.f32.gmra.mxu0 %v3491
      %v3603 = vpop.f32.mrf.mxu0
      %v3604 = vadd.f32 0.0, %v3603
      %3605 = vmatmul.f32.gmra.mxu0 %v3494
      %v3606 = vpop.f32.mrf.mxu0
      %v3607 = vadd.f32 0.0, %v3606
      %3608 = vmatmul.f32.gmra.mxu0 %v3497
      %v3609 = vpop.f32.mrf.mxu0
      %v3610 = vadd.f32 0.0, %v3609
      %3611 = vmatmul.f32.gmra.mxu0 %v3500
      %v3612 = vpop.f32.mrf.mxu0
      %v3613 = vadd.f32 0.0, %v3612
      %3614 = vmatmul.f32.gmra.mxu0 %v3503
      %v3615 = vpop.f32.mrf.mxu0
      %v3616 = vadd.f32 0.0, %v3615
      %3617 = vmatmul.f32.gmra.mxu0 %v3506
      %v3618 = vpop.f32.mrf.mxu0
      %v3619 = vadd.f32 0.0, %v3618
      %3620 = vmatmul.f32.gmra.mxu0 %v3509
      %v3621 = vpop.f32.mrf.mxu0
      %v3622 = vadd.f32 0.0, %v3621
      %3623 = vmatmul.f32.gmra.mxu0 %v3512
      %v3624 = vpop.f32.mrf.mxu0
      %v3625 = vadd.f32 0.0, %v3624
      %3626 = vmatmul.f32.gmra.mxu0 %v3515
      %v3627 = vpop.f32.mrf.mxu0
      %v3628 = vadd.f32 0.0, %v3627
      %3629 = vmatmul.f32.gmra.mxu0 %v3518
      %v3630 = vpop.f32.mrf.mxu0
      %v3631 = vadd.f32 0.0, %v3630
      %3632 = vmatmul.f32.gmra.mxu0 %v3521
      %v3633 = vpop.f32.mrf.mxu0
      %v3634 = vadd.f32 0.0, %v3633
      %3635 = vmatmul.f32.gmra.mxu0 %v3524
      %v3636 = vpop.f32.mrf.mxu0
      %v3637 = vadd.f32 0.0, %v3636
      %3638 = vmatmul.f32.gmra.mxu0 %v3527
      %v3639 = vpop.f32.mrf.mxu0
      %v3640 = vadd.f32 0.0, %v3639
      %3641 = vmatmul.f32.gmra.mxu0 %v3530
      %v3642 = vpop.f32.mrf.mxu0
      %v3643 = vadd.f32 0.0, %v3642
      %3644 = vmatmul.f32.gmra.mxu0 %v3533
      %v3645 = vpop.f32.mrf.mxu0
      %v3646 = vadd.f32 0.0, %v3645
      %3647 = vmatmul.f32.gmra.mxu0 %v3536
      %v3648 = vpop.f32.mrf.mxu0
      %v3649 = vadd.f32 0.0, %v3648
      %3650 = vmatmul.f32.gmra.mxu0 %v3539
      %v3651 = vpop.f32.mrf.mxu0
      %v3652 = vadd.f32 0.0, %v3651
      %3653 = vmatmul.f32.gmra.mxu0 %v3542
      %v3654 = vpop.f32.mrf.mxu0
      %v3655 = vadd.f32 0.0, %v3654
      %3656 = vmatmul.f32.gmra.mxu0 %v3545
      %v3657 = vpop.f32.mrf.mxu0
      %v3658 = vadd.f32 0.0, %v3657
      %3659 = vmatmul.f32.gmra.mxu0 %v3548
      %v3660 = vpop.f32.mrf.mxu0
      %v3661 = vadd.f32 0.0, %v3660
      %3662 = vmatmul.f32.gmra.mxu0 %v3551
      %v3663 = vpop.f32.mrf.mxu0
      %v3664 = vadd.f32 0.0, %v3663
      %3665 = vmatmul.f32.gmra.mxu0 %v3554
      %v3666 = vpop.f32.mrf.mxu0
      %v3667 = vadd.f32 0.0, %v3666
      %3668 = vmatmul.f32.gmra.mxu0 %v3557
      %v3669 = vpop.f32.mrf.mxu0
      %v3670 = vadd.f32 0.0, %v3669
      %3671 = vmatmul.f32.gmra.mxu0 %v3560
      %v3672 = vpop.f32.mrf.mxu0
      %v3673 = vadd.f32 0.0, %v3672
      %3674 = vmatmul.f32.gmra.mxu0 %v3563
      %v3675 = vpop.f32.mrf.mxu0
      %v3676 = vadd.f32 0.0, %v3675
      %3677 = vmatmul.f32.gmra.mxu0 %v3566
      %v3678 = vpop.f32.mrf.mxu0
      %v3679 = vadd.f32 0.0, %v3678
      %3680 = vmatmul.f32.gmra.mxu0 %v3569
      %v3681 = vpop.f32.mrf.mxu0
      %v3682 = vadd.f32 0.0, %v3681
      %3683 = vmatmul.f32.gmra.mxu0 %v3572
      %v3684 = vpop.f32.mrf.mxu0
      %v3685 = vadd.f32 0.0, %v3684
      %3686 = vmatmul.f32.gmra.mxu0 %v3575
      %v3687 = vpop.f32.mrf.mxu0
      %v3688 = vadd.f32 0.0, %v3687
      %3689 = vmatmul.f32.gmra.mxu0 %v3578
      %v3690 = vpop.f32.mrf.mxu0
      %v3691 = vadd.f32 0.0, %v3690
      %3692 = vmatmul.f32.gmra.mxu0 %v3581
      %v3693 = vpop.f32.mrf.mxu0
      %v3694 = vadd.f32 0.0, %v3693
      %3695 = vmatmul.f32.gmra.mxu0 %v3584
      %v3696 = vpop.f32.mrf.mxu0
      %v3697 = vadd.f32 0.0, %v3696
      %3698 = vdwg.mxu0
      %v3699 = vadd.f32 %v3362, %v3604
      %v3700 = vadd.f32 %v3365, %v3607
      %v3701 = vadd.f32 %v3368, %v3610
      %v3702 = vadd.f32 %v3371, %v3613
      %v3703 = vadd.f32 %v3374, %v3616
      %v3704 = vadd.f32 %v3377, %v3619
      %v3705 = vadd.f32 %v3380, %v3622
      %v3706 = vadd.f32 %v3383, %v3625
      %v3707 = vadd.f32 %v3386, %v3628
      %v3708 = vadd.f32 %v3389, %v3631
      %v3709 = vadd.f32 %v3392, %v3634
      %v3710 = vadd.f32 %v3395, %v3637
      %v3711 = vadd.f32 %v3398, %v3640
      %v3712 = vadd.f32 %v3401, %v3643
      %v3713 = vadd.f32 %v3404, %v3646
      %v3714 = vadd.f32 %v3407, %v3649
      %v3715 = vadd.f32 %v3410, %v3652
      %v3716 = vadd.f32 %v3413, %v3655
      %v3717 = vadd.f32 %v3416, %v3658
      %v3718 = vadd.f32 %v3419, %v3661
      %v3719 = vadd.f32 %v3422, %v3664
      %v3720 = vadd.f32 %v3425, %v3667
      %v3721 = vadd.f32 %v3428, %v3670
      %v3722 = vadd.f32 %v3431, %v3673
      %v3723 = vadd.f32 %v3434, %v3676
      %v3724 = vadd.f32 %v3437, %v3679
      %v3725 = vadd.f32 %v3440, %v3682
      %v3726 = vadd.f32 %v3443, %v3685
      %v3727 = vadd.f32 %v3446, %v3688
      %v3728 = vadd.f32 %v3449, %v3691
      %v3729 = vadd.f32 %v3452, %v3694
      %v3730 = vadd.f32 %v3455, %v3697
      %v3731 = vld [vmem:[%s2862] sm:$0xff]
      %v3732 = vld [vmem:[%s2862 + $0x8] sm:$0xff]
      %v3733 = vld [vmem:[%s2862 + $0x18] sm:$0xff]
      %v3734 = vld [vmem:[%s2862 + $0x20] sm:$0xff]
      %v3735 = vld [vmem:[%s2862 + $0x30] sm:$0xff]
      %v3736 = vld [vmem:[%s2862 + $0x38] sm:$0xff]
      %v3737 = vld [vmem:[%s2862 + $0x48] sm:$0xff]
      %v3738 = vld [vmem:[%s2862 + $0x50] sm:$0xff]
      %v3739 = vld [vmem:[%s2862 + $0x60] sm:$0xff]
      %v3740 = vld [vmem:[%s2862 + $0x68] sm:$0xff]
      %v3741 = vld [vmem:[%s2862 + $0x78] sm:$0xff]
      %v3742 = vld [vmem:[%s2862 + $0x80] sm:$0xff]
      %v3743 = vld [vmem:[%s2862 + $0x90] sm:$0xff]
      %v3744 = vld [vmem:[%s2862 + $0x98] sm:$0xff]
      %v3745 = vld [vmem:[%s2862 + $0xa8] sm:$0xff]
      %v3746 = vld [vmem:[%s2862 + $0xb0] sm:$0xff]
      %v3747 = vld [vmem:[%s2862 + $0xc0] sm:$0xff]
      %v3748 = vld [vmem:[%s2862 + $0xc8] sm:$0xff]
      %v3749 = vld [vmem:[%s2862 + $0xd8] sm:$0xff]
      %v3750 = vld [vmem:[%s2862 + $0xe0] sm:$0xff]
      %v3751 = vld [vmem:[%s2862 + $0xf0] sm:$0xff]
      %v3752 = vld [vmem:[%s2862 + $0xf8] sm:$0xff]
      %v3753 = vld [vmem:[%s2862 + $0x108] sm:$0xff]
      %v3754 = vld [vmem:[%s2862 + $0x110] sm:$0xff]
      %v3755 = vld [vmem:[%s2862 + $0x120] sm:$0xff]
      %v3756 = vld [vmem:[%s2862 + $0x128] sm:$0xff]
      %v3757 = vld [vmem:[%s2862 + $0x138] sm:$0xff]
      %v3758 = vld [vmem:[%s2862 + $0x140] sm:$0xff]
      %v3759 = vld [vmem:[%s2862 + $0x150] sm:$0xff]
      %v3760 = vld [vmem:[%s2862 + $0x158] sm:$0xff]
      %v3761 = vld [vmem:[%s2862 + $0x168] sm:$0xff]
      %v3762 = vld [vmem:[%s2862 + $0x170] sm:$0xff]
      %v3763 = vld [vmem:[%s2 + $0x18] sm:$0xff]
      %v3765 = vsel %vm237, %v3731, 0
      %v3768 = vsel %vm237, %v3732, 0
      %v3771 = vsel %vm237, %v3733, 0
      %v3774 = vsel %vm237, %v3734, 0
      %v3777 = vsel %vm237, %v3735, 0
      %v3780 = vsel %vm237, %v3736, 0
      %v3783 = vsel %vm237, %v3737, 0
      %v3786 = vsel %vm237, %v3738, 0
      %v3789 = vsel %vm237, %v3739, 0
      %v3792 = vsel %vm237, %v3740, 0
      %v3795 = vsel %vm237, %v3741, 0
      %v3798 = vsel %vm237, %v3742, 0
      %v3801 = vsel %vm237, %v3743, 0
      %v3804 = vsel %vm237, %v3744, 0
      %v3807 = vsel %vm237, %v3745, 0
      %v3810 = vsel %vm237, %v3746, 0
      %v3813 = vsel %vm237, %v3747, 0
      %v3816 = vsel %vm237, %v3748, 0
      %v3819 = vsel %vm237, %v3749, 0
      %v3822 = vsel %vm237, %v3750, 0
      %v3825 = vsel %vm237, %v3751, 0
      %v3828 = vsel %vm237, %v3752, 0
      %v3831 = vsel %vm237, %v3753, 0
      %v3834 = vsel %vm237, %v3754, 0
      %v3837 = vsel %vm237, %v3755, 0
      %v3840 = vsel %vm237, %v3756, 0
      %v3843 = vsel %vm237, %v3757, 0
      %v3846 = vsel %vm237, %v3758, 0
      %v3849 = vsel %vm237, %v3759, 0
      %v3852 = vsel %vm237, %v3760, 0
      %v3855 = vsel %vm237, %v3761, 0
      %v3858 = vsel %vm237, %v3762, 0
      %3860 = vmatpush.msra.mxu0 0.0
      %3861 = vmatpush.msra.mxu0 0.0
      %3862 = vmatpush.msra.mxu0 0.0
      %3863 = vmatpush.msra.mxu0 0.0
      %3864 = vmatpush.msra.mxu0 0.0
      %3865 = vmatpush.msra.mxu0 0.0
      %3866 = vmatpush.msra.mxu0 0.0
      %3867 = vmatpush.msra.mxu0 0.0
      %3868 = vmatpush.msra.mxu0 0.0
      %3869 = vmatpush.msra.mxu0 0.0
      %3870 = vmatpush.msra.mxu0 0.0
      %3871 = vmatpush.msra.mxu0 0.0
      %3872 = vmatpush.msra.mxu0 0.0
      %3873 = vmatpush.msra.mxu0 0.0
      %3874 = vmatpush.msra.mxu0 0.0
      %3875 = vmatpush.msra.mxu0 %v3763
      %3876 = vmatmul.f32.gmra.mxu0 %v3765
      %v3877 = vpop.f32.mrf.mxu0
      %v3878 = vadd.f32 0.0, %v3877
      %3879 = vmatmul.f32.gmra.mxu0 %v3768
      %v3880 = vpop.f32.mrf.mxu0
      %v3881 = vadd.f32 0.0, %v3880
      %3882 = vmatmul.f32.gmra.mxu0 %v3771
      %v3883 = vpop.f32.mrf.mxu0
      %v3884 = vadd.f32 0.0, %v3883
      %3885 = vmatmul.f32.gmra.mxu0 %v3774
      %v3886 = vpop.f32.mrf.mxu0
      %v3887 = vadd.f32 0.0, %v3886
      %3888 = vmatmul.f32.gmra.mxu0 %v3777
      %v3889 = vpop.f32.mrf.mxu0
      %v3890 = vadd.f32 0.0, %v3889
      %3891 = vmatmul.f32.gmra.mxu0 %v3780
      %v3892 = vpop.f32.mrf.mxu0
      %v3893 = vadd.f32 0.0, %v3892
      %3894 = vmatmul.f32.gmra.mxu0 %v3783
      %v3895 = vpop.f32.mrf.mxu0
      %v3896 = vadd.f32 0.0, %v3895
      %3897 = vmatmul.f32.gmra.mxu0 %v3786
      %v3898 = vpop.f32.mrf.mxu0
      %v3899 = vadd.f32 0.0, %v3898
      %3900 = vmatmul.f32.gmra.mxu0 %v3789
      %v3901 = vpop.f32.mrf.mxu0
      %v3902 = vadd.f32 0.0, %v3901
      %3903 = vmatmul.f32.gmra.mxu0 %v3792
      %v3904 = vpop.f32.mrf.mxu0
      %v3905 = vadd.f32 0.0, %v3904
      %3906 = vmatmul.f32.gmra.mxu0 %v3795
      %v3907 = vpop.f32.mrf.mxu0
      %v3908 = vadd.f32 0.0, %v3907
      %3909 = vmatmul.f32.gmra.mxu0 %v3798
      %v3910 = vpop.f32.mrf.mxu0
      %v3911 = vadd.f32 0.0, %v3910
      %3912 = vmatmul.f32.gmra.mxu0 %v3801
      %v3913 = vpop.f32.mrf.mxu0
      %v3914 = vadd.f32 0.0, %v3913
      %3915 = vmatmul.f32.gmra.mxu0 %v3804
      %v3916 = vpop.f32.mrf.mxu0
      %v3917 = vadd.f32 0.0, %v3916
      %3918 = vmatmul.f32.gmra.mxu0 %v3807
      %v3919 = vpop.f32.mrf.mxu0
      %v3920 = vadd.f32 0.0, %v3919
      %3921 = vmatmul.f32.gmra.mxu0 %v3810
      %v3922 = vpop.f32.mrf.mxu0
      %v3923 = vadd.f32 0.0, %v3922
      %3924 = vmatmul.f32.gmra.mxu0 %v3813
      %v3925 = vpop.f32.mrf.mxu0
      %v3926 = vadd.f32 0.0, %v3925
      %3927 = vmatmul.f32.gmra.mxu0 %v3816
      %v3928 = vpop.f32.mrf.mxu0
      %v3929 = vadd.f32 0.0, %v3928
      %3930 = vmatmul.f32.gmra.mxu0 %v3819
      %v3931 = vpop.f32.mrf.mxu0
      %v3932 = vadd.f32 0.0, %v3931
      %3933 = vmatmul.f32.gmra.mxu0 %v3822
      %v3934 = vpop.f32.mrf.mxu0
      %v3935 = vadd.f32 0.0, %v3934
      %3936 = vmatmul.f32.gmra.mxu0 %v3825
      %v3937 = vpop.f32.mrf.mxu0
      %v3938 = vadd.f32 0.0, %v3937
      %3939 = vmatmul.f32.gmra.mxu0 %v3828
      %v3940 = vpop.f32.mrf.mxu0
      %v3941 = vadd.f32 0.0, %v3940
      %3942 = vmatmul.f32.gmra.mxu0 %v3831
      %v3943 = vpop.f32.mrf.mxu0
      %v3944 = vadd.f32 0.0, %v3943
      %3945 = vmatmul.f32.gmra.mxu0 %v3834
      %v3946 = vpop.f32.mrf.mxu0
      %v3947 = vadd.f32 0.0, %v3946
      %3948 = vmatmul.f32.gmra.mxu0 %v3837
      %v3949 = vpop.f32.mrf.mxu0
      %v3950 = vadd.f32 0.0, %v3949
      %3951 = vmatmul.f32.gmra.mxu0 %v3840
      %v3952 = vpop.f32.mrf.mxu0
      %v3953 = vadd.f32 0.0, %v3952
      %3954 = vmatmul.f32.gmra.mxu0 %v3843
      %v3955 = vpop.f32.mrf.mxu0
      %v3956 = vadd.f32 0.0, %v3955
      %3957 = vmatmul.f32.gmra.mxu0 %v3846
      %v3958 = vpop.f32.mrf.mxu0
      %v3959 = vadd.f32 0.0, %v3958
      %3960 = vmatmul.f32.gmra.mxu0 %v3849
      %v3961 = vpop.f32.mrf.mxu0
      %v3962 = vadd.f32 0.0, %v3961
      %3963 = vmatmul.f32.gmra.mxu0 %v3852
      %v3964 = vpop.f32.mrf.mxu0
      %v3965 = vadd.f32 0.0, %v3964
      %3966 = vmatmul.f32.gmra.mxu0 %v3855
      %v3967 = vpop.f32.mrf.mxu0
      %v3968 = vadd.f32 0.0, %v3967
      %3969 = vmatmul.f32.gmra.mxu0 %v3858
      %v3970 = vpop.f32.mrf.mxu0
      %v3971 = vadd.f32 0.0, %v3970
      %3972 = vdwg.mxu0
      %v3973 = vadd.f32 %v3699, %v3878
      %v3974 = vadd.f32 %v3700, %v3881
      %v3975 = vadd.f32 %v3701, %v3884
      %v3976 = vadd.f32 %v3702, %v3887
      %v3977 = vadd.f32 %v3703, %v3890
      %v3978 = vadd.f32 %v3704, %v3893
      %v3979 = vadd.f32 %v3705, %v3896
      %v3980 = vadd.f32 %v3706, %v3899
      %v3981 = vadd.f32 %v3707, %v3902
      %v3982 = vadd.f32 %v3708, %v3905
      %v3983 = vadd.f32 %v3709, %v3908
      %v3984 = vadd.f32 %v3710, %v3911
      %v3985 = vadd.f32 %v3711, %v3914
      %v3986 = vadd.f32 %v3712, %v3917
      %v3987 = vadd.f32 %v3713, %v3920
      %v3988 = vadd.f32 %v3714, %v3923
      %v3989 = vadd.f32 %v3715, %v3926
      %v3990 = vadd.f32 %v3716, %v3929
      %v3991 = vadd.f32 %v3717, %v3932
      %v3992 = vadd.f32 %v3718, %v3935
      %v3993 = vadd.f32 %v3719, %v3938
      %v3994 = vadd.f32 %v3720, %v3941
      %v3995 = vadd.f32 %v3721, %v3944
      %v3996 = vadd.f32 %v3722, %v3947
      %v3997 = vadd.f32 %v3723, %v3950
      %v3998 = vadd.f32 %v3724, %v3953
      %v3999 = vadd.f32 %v3725, %v3956
      %v4000 = vadd.f32 %v3726, %v3959
      %v4001 = vadd.f32 %v3727, %v3962
      %v4002 = vadd.f32 %v3728, %v3965
      %v4003 = vadd.f32 %v3729, %v3968
      %v4004 = vadd.f32 %v3730, %v3971
      %v4005 = vld [vmem:[%s2862 + $0x1] sm:$0xff]
      %v4006 = vld [vmem:[%s2862 + $0x9] sm:$0xff]
      %v4007 = vld [vmem:[%s2862 + $0x19] sm:$0xff]
      %v4008 = vld [vmem:[%s2862 + $0x21] sm:$0xff]
      %v4009 = vld [vmem:[%s2862 + $0x31] sm:$0xff]
      %v4010 = vld [vmem:[%s2862 + $0x39] sm:$0xff]
      %v4011 = vld [vmem:[%s2862 + $0x49] sm:$0xff]
      %v4012 = vld [vmem:[%s2862 + $0x51] sm:$0xff]
      %v4013 = vld [vmem:[%s2862 + $0x61] sm:$0xff]
      %v4014 = vld [vmem:[%s2862 + $0x69] sm:$0xff]
      %v4015 = vld [vmem:[%s2862 + $0x79] sm:$0xff]
      %v4016 = vld [vmem:[%s2862 + $0x81] sm:$0xff]
      %v4017 = vld [vmem:[%s2862 + $0x91] sm:$0xff]
      %v4018 = vld [vmem:[%s2862 + $0x99] sm:$0xff]
      %v4019 = vld [vmem:[%s2862 + $0xa9] sm:$0xff]
      %v4020 = vld [vmem:[%s2862 + $0xb1] sm:$0xff]
      %v4021 = vld [vmem:[%s2862 + $0xc1] sm:$0xff]
      %v4022 = vld [vmem:[%s2862 + $0xc9] sm:$0xff]
      %v4023 = vld [vmem:[%s2862 + $0xd9] sm:$0xff]
      %v4024 = vld [vmem:[%s2862 + $0xe1] sm:$0xff]
      %v4025 = vld [vmem:[%s2862 + $0xf1] sm:$0xff]
      %v4026 = vld [vmem:[%s2862 + $0xf9] sm:$0xff]
      %v4027 = vld [vmem:[%s2862 + $0x109] sm:$0xff]
      %v4028 = vld [vmem:[%s2862 + $0x111] sm:$0xff]
      %v4029 = vld [vmem:[%s2862 + $0x121] sm:$0xff]
      %v4030 = vld [vmem:[%s2862 + $0x129] sm:$0xff]
      %v4031 = vld [vmem:[%s2862 + $0x139] sm:$0xff]
      %v4032 = vld [vmem:[%s2862 + $0x141] sm:$0xff]
      %v4033 = vld [vmem:[%s2862 + $0x151] sm:$0xff]
      %v4034 = vld [vmem:[%s2862 + $0x159] sm:$0xff]
      %v4035 = vld [vmem:[%s2862 + $0x169] sm:$0xff]
      %v4036 = vld [vmem:[%s2862 + $0x171] sm:$0xff]
      %v4037 = vld [vmem:[%s2 + $0x20] sm:$0xff]
      %v4039 = vsel %vm237, %v4005, 0
      %v4042 = vsel %vm237, %v4006, 0
      %v4045 = vsel %vm237, %v4007, 0
      %v4048 = vsel %vm237, %v4008, 0
      %v4051 = vsel %vm237, %v4009, 0
      %v4054 = vsel %vm237, %v4010, 0
      %v4057 = vsel %vm237, %v4011, 0
      %v4060 = vsel %vm237, %v4012, 0
      %v4063 = vsel %vm237, %v4013, 0
      %v4066 = vsel %vm237, %v4014, 0
      %v4069 = vsel %vm237, %v4015, 0
      %v4072 = vsel %vm237, %v4016, 0
      %v4075 = vsel %vm237, %v4017, 0
      %v4078 = vsel %vm237, %v4018, 0
      %v4081 = vsel %vm237, %v4019, 0
      %v4084 = vsel %vm237, %v4020, 0
      %v4087 = vsel %vm237, %v4021, 0
      %v4090 = vsel %vm237, %v4022, 0
      %v4093 = vsel %vm237, %v4023, 0
      %v4096 = vsel %vm237, %v4024, 0
      %v4099 = vsel %vm237, %v4025, 0
      %v4102 = vsel %vm237, %v4026, 0
      %v4105 = vsel %vm237, %v4027, 0
      %v4108 = vsel %vm237, %v4028, 0
      %v4111 = vsel %vm237, %v4029, 0
      %v4114 = vsel %vm237, %v4030, 0
      %v4117 = vsel %vm237, %v4031, 0
      %v4120 = vsel %vm237, %v4032, 0
      %v4123 = vsel %vm237, %v4033, 0
      %v4126 = vsel %vm237, %v4034, 0
      %v4129 = vsel %vm237, %v4035, 0
      %v4132 = vsel %vm237, %v4036, 0
      %4134 = vmatpush.msra.mxu0 0.0
      %4135 = vmatpush.msra.mxu0 0.0
      %4136 = vmatpush.msra.mxu0 0.0
      %4137 = vmatpush.msra.mxu0 0.0
      %4138 = vmatpush.msra.mxu0 0.0
      %4139 = vmatpush.msra.mxu0 0.0
      %4140 = vmatpush.msra.mxu0 0.0
      %4141 = vmatpush.msra.mxu0 0.0
      %4142 = vmatpush.msra.mxu0 0.0
      %4143 = vmatpush.msra.mxu0 0.0
      %4144 = vmatpush.msra.mxu0 0.0
      %4145 = vmatpush.msra.mxu0 0.0
      %4146 = vmatpush.msra.mxu0 0.0
      %4147 = vmatpush.msra.mxu0 0.0
      %4148 = vmatpush.msra.mxu0 0.0
      %4149 = vmatpush.msra.mxu0 %v4037
      %4150 = vmatmul.f32.gmra.mxu0 %v4039
      %v4151 = vpop.f32.mrf.mxu0
      %v4152 = vadd.f32 0.0, %v4151
      %4153 = vmatmul.f32.gmra.mxu0 %v4042
      %v4154 = vpop.f32.mrf.mxu0
      %v4155 = vadd.f32 0.0, %v4154
      %4156 = vmatmul.f32.gmra.mxu0 %v4045
      %v4157 = vpop.f32.mrf.mxu0
      %v4158 = vadd.f32 0.0, %v4157
      %4159 = vmatmul.f32.gmra.mxu0 %v4048
      %v4160 = vpop.f32.mrf.mxu0
      %v4161 = vadd.f32 0.0, %v4160
      %4162 = vmatmul.f32.gmra.mxu0 %v4051
      %v4163 = vpop.f32.mrf.mxu0
      %v4164 = vadd.f32 0.0, %v4163
      %4165 = vmatmul.f32.gmra.mxu0 %v4054
      %v4166 = vpop.f32.mrf.mxu0
      %v4167 = vadd.f32 0.0, %v4166
      %4168 = vmatmul.f32.gmra.mxu0 %v4057
      %v4169 = vpop.f32.mrf.mxu0
      %v4170 = vadd.f32 0.0, %v4169
      %4171 = vmatmul.f32.gmra.mxu0 %v4060
      %v4172 = vpop.f32.mrf.mxu0
      %v4173 = vadd.f32 0.0, %v4172
      %4174 = vmatmul.f32.gmra.mxu0 %v4063
      %v4175 = vpop.f32.mrf.mxu0
      %v4176 = vadd.f32 0.0, %v4175
      %4177 = vmatmul.f32.gmra.mxu0 %v4066
      %v4178 = vpop.f32.mrf.mxu0
      %v4179 = vadd.f32 0.0, %v4178
      %4180 = vmatmul.f32.gmra.mxu0 %v4069
      %v4181 = vpop.f32.mrf.mxu0
      %v4182 = vadd.f32 0.0, %v4181
      %4183 = vmatmul.f32.gmra.mxu0 %v4072
      %v4184 = vpop.f32.mrf.mxu0
      %v4185 = vadd.f32 0.0, %v4184
      %4186 = vmatmul.f32.gmra.mxu0 %v4075
      %v4187 = vpop.f32.mrf.mxu0
      %v4188 = vadd.f32 0.0, %v4187
      %4189 = vmatmul.f32.gmra.mxu0 %v4078
      %v4190 = vpop.f32.mrf.mxu0
      %v4191 = vadd.f32 0.0, %v4190
      %4192 = vmatmul.f32.gmra.mxu0 %v4081
      %v4193 = vpop.f32.mrf.mxu0
      %v4194 = vadd.f32 0.0, %v4193
      %4195 = vmatmul.f32.gmra.mxu0 %v4084
      %v4196 = vpop.f32.mrf.mxu0
      %v4197 = vadd.f32 0.0, %v4196
      %4198 = vmatmul.f32.gmra.mxu0 %v4087
      %v4199 = vpop.f32.mrf.mxu0
      %v4200 = vadd.f32 0.0, %v4199
      %4201 = vmatmul.f32.gmra.mxu0 %v4090
      %v4202 = vpop.f32.mrf.mxu0
      %v4203 = vadd.f32 0.0, %v4202
      %4204 = vmatmul.f32.gmra.mxu0 %v4093
      %v4205 = vpop.f32.mrf.mxu0
      %v4206 = vadd.f32 0.0, %v4205
      %4207 = vmatmul.f32.gmra.mxu0 %v4096
      %v4208 = vpop.f32.mrf.mxu0
      %v4209 = vadd.f32 0.0, %v4208
      %4210 = vmatmul.f32.gmra.mxu0 %v4099
      %v4211 = vpop.f32.mrf.mxu0
      %v4212 = vadd.f32 0.0, %v4211
      %4213 = vmatmul.f32.gmra.mxu0 %v4102
      %v4214 = vpop.f32.mrf.mxu0
      %v4215 = vadd.f32 0.0, %v4214
      %4216 = vmatmul.f32.gmra.mxu0 %v4105
      %v4217 = vpop.f32.mrf.mxu0
      %v4218 = vadd.f32 0.0, %v4217
      %4219 = vmatmul.f32.gmra.mxu0 %v4108
      %v4220 = vpop.f32.mrf.mxu0
      %v4221 = vadd.f32 0.0, %v4220
      %4222 = vmatmul.f32.gmra.mxu0 %v4111
      %v4223 = vpop.f32.mrf.mxu0
      %v4224 = vadd.f32 0.0, %v4223
      %4225 = vmatmul.f32.gmra.mxu0 %v4114
      %v4226 = vpop.f32.mrf.mxu0
      %v4227 = vadd.f32 0.0, %v4226
      %4228 = vmatmul.f32.gmra.mxu0 %v4117
      %v4229 = vpop.f32.mrf.mxu0
      %v4230 = vadd.f32 0.0, %v4229
      %4231 = vmatmul.f32.gmra.mxu0 %v4120
      %v4232 = vpop.f32.mrf.mxu0
      %v4233 = vadd.f32 0.0, %v4232
      %4234 = vmatmul.f32.gmra.mxu0 %v4123
      %v4235 = vpop.f32.mrf.mxu0
      %v4236 = vadd.f32 0.0, %v4235
      %4237 = vmatmul.f32.gmra.mxu0 %v4126
      %v4238 = vpop.f32.mrf.mxu0
      %v4239 = vadd.f32 0.0, %v4238
      %4240 = vmatmul.f32.gmra.mxu0 %v4129
      %v4241 = vpop.f32.mrf.mxu0
      %v4242 = vadd.f32 0.0, %v4241
      %4243 = vmatmul.f32.gmra.mxu0 %v4132
      %v4244 = vpop.f32.mrf.mxu0
      %v4245 = vadd.f32 0.0, %v4244
      %4246 = vdwg.mxu0
      %v4247 = vadd.f32 %v3973, %v4152
      %v4248 = vadd.f32 %v3974, %v4155
      %v4249 = vadd.f32 %v3975, %v4158
      %v4250 = vadd.f32 %v3976, %v4161
      %v4251 = vadd.f32 %v3977, %v4164
      %v4252 = vadd.f32 %v3978, %v4167
      %v4253 = vadd.f32 %v3979, %v4170
      %v4254 = vadd.f32 %v3980, %v4173
      %v4255 = vadd.f32 %v3981, %v4176
      %v4256 = vadd.f32 %v3982, %v4179
      %v4257 = vadd.f32 %v3983, %v4182
      %v4258 = vadd.f32 %v3984, %v4185
      %v4259 = vadd.f32 %v3985, %v4188
      %v4260 = vadd.f32 %v3986, %v4191
      %v4261 = vadd.f32 %v3987, %v4194
      %v4262 = vadd.f32 %v3988, %v4197
      %v4263 = vadd.f32 %v3989, %v4200
      %v4264 = vadd.f32 %v3990, %v4203
      %v4265 = vadd.f32 %v3991, %v4206
      %v4266 = vadd.f32 %v3992, %v4209
      %v4267 = vadd.f32 %v3993, %v4212
      %v4268 = vadd.f32 %v3994, %v4215
      %v4269 = vadd.f32 %v3995, %v4218
      %v4270 = vadd.f32 %v3996, %v4221
      %v4271 = vadd.f32 %v3997, %v4224
      %v4272 = vadd.f32 %v3998, %v4227
      %v4273 = vadd.f32 %v3999, %v4230
      %v4274 = vadd.f32 %v4000, %v4233
      %v4275 = vadd.f32 %v4001, %v4236
      %v4276 = vadd.f32 %v4002, %v4239
      %v4277 = vadd.f32 %v4003, %v4242
      %v4278 = vadd.f32 %v4004, %v4245
      %v4279 = vld [vmem:[%s2862 + $0x2] sm:$0xff]
      %v4280 = vld [vmem:[%s2862 + $0xa] sm:$0xff]
      %v4281 = vld [vmem:[%s2862 + $0x1a] sm:$0xff]
      %v4282 = vld [vmem:[%s2862 + $0x22] sm:$0xff]
      %v4283 = vld [vmem:[%s2862 + $0x32] sm:$0xff]
      %v4284 = vld [vmem:[%s2862 + $0x3a] sm:$0xff]
      %v4285 = vld [vmem:[%s2862 + $0x4a] sm:$0xff]
      %v4286 = vld [vmem:[%s2862 + $0x52] sm:$0xff]
      %v4287 = vld [vmem:[%s2862 + $0x62] sm:$0xff]
      %v4288 = vld [vmem:[%s2862 + $0x6a] sm:$0xff]
      %v4289 = vld [vmem:[%s2862 + $0x7a] sm:$0xff]
      %v4290 = vld [vmem:[%s2862 + $0x82] sm:$0xff]
      %v4291 = vld [vmem:[%s2862 + $0x92] sm:$0xff]
      %v4292 = vld [vmem:[%s2862 + $0x9a] sm:$0xff]
      %v4293 = vld [vmem:[%s2862 + $0xaa] sm:$0xff]
      %v4294 = vld [vmem:[%s2862 + $0xb2] sm:$0xff]
      %v4295 = vld [vmem:[%s2862 + $0xc2] sm:$0xff]
      %v4296 = vld [vmem:[%s2862 + $0xca] sm:$0xff]
      %v4297 = vld [vmem:[%s2862 + $0xda] sm:$0xff]
      %v4298 = vld [vmem:[%s2862 + $0xe2] sm:$0xff]
      %v4299 = vld [vmem:[%s2862 + $0xf2] sm:$0xff]
      %v4300 = vld [vmem:[%s2862 + $0xfa] sm:$0xff]
      %v4301 = vld [vmem:[%s2862 + $0x10a] sm:$0xff]
      %v4302 = vld [vmem:[%s2862 + $0x112] sm:$0xff]
      %v4303 = vld [vmem:[%s2862 + $0x122] sm:$0xff]
      %v4304 = vld [vmem:[%s2862 + $0x12a] sm:$0xff]
      %v4305 = vld [vmem:[%s2862 + $0x13a] sm:$0xff]
      %v4306 = vld [vmem:[%s2862 + $0x142] sm:$0xff]
      %v4307 = vld [vmem:[%s2862 + $0x152] sm:$0xff]
      %v4308 = vld [vmem:[%s2862 + $0x15a] sm:$0xff]
      %v4309 = vld [vmem:[%s2862 + $0x16a] sm:$0xff]
      %v4310 = vld [vmem:[%s2862 + $0x172] sm:$0xff]
      %v4311 = vld [vmem:[%s2 + $0x28] sm:$0xff]
      %v4313 = vsel %vm237, %v4279, 0
      %v4316 = vsel %vm237, %v4280, 0
      %v4319 = vsel %vm237, %v4281, 0
      %v4322 = vsel %vm237, %v4282, 0
      %v4325 = vsel %vm237, %v4283, 0
      %v4328 = vsel %vm237, %v4284, 0
      %v4331 = vsel %vm237, %v4285, 0
      %v4334 = vsel %vm237, %v4286, 0
      %v4337 = vsel %vm237, %v4287, 0
      %v4340 = vsel %vm237, %v4288, 0
      %v4343 = vsel %vm237, %v4289, 0
      %v4346 = vsel %vm237, %v4290, 0
      %v4349 = vsel %vm237, %v4291, 0
      %v4352 = vsel %vm237, %v4292, 0
      %v4355 = vsel %vm237, %v4293, 0
      %v4358 = vsel %vm237, %v4294, 0
      %v4361 = vsel %vm237, %v4295, 0
      %v4364 = vsel %vm237, %v4296, 0
      %v4367 = vsel %vm237, %v4297, 0
      %v4370 = vsel %vm237, %v4298, 0
      %v4373 = vsel %vm237, %v4299, 0
      %v4376 = vsel %vm237, %v4300, 0
      %v4379 = vsel %vm237, %v4301, 0
      %v4382 = vsel %vm237, %v4302, 0
      %v4385 = vsel %vm237, %v4303, 0
      %v4388 = vsel %vm237, %v4304, 0
      %v4391 = vsel %vm237, %v4305, 0
      %v4394 = vsel %vm237, %v4306, 0
      %v4397 = vsel %vm237, %v4307, 0
      %v4400 = vsel %vm237, %v4308, 0
      %v4403 = vsel %vm237, %v4309, 0
      %v4406 = vsel %vm237, %v4310, 0
      %4408 = vmatpush.msra.mxu0 0.0
      %4409 = vmatpush.msra.mxu0 0.0
      %4410 = vmatpush.msra.mxu0 0.0
      %4411 = vmatpush.msra.mxu0 0.0
      %4412 = vmatpush.msra.mxu0 0.0
      %4413 = vmatpush.msra.mxu0 0.0
      %4414 = vmatpush.msra.mxu0 0.0
      %4415 = vmatpush.msra.mxu0 0.0
      %4416 = vmatpush.msra.mxu0 0.0
      %4417 = vmatpush.msra.mxu0 0.0
      %4418 = vmatpush.msra.mxu0 0.0
      %4419 = vmatpush.msra.mxu0 0.0
      %4420 = vmatpush.msra.mxu0 0.0
      %4421 = vmatpush.msra.mxu0 0.0
      %4422 = vmatpush.msra.mxu0 0.0
      %4423 = vmatpush.msra.mxu0 %v4311
      %4424 = vmatmul.f32.gmra.mxu0 %v4313
      %v4425 = vpop.f32.mrf.mxu0
      %v4426 = vadd.f32 0.0, %v4425
      %4427 = vmatmul.f32.gmra.mxu0 %v4316
      %v4428 = vpop.f32.mrf.mxu0
      %v4429 = vadd.f32 0.0, %v4428
      %4430 = vmatmul.f32.gmra.mxu0 %v4319
      %v4431 = vpop.f32.mrf.mxu0
      %v4432 = vadd.f32 0.0, %v4431
      %4433 = vmatmul.f32.gmra.mxu0 %v4322
      %v4434 = vpop.f32.mrf.mxu0
      %v4435 = vadd.f32 0.0, %v4434
      %4436 = vmatmul.f32.gmra.mxu0 %v4325
      %v4437 = vpop.f32.mrf.mxu0
      %v4438 = vadd.f32 0.0, %v4437
      %4439 = vmatmul.f32.gmra.mxu0 %v4328
      %v4440 = vpop.f32.mrf.mxu0
      %v4441 = vadd.f32 0.0, %v4440
      %4442 = vmatmul.f32.gmra.mxu0 %v4331
      %v4443 = vpop.f32.mrf.mxu0
      %v4444 = vadd.f32 0.0, %v4443
      %4445 = vmatmul.f32.gmra.mxu0 %v4334
      %v4446 = vpop.f32.mrf.mxu0
      %v4447 = vadd.f32 0.0, %v4446
      %4448 = vmatmul.f32.gmra.mxu0 %v4337
      %v4449 = vpop.f32.mrf.mxu0
      %v4450 = vadd.f32 0.0, %v4449
      %4451 = vmatmul.f32.gmra.mxu0 %v4340
      %v4452 = vpop.f32.mrf.mxu0
      %v4453 = vadd.f32 0.0, %v4452
      %4454 = vmatmul.f32.gmra.mxu0 %v4343
      %v4455 = vpop.f32.mrf.mxu0
      %v4456 = vadd.f32 0.0, %v4455
      %4457 = vmatmul.f32.gmra.mxu0 %v4346
      %v4458 = vpop.f32.mrf.mxu0
      %v4459 = vadd.f32 0.0, %v4458
      %4460 = vmatmul.f32.gmra.mxu0 %v4349
      %v4461 = vpop.f32.mrf.mxu0
      %v4462 = vadd.f32 0.0, %v4461
      %4463 = vmatmul.f32.gmra.mxu0 %v4352
      %v4464 = vpop.f32.mrf.mxu0
      %v4465 = vadd.f32 0.0, %v4464
      %4466 = vmatmul.f32.gmra.mxu0 %v4355
      %v4467 = vpop.f32.mrf.mxu0
      %v4468 = vadd.f32 0.0, %v4467
      %4469 = vmatmul.f32.gmra.mxu0 %v4358
      %v4470 = vpop.f32.mrf.mxu0
      %v4471 = vadd.f32 0.0, %v4470
      %4472 = vmatmul.f32.gmra.mxu0 %v4361
      %v4473 = vpop.f32.mrf.mxu0
      %v4474 = vadd.f32 0.0, %v4473
      %4475 = vmatmul.f32.gmra.mxu0 %v4364
      %v4476 = vpop.f32.mrf.mxu0
      %v4477 = vadd.f32 0.0, %v4476
      %4478 = vmatmul.f32.gmra.mxu0 %v4367
      %v4479 = vpop.f32.mrf.mxu0
      %v4480 = vadd.f32 0.0, %v4479
      %4481 = vmatmul.f32.gmra.mxu0 %v4370
      %v4482 = vpop.f32.mrf.mxu0
      %v4483 = vadd.f32 0.0, %v4482
      %4484 = vmatmul.f32.gmra.mxu0 %v4373
      %v4485 = vpop.f32.mrf.mxu0
      %v4486 = vadd.f32 0.0, %v4485
      %4487 = vmatmul.f32.gmra.mxu0 %v4376
      %v4488 = vpop.f32.mrf.mxu0
      %v4489 = vadd.f32 0.0, %v4488
      %4490 = vmatmul.f32.gmra.mxu0 %v4379
      %v4491 = vpop.f32.mrf.mxu0
      %v4492 = vadd.f32 0.0, %v4491
      %4493 = vmatmul.f32.gmra.mxu0 %v4382
      %v4494 = vpop.f32.mrf.mxu0
      %v4495 = vadd.f32 0.0, %v4494
      %4496 = vmatmul.f32.gmra.mxu0 %v4385
      %v4497 = vpop.f32.mrf.mxu0
      %v4498 = vadd.f32 0.0, %v4497
      %4499 = vmatmul.f32.gmra.mxu0 %v4388
      %v4500 = vpop.f32.mrf.mxu0
      %v4501 = vadd.f32 0.0, %v4500
      %4502 = vmatmul.f32.gmra.mxu0 %v4391
      %v4503 = vpop.f32.mrf.mxu0
      %v4504 = vadd.f32 0.0, %v4503
      %4505 = vmatmul.f32.gmra.mxu0 %v4394
      %v4506 = vpop.f32.mrf.mxu0
      %v4507 = vadd.f32 0.0, %v4506
      %4508 = vmatmul.f32.gmra.mxu0 %v4397
      %v4509 = vpop.f32.mrf.mxu0
      %v4510 = vadd.f32 0.0, %v4509
      %4511 = vmatmul.f32.gmra.mxu0 %v4400
      %v4512 = vpop.f32.mrf.mxu0
      %v4513 = vadd.f32 0.0, %v4512
      %4514 = vmatmul.f32.gmra.mxu0 %v4403
      %v4515 = vpop.f32.mrf.mxu0
      %v4516 = vadd.f32 0.0, %v4515
      %4517 = vmatmul.f32.gmra.mxu0 %v4406
      %v4518 = vpop.f32.mrf.mxu0
      %v4519 = vadd.f32 0.0, %v4518
      %4520 = vdwg.mxu0
      %v4521 = vadd.f32 %v4247, %v4426
      %v4522 = vadd.f32 %v4248, %v4429
      %v4523 = vadd.f32 %v4249, %v4432
      %v4524 = vadd.f32 %v4250, %v4435
      %v4525 = vadd.f32 %v4251, %v4438
      %v4526 = vadd.f32 %v4252, %v4441
      %v4527 = vadd.f32 %v4253, %v4444
      %v4528 = vadd.f32 %v4254, %v4447
      %v4529 = vadd.f32 %v4255, %v4450
      %v4530 = vadd.f32 %v4256, %v4453
      %v4531 = vadd.f32 %v4257, %v4456
      %v4532 = vadd.f32 %v4258, %v4459
      %v4533 = vadd.f32 %v4259, %v4462
      %v4534 = vadd.f32 %v4260, %v4465
      %v4535 = vadd.f32 %v4261, %v4468
      %v4536 = vadd.f32 %v4262, %v4471
      %v4537 = vadd.f32 %v4263, %v4474
      %v4538 = vadd.f32 %v4264, %v4477
      %v4539 = vadd.f32 %v4265, %v4480
      %v4540 = vadd.f32 %v4266, %v4483
      %v4541 = vadd.f32 %v4267, %v4486
      %v4542 = vadd.f32 %v4268, %v4489
      %v4543 = vadd.f32 %v4269, %v4492
      %v4544 = vadd.f32 %v4270, %v4495
      %v4545 = vadd.f32 %v4271, %v4498
      %v4546 = vadd.f32 %v4272, %v4501
      %v4547 = vadd.f32 %v4273, %v4504
      %v4548 = vadd.f32 %v4274, %v4507
      %v4549 = vadd.f32 %v4275, %v4510
      %v4550 = vadd.f32 %v4276, %v4513
      %v4551 = vadd.f32 %v4277, %v4516
      %v4552 = vadd.f32 %v4278, %v4519
      %s4553 = scalar_lea.vmem [#allocation2], 48
      %v4554 = vld [vmem:[%s4553] sm:$0xff]
      %v4555 = vld [vmem:[%s4553 + $0x8] sm:$0xff]
      %v4556 = vld [vmem:[%s4553 + $0x18] sm:$0xff]
      %v4557 = vld [vmem:[%s4553 + $0x20] sm:$0xff]
      %v4558 = vld [vmem:[%s4553 + $0x30] sm:$0xff]
      %v4559 = vld [vmem:[%s4553 + $0x38] sm:$0xff]
      %v4560 = vld [vmem:[%s4553 + $0x48] sm:$0xff]
      %v4561 = vld [vmem:[%s4553 + $0x50] sm:$0xff]
      %v4562 = vld [vmem:[%s4553 + $0x60] sm:$0xff]
      %v4563 = vld [vmem:[%s4553 + $0x68] sm:$0xff]
      %v4564 = vld [vmem:[%s4553 + $0x78] sm:$0xff]
      %v4565 = vld [vmem:[%s4553 + $0x80] sm:$0xff]
      %v4566 = vld [vmem:[%s4553 + $0x90] sm:$0xff]
      %v4567 = vld [vmem:[%s4553 + $0x98] sm:$0xff]
      %v4568 = vld [vmem:[%s4553 + $0xa8] sm:$0xff]
      %v4569 = vld [vmem:[%s4553 + $0xb0] sm:$0xff]
      %v4570 = vld [vmem:[%s4553 + $0xc0] sm:$0xff]
      %v4571 = vld [vmem:[%s4553 + $0xc8] sm:$0xff]
      %v4572 = vld [vmem:[%s4553 + $0xd8] sm:$0xff]
      %v4573 = vld [vmem:[%s4553 + $0xe0] sm:$0xff]
      %v4574 = vld [vmem:[%s4553 + $0xf0] sm:$0xff]
      %v4575 = vld [vmem:[%s4553 + $0xf8] sm:$0xff]
      %v4576 = vld [vmem:[%s4553 + $0x108] sm:$0xff]
      %v4577 = vld [vmem:[%s4553 + $0x110] sm:$0xff]
      %v4578 = vld [vmem:[%s4553 + $0x120] sm:$0xff]
      %v4579 = vld [vmem:[%s4553 + $0x128] sm:$0xff]
      %v4580 = vld [vmem:[%s4553 + $0x138] sm:$0xff]
      %v4581 = vld [vmem:[%s4553 + $0x140] sm:$0xff]
      %v4582 = vld [vmem:[%s4553 + $0x150] sm:$0xff]
      %v4583 = vld [vmem:[%s4553 + $0x158] sm:$0xff]
      %v4584 = vld [vmem:[%s4553 + $0x168] sm:$0xff]
      %v4585 = vld [vmem:[%s4553 + $0x170] sm:$0xff]
      %v4586 = vld [vmem:[%s2 + $0x30] sm:$0xff]
      %v4588 = vsel %vm237, %v4554, 0
      %v4591 = vsel %vm237, %v4555, 0
      %v4594 = vsel %vm237, %v4556, 0
      %v4597 = vsel %vm237, %v4557, 0
      %v4600 = vsel %vm237, %v4558, 0
      %v4603 = vsel %vm237, %v4559, 0
      %v4606 = vsel %vm237, %v4560, 0
      %v4609 = vsel %vm237, %v4561, 0
      %v4612 = vsel %vm237, %v4562, 0
      %v4615 = vsel %vm237, %v4563, 0
      %v4618 = vsel %vm237, %v4564, 0
      %v4621 = vsel %vm237, %v4565, 0
      %v4624 = vsel %vm237, %v4566, 0
      %v4627 = vsel %vm237, %v4567, 0
      %v4630 = vsel %vm237, %v4568, 0
      %v4633 = vsel %vm237, %v4569, 0
      %v4636 = vsel %vm237, %v4570, 0
      %v4639 = vsel %vm237, %v4571, 0
      %v4642 = vsel %vm237, %v4572, 0
      %v4645 = vsel %vm237, %v4573, 0
      %v4648 = vsel %vm237, %v4574, 0
      %v4651 = vsel %vm237, %v4575, 0
      %v4654 = vsel %vm237, %v4576, 0
      %v4657 = vsel %vm237, %v4577, 0
      %v4660 = vsel %vm237, %v4578, 0
      %v4663 = vsel %vm237, %v4579, 0
      %v4666 = vsel %vm237, %v4580, 0
      %v4669 = vsel %vm237, %v4581, 0
      %v4672 = vsel %vm237, %v4582, 0
      %v4675 = vsel %vm237, %v4583, 0
      %v4678 = vsel %vm237, %v4584, 0
      %v4681 = vsel %vm237, %v4585, 0
      %4683 = vmatpush.msra.mxu0 0.0
      %4684 = vmatpush.msra.mxu0 0.0
      %4685 = vmatpush.msra.mxu0 0.0
      %4686 = vmatpush.msra.mxu0 0.0
      %4687 = vmatpush.msra.mxu0 0.0
      %4688 = vmatpush.msra.mxu0 0.0
      %4689 = vmatpush.msra.mxu0 0.0
      %4690 = vmatpush.msra.mxu0 0.0
      %4691 = vmatpush.msra.mxu0 0.0
      %4692 = vmatpush.msra.mxu0 0.0
      %4693 = vmatpush.msra.mxu0 0.0
      %4694 = vmatpush.msra.mxu0 0.0
      %4695 = vmatpush.msra.mxu0 0.0
      %4696 = vmatpush.msra.mxu0 0.0
      %4697 = vmatpush.msra.mxu0 0.0
      %4698 = vmatpush.msra.mxu0 %v4586
      %4699 = vmatmul.f32.gmra.mxu0 %v4588
      %v4700 = vpop.f32.mrf.mxu0
      %v4701 = vadd.f32 0.0, %v4700
      %4702 = vmatmul.f32.gmra.mxu0 %v4591
      %v4703 = vpop.f32.mrf.mxu0
      %v4704 = vadd.f32 0.0, %v4703
      %4705 = vmatmul.f32.gmra.mxu0 %v4594
      %v4706 = vpop.f32.mrf.mxu0
      %v4707 = vadd.f32 0.0, %v4706
      %4708 = vmatmul.f32.gmra.mxu0 %v4597
      %v4709 = vpop.f32.mrf.mxu0
      %v4710 = vadd.f32 0.0, %v4709
      %4711 = vmatmul.f32.gmra.mxu0 %v4600
      %v4712 = vpop.f32.mrf.mxu0
      %v4713 = vadd.f32 0.0, %v4712
      %4714 = vmatmul.f32.gmra.mxu0 %v4603
      %v4715 = vpop.f32.mrf.mxu0
      %v4716 = vadd.f32 0.0, %v4715
      %4717 = vmatmul.f32.gmra.mxu0 %v4606
      %v4718 = vpop.f32.mrf.mxu0
      %v4719 = vadd.f32 0.0, %v4718
      %4720 = vmatmul.f32.gmra.mxu0 %v4609
      %v4721 = vpop.f32.mrf.mxu0
      %v4722 = vadd.f32 0.0, %v4721
      %4723 = vmatmul.f32.gmra.mxu0 %v4612
      %v4724 = vpop.f32.mrf.mxu0
      %v4725 = vadd.f32 0.0, %v4724
      %4726 = vmatmul.f32.gmra.mxu0 %v4615
      %v4727 = vpop.f32.mrf.mxu0
      %v4728 = vadd.f32 0.0, %v4727
      %4729 = vmatmul.f32.gmra.mxu0 %v4618
      %v4730 = vpop.f32.mrf.mxu0
      %v4731 = vadd.f32 0.0, %v4730
      %4732 = vmatmul.f32.gmra.mxu0 %v4621
      %v4733 = vpop.f32.mrf.mxu0
      %v4734 = vadd.f32 0.0, %v4733
      %4735 = vmatmul.f32.gmra.mxu0 %v4624
      %v4736 = vpop.f32.mrf.mxu0
      %v4737 = vadd.f32 0.0, %v4736
      %4738 = vmatmul.f32.gmra.mxu0 %v4627
      %v4739 = vpop.f32.mrf.mxu0
      %v4740 = vadd.f32 0.0, %v4739
      %4741 = vmatmul.f32.gmra.mxu0 %v4630
      %v4742 = vpop.f32.mrf.mxu0
      %v4743 = vadd.f32 0.0, %v4742
      %4744 = vmatmul.f32.gmra.mxu0 %v4633
      %v4745 = vpop.f32.mrf.mxu0
      %v4746 = vadd.f32 0.0, %v4745
      %4747 = vmatmul.f32.gmra.mxu0 %v4636
      %v4748 = vpop.f32.mrf.mxu0
      %v4749 = vadd.f32 0.0, %v4748
      %4750 = vmatmul.f32.gmra.mxu0 %v4639
      %v4751 = vpop.f32.mrf.mxu0
      %v4752 = vadd.f32 0.0, %v4751
      %4753 = vmatmul.f32.gmra.mxu0 %v4642
      %v4754 = vpop.f32.mrf.mxu0
      %v4755 = vadd.f32 0.0, %v4754
      %4756 = vmatmul.f32.gmra.mxu0 %v4645
      %v4757 = vpop.f32.mrf.mxu0
      %v4758 = vadd.f32 0.0, %v4757
      %4759 = vmatmul.f32.gmra.mxu0 %v4648
      %v4760 = vpop.f32.mrf.mxu0
      %v4761 = vadd.f32 0.0, %v4760
      %4762 = vmatmul.f32.gmra.mxu0 %v4651
      %v4763 = vpop.f32.mrf.mxu0
      %v4764 = vadd.f32 0.0, %v4763
      %4765 = vmatmul.f32.gmra.mxu0 %v4654
      %v4766 = vpop.f32.mrf.mxu0
      %v4767 = vadd.f32 0.0, %v4766
      %4768 = vmatmul.f32.gmra.mxu0 %v4657
      %v4769 = vpop.f32.mrf.mxu0
      %v4770 = vadd.f32 0.0, %v4769
      %4771 = vmatmul.f32.gmra.mxu0 %v4660
      %v4772 = vpop.f32.mrf.mxu0
      %v4773 = vadd.f32 0.0, %v4772
      %4774 = vmatmul.f32.gmra.mxu0 %v4663
      %v4775 = vpop.f32.mrf.mxu0
      %v4776 = vadd.f32 0.0, %v4775
      %4777 = vmatmul.f32.gmra.mxu0 %v4666
      %v4778 = vpop.f32.mrf.mxu0
      %v4779 = vadd.f32 0.0, %v4778
      %4780 = vmatmul.f32.gmra.mxu0 %v4669
      %v4781 = vpop.f32.mrf.mxu0
      %v4782 = vadd.f32 0.0, %v4781
      %4783 = vmatmul.f32.gmra.mxu0 %v4672
      %v4784 = vpop.f32.mrf.mxu0
      %v4785 = vadd.f32 0.0, %v4784
      %4786 = vmatmul.f32.gmra.mxu0 %v4675
      %v4787 = vpop.f32.mrf.mxu0
      %v4788 = vadd.f32 0.0, %v4787
      %4789 = vmatmul.f32.gmra.mxu0 %v4678
      %v4790 = vpop.f32.mrf.mxu0
      %v4791 = vadd.f32 0.0, %v4790
      %4792 = vmatmul.f32.gmra.mxu0 %v4681
      %v4793 = vpop.f32.mrf.mxu0
      %v4794 = vadd.f32 0.0, %v4793
      %4795 = vdwg.mxu0
      %v4796 = vadd.f32 %v4521, %v4701
      %v4797 = vadd.f32 %v4522, %v4704
      %v4798 = vadd.f32 %v4523, %v4707
      %v4799 = vadd.f32 %v4524, %v4710
      %v4800 = vadd.f32 %v4525, %v4713
      %v4801 = vadd.f32 %v4526, %v4716
      %v4802 = vadd.f32 %v4527, %v4719
      %v4803 = vadd.f32 %v4528, %v4722
      %v4804 = vadd.f32 %v4529, %v4725
      %v4805 = vadd.f32 %v4530, %v4728
      %v4806 = vadd.f32 %v4531, %v4731
      %v4807 = vadd.f32 %v4532, %v4734
      %v4808 = vadd.f32 %v4533, %v4737
      %v4809 = vadd.f32 %v4534, %v4740
      %v4810 = vadd.f32 %v4535, %v4743
      %v4811 = vadd.f32 %v4536, %v4746
      %v4812 = vadd.f32 %v4537, %v4749
      %v4813 = vadd.f32 %v4538, %v4752
      %v4814 = vadd.f32 %v4539, %v4755
      %v4815 = vadd.f32 %v4540, %v4758
      %v4816 = vadd.f32 %v4541, %v4761
      %v4817 = vadd.f32 %v4542, %v4764
      %v4818 = vadd.f32 %v4543, %v4767
      %v4819 = vadd.f32 %v4544, %v4770
      %v4820 = vadd.f32 %v4545, %v4773
      %v4821 = vadd.f32 %v4546, %v4776
      %v4822 = vadd.f32 %v4547, %v4779
      %v4823 = vadd.f32 %v4548, %v4782
      %v4824 = vadd.f32 %v4549, %v4785
      %v4825 = vadd.f32 %v4550, %v4788
      %v4826 = vadd.f32 %v4551, %v4791
      %v4827 = vadd.f32 %v4552, %v4794
      %v4828 = vld [vmem:[%s4553 + $0x1] sm:$0xff]
      %v4829 = vld [vmem:[%s4553 + $0x9] sm:$0xff]
      %v4830 = vld [vmem:[%s4553 + $0x19] sm:$0xff]
      %v4831 = vld [vmem:[%s4553 + $0x21] sm:$0xff]
      %v4832 = vld [vmem:[%s4553 + $0x31] sm:$0xff]
      %v4833 = vld [vmem:[%s4553 + $0x39] sm:$0xff]
      %v4834 = vld [vmem:[%s4553 + $0x49] sm:$0xff]
      %v4835 = vld [vmem:[%s4553 + $0x51] sm:$0xff]
      %v4836 = vld [vmem:[%s4553 + $0x61] sm:$0xff]
      %v4837 = vld [vmem:[%s4553 + $0x69] sm:$0xff]
      %v4838 = vld [vmem:[%s4553 + $0x79] sm:$0xff]
      %v4839 = vld [vmem:[%s4553 + $0x81] sm:$0xff]
      %v4840 = vld [vmem:[%s4553 + $0x91] sm:$0xff]
      %v4841 = vld [vmem:[%s4553 + $0x99] sm:$0xff]
      %v4842 = vld [vmem:[%s4553 + $0xa9] sm:$0xff]
      %v4843 = vld [vmem:[%s4553 + $0xb1] sm:$0xff]
      %v4844 = vld [vmem:[%s4553 + $0xc1] sm:$0xff]
      %v4845 = vld [vmem:[%s4553 + $0xc9] sm:$0xff]
      %v4846 = vld [vmem:[%s4553 + $0xd9] sm:$0xff]
      %v4847 = vld [vmem:[%s4553 + $0xe1] sm:$0xff]
      %v4848 = vld [vmem:[%s4553 + $0xf1] sm:$0xff]
      %v4849 = vld [vmem:[%s4553 + $0xf9] sm:$0xff]
      %v4850 = vld [vmem:[%s4553 + $0x109] sm:$0xff]
      %v4851 = vld [vmem:[%s4553 + $0x111] sm:$0xff]
      %v4852 = vld [vmem:[%s4553 + $0x121] sm:$0xff]
      %v4853 = vld [vmem:[%s4553 + $0x129] sm:$0xff]
      %v4854 = vld [vmem:[%s4553 + $0x139] sm:$0xff]
      %v4855 = vld [vmem:[%s4553 + $0x141] sm:$0xff]
      %v4856 = vld [vmem:[%s4553 + $0x151] sm:$0xff]
      %v4857 = vld [vmem:[%s4553 + $0x159] sm:$0xff]
      %v4858 = vld [vmem:[%s4553 + $0x169] sm:$0xff]
      %v4859 = vld [vmem:[%s4553 + $0x171] sm:$0xff]
      %v4860 = vld [vmem:[%s2 + $0x38] sm:$0xff]
      %v4862 = vsel %vm237, %v4828, 0
      %v4865 = vsel %vm237, %v4829, 0
      %v4868 = vsel %vm237, %v4830, 0
      %v4871 = vsel %vm237, %v4831, 0
      %v4874 = vsel %vm237, %v4832, 0
      %v4877 = vsel %vm237, %v4833, 0
      %v4880 = vsel %vm237, %v4834, 0
      %v4883 = vsel %vm237, %v4835, 0
      %v4886 = vsel %vm237, %v4836, 0
      %v4889 = vsel %vm237, %v4837, 0
      %v4892 = vsel %vm237, %v4838, 0
      %v4895 = vsel %vm237, %v4839, 0
      %v4898 = vsel %vm237, %v4840, 0
      %v4901 = vsel %vm237, %v4841, 0
      %v4904 = vsel %vm237, %v4842, 0
      %v4907 = vsel %vm237, %v4843, 0
      %v4910 = vsel %vm237, %v4844, 0
      %v4913 = vsel %vm237, %v4845, 0
      %v4916 = vsel %vm237, %v4846, 0
      %v4919 = vsel %vm237, %v4847, 0
      %v4922 = vsel %vm237, %v4848, 0
      %v4925 = vsel %vm237, %v4849, 0
      %v4928 = vsel %vm237, %v4850, 0
      %v4931 = vsel %vm237, %v4851, 0
      %v4934 = vsel %vm237, %v4852, 0
      %v4937 = vsel %vm237, %v4853, 0
      %v4940 = vsel %vm237, %v4854, 0
      %v4943 = vsel %vm237, %v4855, 0
      %v4946 = vsel %vm237, %v4856, 0
      %v4949 = vsel %vm237, %v4857, 0
      %v4952 = vsel %vm237, %v4858, 0
      %v4955 = vsel %vm237, %v4859, 0
      %4957 = vmatpush.msra.mxu0 0.0
      %4958 = vmatpush.msra.mxu0 0.0
      %4959 = vmatpush.msra.mxu0 0.0
      %4960 = vmatpush.msra.mxu0 0.0
      %4961 = vmatpush.msra.mxu0 0.0
      %4962 = vmatpush.msra.mxu0 0.0
      %4963 = vmatpush.msra.mxu0 0.0
      %4964 = vmatpush.msra.mxu0 0.0
      %4965 = vmatpush.msra.mxu0 0.0
      %4966 = vmatpush.msra.mxu0 0.0
      %4967 = vmatpush.msra.mxu0 0.0
      %4968 = vmatpush.msra.mxu0 0.0
      %4969 = vmatpush.msra.mxu0 0.0
      %4970 = vmatpush.msra.mxu0 0.0
      %4971 = vmatpush.msra.mxu0 0.0
      %4972 = vmatpush.msra.mxu0 %v4860
      %4973 = vmatmul.f32.gmra.mxu0 %v4862
      %v4974 = vpop.f32.mrf.mxu0
      %v4975 = vadd.f32 0.0, %v4974
      %4976 = vmatmul.f32.gmra.mxu0 %v4865
      %v4977 = vpop.f32.mrf.mxu0
      %v4978 = vadd.f32 0.0, %v4977
      %4979 = vmatmul.f32.gmra.mxu0 %v4868
      %v4980 = vpop.f32.mrf.mxu0
      %v4981 = vadd.f32 0.0, %v4980
      %4982 = vmatmul.f32.gmra.mxu0 %v4871
      %v4983 = vpop.f32.mrf.mxu0
      %v4984 = vadd.f32 0.0, %v4983
      %4985 = vmatmul.f32.gmra.mxu0 %v4874
      %v4986 = vpop.f32.mrf.mxu0
      %v4987 = vadd.f32 0.0, %v4986
      %4988 = vmatmul.f32.gmra.mxu0 %v4877
      %v4989 = vpop.f32.mrf.mxu0
      %v4990 = vadd.f32 0.0, %v4989
      %4991 = vmatmul.f32.gmra.mxu0 %v4880
      %v4992 = vpop.f32.mrf.mxu0
      %v4993 = vadd.f32 0.0, %v4992
      %4994 = vmatmul.f32.gmra.mxu0 %v4883
      %v4995 = vpop.f32.mrf.mxu0
      %v4996 = vadd.f32 0.0, %v4995
      %4997 = vmatmul.f32.gmra.mxu0 %v4886
      %v4998 = vpop.f32.mrf.mxu0
      %v4999 = vadd.f32 0.0, %v4998
      %5000 = vmatmul.f32.gmra.mxu0 %v4889
      %v5001 = vpop.f32.mrf.mxu0
      %v5002 = vadd.f32 0.0, %v5001
      %5003 = vmatmul.f32.gmra.mxu0 %v4892
      %v5004 = vpop.f32.mrf.mxu0
      %v5005 = vadd.f32 0.0, %v5004
      %5006 = vmatmul.f32.gmra.mxu0 %v4895
      %v5007 = vpop.f32.mrf.mxu0
      %v5008 = vadd.f32 0.0, %v5007
      %5009 = vmatmul.f32.gmra.mxu0 %v4898
      %v5010 = vpop.f32.mrf.mxu0
      %v5011 = vadd.f32 0.0, %v5010
      %5012 = vmatmul.f32.gmra.mxu0 %v4901
      %v5013 = vpop.f32.mrf.mxu0
      %v5014 = vadd.f32 0.0, %v5013
      %5015 = vmatmul.f32.gmra.mxu0 %v4904
      %v5016 = vpop.f32.mrf.mxu0
      %v5017 = vadd.f32 0.0, %v5016
      %5018 = vmatmul.f32.gmra.mxu0 %v4907
      %v5019 = vpop.f32.mrf.mxu0
      %v5020 = vadd.f32 0.0, %v5019
      %5021 = vmatmul.f32.gmra.mxu0 %v4910
      %v5022 = vpop.f32.mrf.mxu0
      %v5023 = vadd.f32 0.0, %v5022
      %5024 = vmatmul.f32.gmra.mxu0 %v4913
      %v5025 = vpop.f32.mrf.mxu0
      %v5026 = vadd.f32 0.0, %v5025
      %5027 = vmatmul.f32.gmra.mxu0 %v4916
      %v5028 = vpop.f32.mrf.mxu0
      %v5029 = vadd.f32 0.0, %v5028
      %5030 = vmatmul.f32.gmra.mxu0 %v4919
      %v5031 = vpop.f32.mrf.mxu0
      %v5032 = vadd.f32 0.0, %v5031
      %5033 = vmatmul.f32.gmra.mxu0 %v4922
      %v5034 = vpop.f32.mrf.mxu0
      %v5035 = vadd.f32 0.0, %v5034
      %5036 = vmatmul.f32.gmra.mxu0 %v4925
      %v5037 = vpop.f32.mrf.mxu0
      %v5038 = vadd.f32 0.0, %v5037
      %5039 = vmatmul.f32.gmra.mxu0 %v4928
      %v5040 = vpop.f32.mrf.mxu0
      %v5041 = vadd.f32 0.0, %v5040
      %5042 = vmatmul.f32.gmra.mxu0 %v4931
      %v5043 = vpop.f32.mrf.mxu0
      %v5044 = vadd.f32 0.0, %v5043
      %5045 = vmatmul.f32.gmra.mxu0 %v4934
      %v5046 = vpop.f32.mrf.mxu0
      %v5047 = vadd.f32 0.0, %v5046
      %5048 = vmatmul.f32.gmra.mxu0 %v4937
      %v5049 = vpop.f32.mrf.mxu0
      %v5050 = vadd.f32 0.0, %v5049
      %5051 = vmatmul.f32.gmra.mxu0 %v4940
      %v5052 = vpop.f32.mrf.mxu0
      %v5053 = vadd.f32 0.0, %v5052
      %5054 = vmatmul.f32.gmra.mxu0 %v4943
      %v5055 = vpop.f32.mrf.mxu0
      %v5056 = vadd.f32 0.0, %v5055
      %5057 = vmatmul.f32.gmra.mxu0 %v4946
      %v5058 = vpop.f32.mrf.mxu0
      %v5059 = vadd.f32 0.0, %v5058
      %5060 = vmatmul.f32.gmra.mxu0 %v4949
      %v5061 = vpop.f32.mrf.mxu0
      %v5062 = vadd.f32 0.0, %v5061
      %5063 = vmatmul.f32.gmra.mxu0 %v4952
      %v5064 = vpop.f32.mrf.mxu0
      %v5065 = vadd.f32 0.0, %v5064
      %5066 = vmatmul.f32.gmra.mxu0 %v4955
      %v5067 = vpop.f32.mrf.mxu0
      %v5068 = vadd.f32 0.0, %v5067
      %5069 = vdwg.mxu0
      %v5070 = vadd.f32 %v4796, %v4975
      %v5071 = vadd.f32 %v4797, %v4978
      %v5072 = vadd.f32 %v4798, %v4981
      %v5073 = vadd.f32 %v4799, %v4984
      %v5074 = vadd.f32 %v4800, %v4987
      %v5075 = vadd.f32 %v4801, %v4990
      %v5076 = vadd.f32 %v4802, %v4993
      %v5077 = vadd.f32 %v4803, %v4996
      %v5078 = vadd.f32 %v4804, %v4999
      %v5079 = vadd.f32 %v4805, %v5002
      %v5080 = vadd.f32 %v4806, %v5005
      %v5081 = vadd.f32 %v4807, %v5008
      %v5082 = vadd.f32 %v4808, %v5011
      %v5083 = vadd.f32 %v4809, %v5014
      %v5084 = vadd.f32 %v4810, %v5017
      %v5085 = vadd.f32 %v4811, %v5020
      %v5086 = vadd.f32 %v4812, %v5023
      %v5087 = vadd.f32 %v4813, %v5026
      %v5088 = vadd.f32 %v4814, %v5029
      %v5089 = vadd.f32 %v4815, %v5032
      %v5090 = vadd.f32 %v4816, %v5035
      %v5091 = vadd.f32 %v4817, %v5038
      %v5092 = vadd.f32 %v4818, %v5041
      %v5093 = vadd.f32 %v4819, %v5044
      %v5094 = vadd.f32 %v4820, %v5047
      %v5095 = vadd.f32 %v4821, %v5050
      %v5096 = vadd.f32 %v4822, %v5053
      %v5097 = vadd.f32 %v4823, %v5056
      %v5098 = vadd.f32 %v4824, %v5059
      %v5099 = vadd.f32 %v4825, %v5062
      %v5100 = vadd.f32 %v4826, %v5065
      %v5101 = vadd.f32 %v4827, %v5068
      %v5102 = vld [vmem:[%s4553 + $0x2] sm:$0xff]
      %v5103 = vld [vmem:[%s4553 + $0xa] sm:$0xff]
      %v5104 = vld [vmem:[%s4553 + $0x1a] sm:$0xff]
      %v5105 = vld [vmem:[%s4553 + $0x22] sm:$0xff]
      %v5106 = vld [vmem:[%s4553 + $0x32] sm:$0xff]
      %v5107 = vld [vmem:[%s4553 + $0x3a] sm:$0xff]
      %v5108 = vld [vmem:[%s4553 + $0x4a] sm:$0xff]
      %v5109 = vld [vmem:[%s4553 + $0x52] sm:$0xff]
      %v5110 = vld [vmem:[%s4553 + $0x62] sm:$0xff]
      %v5111 = vld [vmem:[%s4553 + $0x6a] sm:$0xff]
      %v5112 = vld [vmem:[%s4553 + $0x7a] sm:$0xff]
      %v5113 = vld [vmem:[%s4553 + $0x82] sm:$0xff]
      %v5114 = vld [vmem:[%s4553 + $0x92] sm:$0xff]
      %v5115 = vld [vmem:[%s4553 + $0x9a] sm:$0xff]
      %v5116 = vld [vmem:[%s4553 + $0xaa] sm:$0xff]
      %v5117 = vld [vmem:[%s4553 + $0xb2] sm:$0xff]
      %v5118 = vld [vmem:[%s4553 + $0xc2] sm:$0xff]
      %v5119 = vld [vmem:[%s4553 + $0xca] sm:$0xff]
      %v5120 = vld [vmem:[%s4553 + $0xda] sm:$0xff]
      %v5121 = vld [vmem:[%s4553 + $0xe2] sm:$0xff]
      %v5122 = vld [vmem:[%s4553 + $0xf2] sm:$0xff]
      %v5123 = vld [vmem:[%s4553 + $0xfa] sm:$0xff]
      %v5124 = vld [vmem:[%s4553 + $0x10a] sm:$0xff]
      %v5125 = vld [vmem:[%s4553 + $0x112] sm:$0xff]
      %v5126 = vld [vmem:[%s4553 + $0x122] sm:$0xff]
      %v5127 = vld [vmem:[%s4553 + $0x12a] sm:$0xff]
      %v5128 = vld [vmem:[%s4553 + $0x13a] sm:$0xff]
      %v5129 = vld [vmem:[%s4553 + $0x142] sm:$0xff]
      %v5130 = vld [vmem:[%s4553 + $0x152] sm:$0xff]
      %v5131 = vld [vmem:[%s4553 + $0x15a] sm:$0xff]
      %v5132 = vld [vmem:[%s4553 + $0x16a] sm:$0xff]
      %v5133 = vld [vmem:[%s4553 + $0x172] sm:$0xff]
      %v5134 = vld [vmem:[%s2 + $0x40] sm:$0xff]
      %v5136 = vsel %vm237, %v5102, 0
      %v5139 = vsel %vm237, %v5103, 0
      %v5142 = vsel %vm237, %v5104, 0
      %v5145 = vsel %vm237, %v5105, 0
      %v5148 = vsel %vm237, %v5106, 0
      %v5151 = vsel %vm237, %v5107, 0
      %v5154 = vsel %vm237, %v5108, 0
      %v5157 = vsel %vm237, %v5109, 0
      %v5160 = vsel %vm237, %v5110, 0
      %v5163 = vsel %vm237, %v5111, 0
      %v5166 = vsel %vm237, %v5112, 0
      %v5169 = vsel %vm237, %v5113, 0
      %v5172 = vsel %vm237, %v5114, 0
      %v5175 = vsel %vm237, %v5115, 0
      %v5178 = vsel %vm237, %v5116, 0
      %v5181 = vsel %vm237, %v5117, 0
      %v5184 = vsel %vm237, %v5118, 0
      %v5187 = vsel %vm237, %v5119, 0
      %v5190 = vsel %vm237, %v5120, 0
      %v5193 = vsel %vm237, %v5121, 0
      %v5196 = vsel %vm237, %v5122, 0
      %v5199 = vsel %vm237, %v5123, 0
      %v5202 = vsel %vm237, %v5124, 0
      %v5205 = vsel %vm237, %v5125, 0
      %v5208 = vsel %vm237, %v5126, 0
      %v5211 = vsel %vm237, %v5127, 0
      %v5214 = vsel %vm237, %v5128, 0
      %v5217 = vsel %vm237, %v5129, 0
      %v5220 = vsel %vm237, %v5130, 0
      %v5223 = vsel %vm237, %v5131, 0
      %v5226 = vsel %vm237, %v5132, 0
      %v5229 = vsel %vm237, %v5133, 0
      %5231 = vmatpush.msra.mxu0 0.0
      %5232 = vmatpush.msra.mxu0 0.0
      %5233 = vmatpush.msra.mxu0 0.0
      %5234 = vmatpush.msra.mxu0 0.0
      %5235 = vmatpush.msra.mxu0 0.0
      %5236 = vmatpush.msra.mxu0 0.0
      %5237 = vmatpush.msra.mxu0 0.0
      %5238 = vmatpush.msra.mxu0 0.0
      %5239 = vmatpush.msra.mxu0 0.0
      %5240 = vmatpush.msra.mxu0 0.0
      %5241 = vmatpush.msra.mxu0 0.0
      %5242 = vmatpush.msra.mxu0 0.0
      %5243 = vmatpush.msra.mxu0 0.0
      %5244 = vmatpush.msra.mxu0 0.0
      %5245 = vmatpush.msra.mxu0 0.0
      %5246 = vmatpush.msra.mxu0 %v5134
      %5247 = vmatmul.f32.gmra.mxu0 %v5136
      %v5248 = vpop.f32.mrf.mxu0
      %v5249 = vadd.f32 0.0, %v5248
      %5250 = vmatmul.f32.gmra.mxu0 %v5139
      %v5251 = vpop.f32.mrf.mxu0
      %v5252 = vadd.f32 0.0, %v5251
      %5253 = vmatmul.f32.gmra.mxu0 %v5142
      %v5254 = vpop.f32.mrf.mxu0
      %v5255 = vadd.f32 0.0, %v5254
      %5256 = vmatmul.f32.gmra.mxu0 %v5145
      %v5257 = vpop.f32.mrf.mxu0
      %v5258 = vadd.f32 0.0, %v5257
      %5259 = vmatmul.f32.gmra.mxu0 %v5148
      %v5260 = vpop.f32.mrf.mxu0
      %v5261 = vadd.f32 0.0, %v5260
      %5262 = vmatmul.f32.gmra.mxu0 %v5151
      %v5263 = vpop.f32.mrf.mxu0
      %v5264 = vadd.f32 0.0, %v5263
      %5265 = vmatmul.f32.gmra.mxu0 %v5154
      %v5266 = vpop.f32.mrf.mxu0
      %v5267 = vadd.f32 0.0, %v5266
      %5268 = vmatmul.f32.gmra.mxu0 %v5157
      %v5269 = vpop.f32.mrf.mxu0
      %v5270 = vadd.f32 0.0, %v5269
      %5271 = vmatmul.f32.gmra.mxu0 %v5160
      %v5272 = vpop.f32.mrf.mxu0
      %v5273 = vadd.f32 0.0, %v5272
      %5274 = vmatmul.f32.gmra.mxu0 %v5163
      %v5275 = vpop.f32.mrf.mxu0
      %v5276 = vadd.f32 0.0, %v5275
      %5277 = vmatmul.f32.gmra.mxu0 %v5166
      %v5278 = vpop.f32.mrf.mxu0
      %v5279 = vadd.f32 0.0, %v5278
      %5280 = vmatmul.f32.gmra.mxu0 %v5169
      %v5281 = vpop.f32.mrf.mxu0
      %v5282 = vadd.f32 0.0, %v5281
      %5283 = vmatmul.f32.gmra.mxu0 %v5172
      %v5284 = vpop.f32.mrf.mxu0
      %v5285 = vadd.f32 0.0, %v5284
      %5286 = vmatmul.f32.gmra.mxu0 %v5175
      %v5287 = vpop.f32.mrf.mxu0
      %v5288 = vadd.f32 0.0, %v5287
      %5289 = vmatmul.f32.gmra.mxu0 %v5178
      %v5290 = vpop.f32.mrf.mxu0
      %v5291 = vadd.f32 0.0, %v5290
      %5292 = vmatmul.f32.gmra.mxu0 %v5181
      %v5293 = vpop.f32.mrf.mxu0
      %v5294 = vadd.f32 0.0, %v5293
      %5295 = vmatmul.f32.gmra.mxu0 %v5184
      %v5296 = vpop.f32.mrf.mxu0
      %v5297 = vadd.f32 0.0, %v5296
      %5298 = vmatmul.f32.gmra.mxu0 %v5187
      %v5299 = vpop.f32.mrf.mxu0
      %v5300 = vadd.f32 0.0, %v5299
      %5301 = vmatmul.f32.gmra.mxu0 %v5190
      %v5302 = vpop.f32.mrf.mxu0
      %v5303 = vadd.f32 0.0, %v5302
      %5304 = vmatmul.f32.gmra.mxu0 %v5193
      %v5305 = vpop.f32.mrf.mxu0
      %v5306 = vadd.f32 0.0, %v5305
      %5307 = vmatmul.f32.gmra.mxu0 %v5196
      %v5308 = vpop.f32.mrf.mxu0
      %v5309 = vadd.f32 0.0, %v5308
      %5310 = vmatmul.f32.gmra.mxu0 %v5199
      %v5311 = vpop.f32.mrf.mxu0
      %v5312 = vadd.f32 0.0, %v5311
      %5313 = vmatmul.f32.gmra.mxu0 %v5202
      %v5314 = vpop.f32.mrf.mxu0
      %v5315 = vadd.f32 0.0, %v5314
      %5316 = vmatmul.f32.gmra.mxu0 %v5205
      %v5317 = vpop.f32.mrf.mxu0
      %v5318 = vadd.f32 0.0, %v5317
      %5319 = vmatmul.f32.gmra.mxu0 %v5208
      %v5320 = vpop.f32.mrf.mxu0
      %v5321 = vadd.f32 0.0, %v5320
      %5322 = vmatmul.f32.gmra.mxu0 %v5211
      %v5323 = vpop.f32.mrf.mxu0
      %v5324 = vadd.f32 0.0, %v5323
      %5325 = vmatmul.f32.gmra.mxu0 %v5214
      %v5326 = vpop.f32.mrf.mxu0
      %v5327 = vadd.f32 0.0, %v5326
      %5328 = vmatmul.f32.gmra.mxu0 %v5217
      %v5329 = vpop.f32.mrf.mxu0
      %v5330 = vadd.f32 0.0, %v5329
      %5331 = vmatmul.f32.gmra.mxu0 %v5220
      %v5332 = vpop.f32.mrf.mxu0
      %v5333 = vadd.f32 0.0, %v5332
      %5334 = vmatmul.f32.gmra.mxu0 %v5223
      %v5335 = vpop.f32.mrf.mxu0
      %v5336 = vadd.f32 0.0, %v5335
      %5337 = vmatmul.f32.gmra.mxu0 %v5226
      %v5338 = vpop.f32.mrf.mxu0
      %v5339 = vadd.f32 0.0, %v5338
      %5340 = vmatmul.f32.gmra.mxu0 %v5229
      %v5341 = vpop.f32.mrf.mxu0
      %v5342 = vadd.f32 0.0, %v5341
      %5343 = vdwg.mxu0
      %v5344 = vadd.f32 %v5070, %v5249
      %v5345 = vadd.f32 %v5071, %v5252
      %v5346 = vadd.f32 %v5072, %v5255
      %v5347 = vadd.f32 %v5073, %v5258
      %v5348 = vadd.f32 %v5074, %v5261
      %v5349 = vadd.f32 %v5075, %v5264
      %v5350 = vadd.f32 %v5076, %v5267
      %v5351 = vadd.f32 %v5077, %v5270
      %v5352 = vadd.f32 %v5078, %v5273
      %v5353 = vadd.f32 %v5079, %v5276
      %v5354 = vadd.f32 %v5080, %v5279
      %v5355 = vadd.f32 %v5081, %v5282
      %v5356 = vadd.f32 %v5082, %v5285
      %v5357 = vadd.f32 %v5083, %v5288
      %v5358 = vadd.f32 %v5084, %v5291
      %v5359 = vadd.f32 %v5085, %v5294
      %v5360 = vadd.f32 %v5086, %v5297
      %v5361 = vadd.f32 %v5087, %v5300
      %v5362 = vadd.f32 %v5088, %v5303
      %v5363 = vadd.f32 %v5089, %v5306
      %v5364 = vadd.f32 %v5090, %v5309
      %v5365 = vadd.f32 %v5091, %v5312
      %v5366 = vadd.f32 %v5092, %v5315
      %v5367 = vadd.f32 %v5093, %v5318
      %v5368 = vadd.f32 %v5094, %v5321
      %v5369 = vadd.f32 %v5095, %v5324
      %v5370 = vadd.f32 %v5096, %v5327
      %v5371 = vadd.f32 %v5097, %v5330
      %v5372 = vadd.f32 %v5098, %v5333
      %v5373 = vadd.f32 %v5099, %v5336
      %v5374 = vadd.f32 %v5100, %v5339
      %v5375 = vadd.f32 %v5101, %v5342
      %v5376 = vsel %vm237, %v5344, 0.0
      %v5377 = vsel %vm237, %v5345, 0.0
      %v5378 = vadd.f32 %v5376, %v5377
      %v5379 = vsel %vm237, %v5346, 0.0
      %v5380 = vadd.f32 %v5378, %v5379
      %v5381 = vsel %vm237, %v5347, 0.0
      %v5382 = vadd.f32 %v5380, %v5381
      %v5383 = vsel %vm237, %v5348, 0.0
      %v5384 = vadd.f32 %v5382, %v5383
      %v5385 = vsel %vm237, %v5349, 0.0
      %v5386 = vadd.f32 %v5384, %v5385
      %v5387 = vsel %vm237, %v5350, 0.0
      %v5388 = vadd.f32 %v5386, %v5387
      %v5389 = vsel %vm237, %v5351, 0.0
      %v5390 = vadd.f32 %v5388, %v5389
      %v5391 = vsel %vm237, %v5352, 0.0
      %v5392 = vadd.f32 %v5390, %v5391
      %v5393 = vsel %vm237, %v5353, 0.0
      %v5394 = vadd.f32 %v5392, %v5393
      %v5395 = vsel %vm237, %v5354, 0.0
      %v5396 = vadd.f32 %v5394, %v5395
      %v5397 = vsel %vm237, %v5355, 0.0
      %v5398 = vadd.f32 %v5396, %v5397
      %v5399 = vsel %vm237, %v5356, 0.0
      %v5400 = vadd.f32 %v5398, %v5399
      %v5401 = vsel %vm237, %v5357, 0.0
      %v5402 = vadd.f32 %v5400, %v5401
      %v5403 = vsel %vm237, %v5358, 0.0
      %v5404 = vadd.f32 %v5402, %v5403
      %v5405 = vsel %vm237, %v5359, 0.0
      %v5406 = vadd.f32 %v5404, %v5405
      %v5407 = vsel %vm237, %v5360, 0.0
      %v5408 = vadd.f32 %v5406, %v5407
      %v5409 = vsel %vm237, %v5361, 0.0
      %v5410 = vadd.f32 %v5408, %v5409
      %v5411 = vsel %vm237, %v5362, 0.0
      %v5412 = vadd.f32 %v5410, %v5411
      %v5413 = vsel %vm237, %v5363, 0.0
      %v5414 = vadd.f32 %v5412, %v5413
      %v5415 = vsel %vm237, %v5364, 0.0
      %v5416 = vadd.f32 %v5414, %v5415
      %v5417 = vsel %vm237, %v5365, 0.0
      %v5418 = vadd.f32 %v5416, %v5417
      %v5419 = vsel %vm237, %v5366, 0.0
      %v5420 = vadd.f32 %v5418, %v5419
      %v5421 = vsel %vm237, %v5367, 0.0
      %v5422 = vadd.f32 %v5420, %v5421
      %v5423 = vsel %vm237, %v5368, 0.0
      %v5424 = vadd.f32 %v5422, %v5423
      %v5425 = vsel %vm237, %v5369, 0.0
      %v5426 = vadd.f32 %v5424, %v5425
      %v5427 = vsel %vm237, %v5370, 0.0
      %v5428 = vadd.f32 %v5426, %v5427
      %v5429 = vsel %vm237, %v5371, 0.0
      %v5430 = vadd.f32 %v5428, %v5429
      %v5431 = vsel %vm237, %v5372, 0.0
      %v5432 = vadd.f32 %v5430, %v5431
      %v5433 = vsel %vm237, %v5373, 0.0
      %v5434 = vadd.f32 %v5432, %v5433
      %v5435 = vsel %vm237, %v5374, 0.0
      %v5436 = vadd.f32 %v5434, %v5435
      %v5437 = vsel %vm237, %v5375, 0.0
      %v5438 = vadd.f32 %v5436, %v5437
      %v5439 = vrot.slane %v5438, 4
      %v5440 = vadd.f32 %v5438, %v5439
      %v5441 = vrot.slane %v5440, 2
      %v5442 = vadd.f32 %v5440, %v5441
      %v5443 = vrot.slane %v5442, 1
      %v5444 = vadd.f32 %v5442, %v5443
      %v5445 = vmul.f32 %v5444, %v2651
      %v5446 = vsub.f32 %v5344, %v5445
      %v5447 = vsub.f32 %v5345, %v5445
      %v5448 = vsub.f32 %v5346, %v5445
      %v5449 = vsub.f32 %v5347, %v5445
      %v5450 = vsub.f32 %v5348, %v5445
      %v5451 = vsub.f32 %v5349, %v5445
      %v5452 = vsub.f32 %v5350, %v5445
      %v5453 = vsub.f32 %v5351, %v5445
      %v5454 = vsub.f32 %v5352, %v5445
      %v5455 = vsub.f32 %v5353, %v5445
      %v5456 = vsub.f32 %v5354, %v5445
      %v5457 = vsub.f32 %v5355, %v5445
      %v5458 = vsub.f32 %v5356, %v5445
      %v5459 = vsub.f32 %v5357, %v5445
      %v5460 = vsub.f32 %v5358, %v5445
      %v5461 = vsub.f32 %v5359, %v5445
      %v5462 = vsub.f32 %v5360, %v5445
      %v5463 = vsub.f32 %v5361, %v5445
      %v5464 = vsub.f32 %v5362, %v5445
      %v5465 = vsub.f32 %v5363, %v5445
      %v5466 = vsub.f32 %v5364, %v5445
      %v5467 = vsub.f32 %v5365, %v5445
      %v5468 = vsub.f32 %v5366, %v5445
      %v5469 = vsub.f32 %v5367, %v5445
      %v5470 = vsub.f32 %v5368, %v5445
      %v5471 = vsub.f32 %v5369, %v5445
      %v5472 = vsub.f32 %v5370, %v5445
      %v5473 = vsub.f32 %v5371, %v5445
      %v5474 = vsub.f32 %v5372, %v5445
      %v5475 = vsub.f32 %v5373, %v5445
      %v5476 = vsub.f32 %v5374, %v5445
      %v5477 = vsub.f32 %v5375, %v5445
      %v5478 = vmul.f32 %v5446, %v5446
      %v5479 = vmul.f32 %v5447, %v5447
      %v5480 = vmul.f32 %v5448, %v5448
      %v5481 = vmul.f32 %v5449, %v5449
      %v5482 = vmul.f32 %v5450, %v5450
      %v5483 = vmul.f32 %v5451, %v5451
      %v5484 = vmul.f32 %v5452, %v5452
      %v5485 = vmul.f32 %v5453, %v5453
      %v5486 = vmul.f32 %v5454, %v5454
      %v5487 = vmul.f32 %v5455, %v5455
      %v5488 = vmul.f32 %v5456, %v5456
      %v5489 = vmul.f32 %v5457, %v5457
      %v5490 = vmul.f32 %v5458, %v5458
      %v5491 = vmul.f32 %v5459, %v5459
      %v5492 = vmul.f32 %v5460, %v5460
      %v5493 = vmul.f32 %v5461, %v5461
      %v5494 = vmul.f32 %v5462, %v5462
      %v5495 = vmul.f32 %v5463, %v5463
      %v5496 = vmul.f32 %v5464, %v5464
      %v5497 = vmul.f32 %v5465, %v5465
      %v5498 = vmul.f32 %v5466, %v5466
      %v5499 = vmul.f32 %v5467, %v5467
      %v5500 = vmul.f32 %v5468, %v5468
      %v5501 = vmul.f32 %v5469, %v5469
      %v5502 = vmul.f32 %v5470, %v5470
      %v5503 = vmul.f32 %v5471, %v5471
      %v5504 = vmul.f32 %v5472, %v5472
      %v5505 = vmul.f32 %v5473, %v5473
      %v5506 = vmul.f32 %v5474, %v5474
      %v5507 = vmul.f32 %v5475, %v5475
      %v5508 = vmul.f32 %v5476, %v5476
      %v5509 = vmul.f32 %v5477, %v5477
      %v5510 = vsel %vm237, %v5478, 0.0
      %v5511 = vsel %vm237, %v5479, 0.0
      %v5512 = vadd.f32 %v5510, %v5511
      %v5513 = vsel %vm237, %v5480, 0.0
      %v5514 = vadd.f32 %v5512, %v5513
      %v5515 = vsel %vm237, %v5481, 0.0
      %v5516 = vadd.f32 %v5514, %v5515
      %v5517 = vsel %vm237, %v5482, 0.0
      %v5518 = vadd.f32 %v5516, %v5517
      %v5519 = vsel %vm237, %v5483, 0.0
      %v5520 = vadd.f32 %v5518, %v5519
      %v5521 = vsel %vm237, %v5484, 0.0
      %v5522 = vadd.f32 %v5520, %v5521
      %v5523 = vsel %vm237, %v5485, 0.0
      %v5524 = vadd.f32 %v5522, %v5523
      %v5525 = vsel %vm237, %v5486, 0.0
      %v5526 = vadd.f32 %v5524, %v5525
      %v5527 = vsel %vm237, %v5487, 0.0
      %v5528 = vadd.f32 %v5526, %v5527
      %v5529 = vsel %vm237, %v5488, 0.0
      %v5530 = vadd.f32 %v5528, %v5529
      %v5531 = vsel %vm237, %v5489, 0.0
      %v5532 = vadd.f32 %v5530, %v5531
      %v5533 = vsel %vm237, %v5490, 0.0
      %v5534 = vadd.f32 %v5532, %v5533
      %v5535 = vsel %vm237, %v5491, 0.0
      %v5536 = vadd.f32 %v5534, %v5535
      %v5537 = vsel %vm237, %v5492, 0.0
      %v5538 = vadd.f32 %v5536, %v5537
      %v5539 = vsel %vm237, %v5493, 0.0
      %v5540 = vadd.f32 %v5538, %v5539
      %v5541 = vsel %vm237, %v5494, 0.0
      %v5542 = vadd.f32 %v5540, %v5541
      %v5543 = vsel %vm237, %v5495, 0.0
      %v5544 = vadd.f32 %v5542, %v5543
      %v5545 = vsel %vm237, %v5496, 0.0
      %v5546 = vadd.f32 %v5544, %v5545
      %v5547 = vsel %vm237, %v5497, 0.0
      %v5548 = vadd.f32 %v5546, %v5547
      %v5549 = vsel %vm237, %v5498, 0.0
      %v5550 = vadd.f32 %v5548, %v5549
      %v5551 = vsel %vm237, %v5499, 0.0
      %v5552 = vadd.f32 %v5550, %v5551
      %v5553 = vsel %vm237, %v5500, 0.0
      %v5554 = vadd.f32 %v5552, %v5553
      %v5555 = vsel %vm237, %v5501, 0.0
      %v5556 = vadd.f32 %v5554, %v5555
      %v5557 = vsel %vm237, %v5502, 0.0
      %v5558 = vadd.f32 %v5556, %v5557
      %v5559 = vsel %vm237, %v5503, 0.0
      %v5560 = vadd.f32 %v5558, %v5559
      %v5561 = vsel %vm237, %v5504, 0.0
      %v5562 = vadd.f32 %v5560, %v5561
      %v5563 = vsel %vm237, %v5505, 0.0
      %v5564 = vadd.f32 %v5562, %v5563
      %v5565 = vsel %vm237, %v5506, 0.0
      %v5566 = vadd.f32 %v5564, %v5565
      %v5567 = vsel %vm237, %v5507, 0.0
      %v5568 = vadd.f32 %v5566, %v5567
      %v5569 = vsel %vm237, %v5508, 0.0
      %v5570 = vadd.f32 %v5568, %v5569
      %v5571 = vsel %vm237, %v5509, 0.0
      %v5572 = vadd.f32 %v5570, %v5571
      %v5573 = vrot.slane %v5572, 4
      %v5574 = vadd.f32 %v5572, %v5573
      %v5575 = vrot.slane %v5574, 2
      %v5576 = vadd.f32 %v5574, %v5575
      %v5577 = vrot.slane %v5576, 1
      %v5578 = vadd.f32 %v5576, %v5577
      %v5579 = vmul.f32 %v5578, %v2651
      %v5580 = vadd.f32 %v5579, 1e-05
      %v5581 = vrsqrt.pop %v5580
      %v5582 = vmul.f32 %v5581, %v5580
      %v5583 = vmul.f32 %v5582, %v5581
      %v5584 = vmul.f32 0.5, %v5583
      %v5585 = vsub.f32 1.5, %v5584
      %v5586 = vmul.f32 %v5581, %v5585
      %vm5587 = vweird.f32 %v5580
      %vm5588 = vweird.f32 %v5581
      %vm5589 = vmor %vm5587, %vm5588
      %v5590 = vsel %vm5589, %v5581, %v5586
      %v5591 = vmul.f32 %v5446, %v5590
      %v5592 = vmul.f32 %v5447, %v5590
      %v5593 = vmul.f32 %v5448, %v5590
      %v5594 = vmul.f32 %v5449, %v5590
      %v5595 = vmul.f32 %v5450, %v5590
      %v5596 = vmul.f32 %v5451, %v5590
      %v5597 = vmul.f32 %v5452, %v5590
      %v5598 = vmul.f32 %v5453, %v5590
      %v5599 = vmul.f32 %v5454, %v5590
      %v5600 = vmul.f32 %v5455, %v5590
      %v5601 = vmul.f32 %v5456, %v5590
      %v5602 = vmul.f32 %v5457, %v5590
      %v5603 = vmul.f32 %v5458, %v5590
      %v5604 = vmul.f32 %v5459, %v5590
      %v5605 = vmul.f32 %v5460, %v5590
      %v5606 = vmul.f32 %v5461, %v5590
      %v5607 = vmul.f32 %v5462, %v5590
      %v5608 = vmul.f32 %v5463, %v5590
      %v5609 = vmul.f32 %v5464, %v5590
      %v5610 = vmul.f32 %v5465, %v5590
      %v5611 = vmul.f32 %v5466, %v5590
      %v5612 = vmul.f32 %v5467, %v5590
      %v5613 = vmul.f32 %v5468, %v5590
      %v5614 = vmul.f32 %v5469, %v5590
      %v5615 = vmul.f32 %v5470, %v5590
      %v5616 = vmul.f32 %v5471, %v5590
      %v5617 = vmul.f32 %v5472, %v5590
      %v5618 = vmul.f32 %v5473, %v5590
      %v5619 = vmul.f32 %v5474, %v5590
      %v5620 = vmul.f32 %v5475, %v5590
      %v5621 = vmul.f32 %v5476, %v5590
      %v5622 = vmul.f32 %v5477, %v5590
      %v5623 = vld [vmem:[%s930 + $0x1] sm:$0xff]
      %v5624 = vld [vmem:[%s930 + $0x9] sm:$0xff]
      %v5625 = vld [vmem:[%s930 + $0x19] sm:$0xff]
      %v5626 = vld [vmem:[%s930 + $0x21] sm:$0xff]
      %v5627 = vld [vmem:[%s930 + $0x31] sm:$0xff]
      %v5628 = vld [vmem:[%s930 + $0x39] sm:$0xff]
      %v5629 = vld [vmem:[%s930 + $0x49] sm:$0xff]
      %v5630 = vld [vmem:[%s930 + $0x51] sm:$0xff]
      %v5631 = vld [vmem:[%s930 + $0x61] sm:$0xff]
      %v5632 = vld [vmem:[%s930 + $0x69] sm:$0xff]
      %v5633 = vld [vmem:[%s930 + $0x79] sm:$0xff]
      %v5634 = vld [vmem:[%s930 + $0x81] sm:$0xff]
      %v5635 = vld [vmem:[%s930 + $0x91] sm:$0xff]
      %v5636 = vld [vmem:[%s930 + $0x99] sm:$0xff]
      %v5637 = vld [vmem:[%s930 + $0xa9] sm:$0xff]
      %v5638 = vld [vmem:[%s930 + $0xb1] sm:$0xff]
      %v5639 = vld [vmem:[%s930 + $0xc1] sm:$0xff]
      %v5640 = vld [vmem:[%s930 + $0xc9] sm:$0xff]
      %v5641 = vld [vmem:[%s930 + $0xd9] sm:$0xff]
      %v5642 = vld [vmem:[%s930 + $0xe1] sm:$0xff]
      %v5643 = vld [vmem:[%s930 + $0xf1] sm:$0xff]
      %v5644 = vld [vmem:[%s930 + $0xf9] sm:$0xff]
      %v5645 = vld [vmem:[%s930 + $0x109] sm:$0xff]
      %v5646 = vld [vmem:[%s930 + $0x111] sm:$0xff]
      %v5647 = vld [vmem:[%s930 + $0x121] sm:$0xff]
      %v5648 = vld [vmem:[%s930 + $0x129] sm:$0xff]
      %v5649 = vld [vmem:[%s930 + $0x139] sm:$0xff]
      %v5650 = vld [vmem:[%s930 + $0x141] sm:$0xff]
      %v5651 = vld [vmem:[%s930 + $0x151] sm:$0xff]
      %v5652 = vld [vmem:[%s930 + $0x159] sm:$0xff]
      %v5653 = vld [vmem:[%s930 + $0x169] sm:$0xff]
      %v5654 = vld [vmem:[%s930 + $0x171] sm:$0xff]
      %v5655 = vadd.f32 %v5623, %v5591
      %v5656 = vadd.f32 %v5624, %v5592
      %v5657 = vadd.f32 %v5625, %v5593
      %v5658 = vadd.f32 %v5626, %v5594
      %v5659 = vadd.f32 %v5627, %v5595
      %v5660 = vadd.f32 %v5628, %v5596
      %v5661 = vadd.f32 %v5629, %v5597
      %v5662 = vadd.f32 %v5630, %v5598
      %v5663 = vadd.f32 %v5631, %v5599
      %v5664 = vadd.f32 %v5632, %v5600
      %v5665 = vadd.f32 %v5633, %v5601
      %v5666 = vadd.f32 %v5634, %v5602
      %v5667 = vadd.f32 %v5635, %v5603
      %v5668 = vadd.f32 %v5636, %v5604
      %v5669 = vadd.f32 %v5637, %v5605
      %v5670 = vadd.f32 %v5638, %v5606
      %v5671 = vadd.f32 %v5639, %v5607
      %v5672 = vadd.f32 %v5640, %v5608
      %v5673 = vadd.f32 %v5641, %v5609
      %v5674 = vadd.f32 %v5642, %v5610
      %v5675 = vadd.f32 %v5643, %v5611
      %v5676 = vadd.f32 %v5644, %v5612
      %v5677 = vadd.f32 %v5645, %v5613
      %v5678 = vadd.f32 %v5646, %v5614
      %v5679 = vadd.f32 %v5647, %v5615
      %v5680 = vadd.f32 %v5648, %v5616
      %v5681 = vadd.f32 %v5649, %v5617
      %v5682 = vadd.f32 %v5650, %v5618
      %v5683 = vadd.f32 %v5651, %v5619
      %v5684 = vadd.f32 %v5652, %v5620
      %v5685 = vadd.f32 %v5653, %v5621
      %v5686 = vadd.f32 %v5654, %v5622
      %5687 = vst.msk [vmem:[%s170] sm:$0xff] %vm237, %v5655
      %5688 = vst.msk [vmem:[%s170 + $0x8] sm:$0xff] %vm237, %v5656
      %5689 = vst.msk [vmem:[%s170 + $0x10] sm:$0xff] %vm237, %v5657
      %5690 = vst.msk [vmem:[%s170 + $0x18] sm:$0xff] %vm237, %v5658
      %5691 = vst.msk [vmem:[%s170 + $0x20] sm:$0xff] %vm237, %v5659
      %5692 = vst.msk [vmem:[%s170 + $0x28] sm:$0xff] %vm237, %v5660
      %5693 = vst.msk [vmem:[%s170 + $0x30] sm:$0xff] %vm237, %v5661
      %5694 = vst.msk [vmem:[%s170 + $0x38] sm:$0xff] %vm237, %v5662
      %5695 = vst.msk [vmem:[%s170 + $0x40] sm:$0xff] %vm237, %v5663
      %5696 = vst.msk [vmem:[%s170 + $0x48] sm:$0xff] %vm237, %v5664
      %5697 = vst.msk [vmem:[%s170 + $0x50] sm:$0xff] %vm237, %v5665
      %5698 = vst.msk [vmem:[%s170 + $0x58] sm:$0xff] %vm237, %v5666
      %5699 = vst.msk [vmem:[%s170 + $0x60] sm:$0xff] %vm237, %v5667
      %5700 = vst.msk [vmem:[%s170 + $0x68] sm:$0xff] %vm237, %v5668
      %5701 = vst.msk [vmem:[%s170 + $0x70] sm:$0xff] %vm237, %v5669
      %5702 = vst.msk [vmem:[%s170 + $0x78] sm:$0xff] %vm237, %v5670
      %5703 = vst.msk [vmem:[%s170 + $0x80] sm:$0xff] %vm237, %v5671
      %5704 = vst.msk [vmem:[%s170 + $0x88] sm:$0xff] %vm237, %v5672
      %5705 = vst.msk [vmem:[%s170 + $0x90] sm:$0xff] %vm237, %v5673
      %5706 = vst.msk [vmem:[%s170 + $0x98] sm:$0xff] %vm237, %v5674
      %5707 = vst.msk [vmem:[%s170 + $0xa0] sm:$0xff] %vm237, %v5675
      %5708 = vst.msk [vmem:[%s170 + $0xa8] sm:$0xff] %vm237, %v5676
      %5709 = vst.msk [vmem:[%s170 + $0xb0] sm:$0xff] %vm237, %v5677
      %5710 = vst.msk [vmem:[%s170 + $0xb8] sm:$0xff] %vm237, %v5678
      %5711 = vst.msk [vmem:[%s170 + $0xc0] sm:$0xff] %vm237, %v5679
      %5712 = vst.msk [vmem:[%s170 + $0xc8] sm:$0xff] %vm237, %v5680
      %5713 = vst.msk [vmem:[%s170 + $0xd0] sm:$0xff] %vm237, %v5681
      %5714 = vst.msk [vmem:[%s170 + $0xd8] sm:$0xff] %vm237, %v5682
      %5715 = vst.msk [vmem:[%s170 + $0xe0] sm:$0xff] %vm237, %v5683
      %5716 = vst.msk [vmem:[%s170 + $0xe8] sm:$0xff] %vm237, %v5684
      %5717 = vst.msk [vmem:[%s170 + $0xf0] sm:$0xff] %vm237, %v5685
      %5718 = vst.msk [vmem:[%s170 + $0xf8] sm:$0xff] %vm237, %v5686
      %p5719 = scmp.lt.s32.totalorder %s14, 1
      %s5720 = scalar_select %p5719, %s14, 1
      %s5721 = smul.addr %s5720, 32
      %s5722 = smul.addr %s5721, 8
      %s5723 = scalar_lea.vmem %s3, %s5722
      // Predicated region
      $region33: #{tpu_custom_call.1} parent=31 // pred_check
        %p5724 = pneg %p100
      $region34: #{tpu_custom_call.1} parent=31 // pred_check_branch
        %5726 = sbr.rel (%p5724) target = $region36
      $region35: #{tpu_custom_call.1} parent=31 // pred_region
        _
      $region36: #{tpu_custom_call.1} parent=31 // pred_fallthru
        _
    $region32: #{tpu_custom_call.1} parent=5 // pred_fallthru
      _
    %p5727 = scmp.le.s32.totalorder 2, %s9
    // Predicated region
    $region37: #{tpu_custom_call.1} parent=5 // pred_check
      %p5728 = pneg %p5727
    $region38: #{tpu_custom_call.1} parent=5 // pred_check_branch
      %5730 = sbr.rel (%p5728) target = $region40
    $region39: #{tpu_custom_call.1} parent=5 // pred_region
      %s5731 = ssub.s32 %s9, 2
      // Predicated region
      $region41: #{tpu_custom_call.1} parent=39 // pred_check
        %p5732 = pneg %p106
      $region42: #{tpu_custom_call.1} parent=39 // pred_check_branch
        %5734 = sbr.rel (%p5732) target = $region44
      $region43: #{tpu_custom_call.1} parent=39 // pred_region
        %p5735 = scmp.lt.s32.totalorder %s15, 1
        %s5736 = scalar_select %p5735, %s15, 1
        %s5737 = smul.addr %s5736, 32
        %s5738 = smul.addr %s5737, 8
        %s5739 = scalar_lea.vmem %s3, %s5738
      $region44: #{tpu_custom_call.1} parent=39 // pred_fallthru
        _
    $region40: #{tpu_custom_call.1} parent=5 // pred_fallthru
      _
  $region6: #{tpu_custom_call.1} parent=0 // loop_footer
    %s13 = sadd.s32 1, %s9
  $region7: #{tpu_custom_call.1} parent=0 // loop_footer_branch
    %8 = sbr.rel target = $region3
  $region8: #{tpu_custom_call.1} parent=0 // loop_exit
    _

</llo_original>
